<compile_context>
chip_gen: v5e
topology: v5e:2x2
jax: 0.10.0
libtpu: 0.0.40
codegen_flags: <defaults>
</compile_context>

<pallas_src>
import numpy as np
import jax
import jax.numpy as jnp
from jax.experimental import pallas as pl
from jax.experimental.pallas import tpu as pltpu  # noqa: F401  (TPU backend)


# ------------------------------ fused kernel ---------------------------------

def _policy_kernel(x_ref, y_ref,
                   r1_ref, r2_ref, r3_ref,
                   g11_ref, g21_ref, g31_ref,
                   g12_ref, g22_ref, g32_ref,
                   b11_ref, b21_ref, b31_ref,
                   b12_ref, b22_ref, b32_ref,
                   wh_ref, bh_ref,
                   o_ref):
    """Entire AtariPolicy forward in one kernel; everything VMEM resident."""
    f32 = jnp.float32

    def conv(act, r_ref, g_ref, b_ref):
        # act: (N*H, W*Cin)  ->  (N*OH, OW*OCout)
        # conv expressed as  sum_i (R_i @ act) @ G_i + bias_row  (pure MXU work)
        acc = None
        for i in range(r_ref.shape[0]):            # static unroll over kernel rows
            rows = jnp.dot(r_ref[i], act, preferred_element_type=f32)
            part = jnp.dot(rows, g_ref[i], preferred_element_type=f32)
            acc = part if acc is None else acc + part
        return acc + b_ref[...]

    x = x_ref[...]
    yg = x * y_ref[...]                            # fused gaze multiply

    a = conv(x,  r1_ref, g11_ref, b11_ref)         # branch 1: conv1_1/2_1/3_1
    a = conv(a,  r2_ref, g21_ref, b21_ref)
    a = conv(a,  r3_ref, g31_ref, b31_ref)         # -> (N, 64)

    c = conv(yg, r1_ref, g12_ref, b12_ref)         # branch 2: conv1_2/2_2/3_2
    c = conv(c,  r2_ref, g22_ref, b22_ref)
    c = conv(c,  r3_ref, g32_ref, b32_ref)         # -> (N, 64)

    # (a + c)/2, conv_fc and conv_scores folded into a single affine head.
    wh = wh_ref[...]                               # already includes the 0.5 factor
    o_ref[...] = (jnp.dot(a, wh, preferred_element_type=f32)
                  + jnp.dot(c, wh, preferred_element_type=f32)
                  + bh_ref[...]).astype(o_ref.dtype)


# ------------------------- init-time weight packing ---------------------------

def _out_size(size, k, s):
    return (size - k) // s + 1


def _row_select(n, h, oh, kh, s):
    """R[i]: (N*OH, N*H) one-hot rows selecting input row s*oh + i per sample."""
    r = np.zeros((kh, n * oh, n * h), np.float32)
    for i in range(kh):
        for b in range(n):
            for o in range(oh):
                r[i, b * oh + o, b * h + s * o + i] = 1.0
    return r


def _col_weights(wt, w_in, ow, s):
    """G[i]: (W*Cin, OW*OCout) packing wt[:, :, i, :] with the W-stride pattern."""
    wt = np.asarray(wt, np.float32)
    oc, cin, kh, kw = wt.shape
    g = np.zeros((kh, w_in * cin, ow * oc), np.float32)
    for i in range(kh):
        for o in range(ow):
            for j in range(kw):
                col = s * o + j
                g[i, col * cin:(col + 1) * cin, o * oc:(o + 1) * oc] = wt[:, :, i, j].T
    return g


def _bias_row(b, ow):
    return np.tile(np.asarray(b, np.float32), ow)[None, :]


def init_params(key, fc_in_features):
    """PyTorch-style init for all conv / linear weights."""
    def conv_p(k, oc, ic, kh, kw):
        k1, k2 = jax.random.split(k)
        bound = 1.0 / float(np.sqrt(ic * kh * kw))
        w = jax.random.uniform(k1, (oc, ic, kh, kw), jnp.float32, -bound, bound)
        b = jax.random.uniform(k2, (oc,), jnp.float32, -bound, bound)
        return w, b

    keys = jax.random.split(key, 8)
    params = {
        "conv1_1": conv_p(keys[0], 32, 3, 8, 8),
        "conv2_1": conv_p(keys[1], 64, 32, 4, 4),
        "conv3_1": conv_p(keys[2], 64, 64, 3, 3),
        "conv1_2": conv_p(keys[3], 32, 3, 8, 8),
        "conv2_2": conv_p(keys[4], 64, 32, 4, 4),
        "conv3_2": conv_p(keys[5], 64, 64, 3, 3),
        "conv_scores": conv_p(keys[6], 18, 64, 1, 1),
    }
    # conv_fc (see TODO(synk) above): Linear(fc_in_features -> 64).
    k1, k2 = jax.random.split(keys[7])
    bound = 1.0 / float(np.sqrt(fc_in_features))
    params["conv_fc"] = (
        jax.random.uniform(k1, (fc_in_features, 64), jnp.float32, -bound, bound),
        jax.random.uniform(k2, (64,), jnp.float32, -bound, bound),
    )
    return params


def pack_params(params, n, c, h, w):
    """One-time relayout of all weights into the fused kernel's matmul operands."""
    h1, w1 = _out_size(h, 8, 4), _out_size(w, 8, 4)
    h2, w2 = _out_size(h1, 4, 2), _out_size(w1, 4, 2)
    h3, w3 = _out_size(h2, 3, 1), _out_size(w2, 3, 1)
    assert h3 == 1 and w3 == 1, "convFC fold assumes a 1x1 final feature map"

    r1 = _row_select(n, h, h1, 8, 4)
    r2 = _row_select(n, h1, h2, 4, 2)
    r3 = _row_select(n, h2, h3, 3, 1)

    g11 = _col_weights(params["conv1_1"][0], w, w1, 4)
    g21 = _col_weights(params["conv2_1"][0], w1, w2, 2)
    g31 = _col_weights(params["conv3_1"][0], w2, w3, 1)
    g12 = _col_weights(params["conv1_2"][0], w, w1, 4)
    g22 = _col_weights(params["conv2_2"][0], w1, w2, 2)
    g32 = _col_weights(params["conv3_2"][0], w2, w3, 1)

    b11 = _bias_row(params["conv1_1"][1], w1)
    b21 = _bias_row(params["conv2_1"][1], w2)
    b31 = _bias_row(params["conv3_1"][1], w3)
    b12 = _bias_row(params["conv1_2"][1], w1)
    b22 = _bias_row(params["conv2_2"][1], w2)
    b32 = _bias_row(params["conv3_2"][1], w3)

    # Fold (x+y)/2, conv_fc and conv_scores into one affine head.
    fc_w = np.asarray(params["conv_fc"][0], np.float32)
    fc_b = np.asarray(params["conv_fc"][1], np.float32)
    sw = np.asarray(params["conv_scores"][0], np.float32)
    sb = np.asarray(params["conv_scores"][1], np.float32)
    sw_mat = sw.reshape(sw.shape[0], -1).T            # (64, 18)
    wh = 0.5 * (fc_w @ sw_mat)                        # (64, 18)
    bh = (fc_b @ sw_mat + sb)[None, :]                # (1, 18)

    ops = (r1, r2, r3, g11, g21, g31, g12, g22, g32,
           b11, b21, b31, b12, b22, b32, wh, bh)
    return tuple(jnp.asarray(a) for a in ops)


# --------------------------------- forward -----------------------------------

def atari_policy_forward(ops, x, y):
    """x, y: (N, C, H, W) float32 NCHW, exactly like the PyTorch module."""
    n = x.shape[0]
    num_actions = ops[-1].shape[-1]

    def to_rows(t):
        nn, cc, hh, ww = t.shape                   # one-time relayout, outside kernel
        return t.transpose(0, 2, 3, 1).reshape(nn * hh, ww * cc).astype(jnp.float32)

    return pl.pallas_call(
        _policy_kernel,
        out_shape=jax.ShapeDtypeStruct((n, num_actions), jnp.float32),
    )(to_rows(x), to_rows(y), *ops)


# ------------------------- plain-JAX reference (check) ------------------------

def reference_forward(params, x, y):
    hi = jax.lax.Precision.HIGHEST

    def conv(t, wb, s):
        w, b = wb
        o = jax.lax.conv_general_dilated(
            t, w, window_strides=(s, s), padding="VALID",
            dimension_numbers=("NCHW", "OIHW", "NCHW"), precision=hi)
        return o + b[None, :, None, None]

    yg = x * y
    a = conv(conv(conv(x, params["conv1_1"], 4), params["conv2_1"], 2), params["conv3_1"], 1)
    c = conv(conv(conv(yg, params["conv1_2"], 4), params["conv2_2"], 2), params["conv3_2"], 1)
    z = (a + c) / 2.0
    z = z.reshape(z.shape[0], -1)
    fc_w, fc_b = params["conv_fc"]
    z = jnp.dot(z, fc_w, precision=hi) + fc_b
    sw, sb = params["conv_scores"]
    return jnp.dot(z, sw.reshape(sw.shape[0], -1).T, precision=hi) + sb


# ----------------------------------- main -------------------------------------

if __name__ == "__main__":
    key = jax.random.PRNGKey(0)
    kx, ky, kp = jax.random.split(key, 3)

    # Small Atari-like shapes: 36x36 -> conv1 8x8 -> conv2 3x3 -> conv3 1x1.
    N, C, H, W = 2, 3, 36, 36
    x = jax.random.normal(kx, (N, C, H, W), jnp.float32)
    y = jax.random.uniform(ky, (N, C, H, W), jnp.float32)

    h3 = _out_size(_out_size(_out_size(H, 8, 4), 4, 2), 3, 1)
    w3 = _out_size(_out_size(_out_size(W, 8, 4), 4, 2), 3, 1)
    params = init_params(kp, 64 * h3 * w3)
    ops = pack_params(params, N, C, H, W)

    fwd = jax.jit(atari_policy_forward)
    out = jax.block_until_ready(fwd(ops, x, y))
    assert out.shape == (N, 18), out.shape
    assert bool(jnp.all(jnp.isfinite(out)))

    # Correctness check against a plain-JAX (XLA) reference of the same forward.
    ref = reference_forward(params, x, y)
    err = float(jnp.max(jnp.abs(out - ref)))
    assert err < 2e-2, f"mismatch vs reference: max abs err = {err}"

    print("KERNEL_OK")
</pallas_src>

<mosaic_0001>
module attributes {stable_mosaic.version = 11 : i64} {
  func.func @_policy_kernel(%arg0: memref<72x108xf32, #tpu.memory_space<vmem>>, %arg1: memref<72x108xf32, #tpu.memory_space<vmem>>, %arg2: memref<8x16x72xf32, #tpu.memory_space<vmem>>, %arg3: memref<4x6x16xf32, #tpu.memory_space<vmem>>, %arg4: memref<3x2x6xf32, #tpu.memory_space<vmem>>, %arg5: memref<8x108x256xf32, #tpu.memory_space<vmem>>, %arg6: memref<4x256x192xf32, #tpu.memory_space<vmem>>, %arg7: memref<3x192x64xf32, #tpu.memory_space<vmem>>, %arg8: memref<8x108x256xf32, #tpu.memory_space<vmem>>, %arg9: memref<4x256x192xf32, #tpu.memory_space<vmem>>, %arg10: memref<3x192x64xf32, #tpu.memory_space<vmem>>, %arg11: memref<1x256xf32, #tpu.memory_space<vmem>>, %arg12: memref<1x192xf32, #tpu.memory_space<vmem>>, %arg13: memref<1x64xf32, #tpu.memory_space<vmem>>, %arg14: memref<1x256xf32, #tpu.memory_space<vmem>>, %arg15: memref<1x192xf32, #tpu.memory_space<vmem>>, %arg16: memref<1x64xf32, #tpu.memory_space<vmem>>, %arg17: memref<64x18xf32, #tpu.memory_space<vmem>>, %arg18: memref<1x18xf32, #tpu.memory_space<vmem>>, %arg19: memref<2x18xf32, #tpu.memory_space<vmem>>) attributes {dimension_semantics = [], scalar_prefetch = 0 : i64, scratch_operands = 0 : i64, tpu.core_type = #tpu.core_type<tc>} {
    %c0 = arith.constant 0 : index
    %c0_0 = arith.constant 0 : index
    %0 = vector.load %arg0[%c0, %c0_0] : memref<72x108xf32, #tpu.memory_space<vmem>>, vector<72x108xf32>
    %c0_1 = arith.constant 0 : index
    %c0_2 = arith.constant 0 : index
    %1 = vector.load %arg1[%c0_1, %c0_2] : memref<72x108xf32, #tpu.memory_space<vmem>>, vector<72x108xf32>
    %2 = arith.mulf %0, %1 : vector<72x108xf32>
    %c0_3 = arith.constant 0 : index
    %c0_4 = arith.constant 0 : index
    %c0_5 = arith.constant 0 : index
    %3 = vector.load %arg2[%c0_3, %c0_4, %c0_5] : memref<8x16x72xf32, #tpu.memory_space<vmem>>, vector<1x16x72xf32>
    %4 = vector.shape_cast %3 : vector<1x16x72xf32> to vector<16x72xf32>
    %cst = arith.constant dense<0.000000e+00> : vector<16x108xf32>
    %5 = tpu.matmul %4, %0, %cst {dimension_numbers = #tpu.dot_dimension_numbers<[1], [0], [0], [1], [0, 0, 1, 1], [], []>} : vector<16x72xf32>, vector<72x108xf32>, vector<16x108xf32> -> vector<16x108xf32>
    %c0_6 = arith.constant 0 : index
    %c0_7 = arith.constant 0 : index
    %c0_8 = arith.constant 0 : index
    %6 = vector.load %arg5[%c0_6, %c0_7, %c0_8] : memref<8x108x256xf32, #tpu.memory_space<vmem>>, vector<1x108x256xf32>
    %7 = vector.shape_cast %6 : vector<1x108x256xf32> to vector<108x256xf32>
    %cst_9 = arith.constant dense<0.000000e+00> : vector<16x256xf32>
    %8 = tpu.matmul %5, %7, %cst_9 {dimension_numbers = #tpu.dot_dimension_numbers<[1], [0], [0], [1], [0, 0, 1, 1], [], []>} : vector<16x108xf32>, vector<108x256xf32>, vector<16x256xf32> -> vector<16x256xf32>
    %c1 = arith.constant 1 : index
    %c0_10 = arith.constant 0 : index
    %c0_11 = arith.constant 0 : index
    %9 = vector.load %arg2[%c1, %c0_10, %c0_11] : memref<8x16x72xf32, #tpu.memory_space<vmem>>, vector<1x16x72xf32>
    %10 = vector.shape_cast %9 : vector<1x16x72xf32> to vector<16x72xf32>
    %cst_12 = arith.constant dense<0.000000e+00> : vector<16x108xf32>
    %11 = tpu.matmul %10, %0, %cst_12 {dimension_numbers = #tpu.dot_dimension_numbers<[1], [0], [0], [1], [0, 0, 1, 1], [], []>} : vector<16x72xf32>, vector<72x108xf32>, vector<16x108xf32> -> vector<16x108xf32>
    %c1_13 = arith.constant 1 : index
    %c0_14 = arith.constant 0 : index
    %c0_15 = arith.constant 0 : index
    %12 = vector.load %arg5[%c1_13, %c0_14, %c0_15] : memref<8x108x256xf32, #tpu.memory_space<vmem>>, vector<1x108x256xf32>
    %13 = vector.shape_cast %12 : vector<1x108x256xf32> to vector<108x256xf32>
    %cst_16 = arith.constant dense<0.000000e+00> : vector<16x256xf32>
    %14 = tpu.matmul %11, %13, %cst_16 {dimension_numbers = #tpu.dot_dimension_numbers<[1], [0], [0], [1], [0, 0, 1, 1], [], []>} : vector<16x108xf32>, vector<108x256xf32>, vector<16x256xf32> -> vector<16x256xf32>
    %15 = arith.addf %8, %14 : vector<16x256xf32>
    %c2 = arith.constant 2 : index
    %c0_17 = arith.constant 0 : index
    %c0_18 = arith.constant 0 : index
    %16 = vector.load %arg2[%c2, %c0_17, %c0_18] : memref<8x16x72xf32, #tpu.memory_space<vmem>>, vector<1x16x72xf32>
    %17 = vector.shape_cast %16 : vector<1x16x72xf32> to vector<16x72xf32>
    %cst_19 = arith.constant dense<0.000000e+00> : vector<16x108xf32>
    %18 = tpu.matmul %17, %0, %cst_19 {dimension_numbers = #tpu.dot_dimension_numbers<[1], [0], [0], [1], [0, 0, 1, 1], [], []>} : vector<16x72xf32>, vector<72x108xf32>, vector<16x108xf32> -> vector<16x108xf32>
    %c2_20 = arith.constant 2 : index
    %c0_21 = arith.constant 0 : index
    %c0_22 = arith.constant 0 : index
    %19 = vector.load %arg5[%c2_20, %c0_21, %c0_22] : memref<8x108x256xf32, #tpu.memory_space<vmem>>, vector<1x108x256xf32>
    %20 = vector.shape_cast %19 : vector<1x108x256xf32> to vector<108x256xf32>
    %cst_23 = arith.constant dense<0.000000e+00> : vector<16x256xf32>
    %21 = tpu.matmul %18, %20, %cst_23 {dimension_numbers = #tpu.dot_dimension_numbers<[1], [0], [0], [1], [0, 0, 1, 1], [], []>} : vector<16x108xf32>, vector<108x256xf32>, vector<16x256xf32> -> vector<16x256xf32>
    %22 = arith.addf %15, %21 : vector<16x256xf32>
    %c3 = arith.constant 3 : index
    %c0_24 = arith.constant 0 : index
    %c0_25 = arith.constant 0 : index
    %23 = vector.load %arg2[%c3, %c0_24, %c0_25] : memref<8x16x72xf32, #tpu.memory_space<vmem>>, vector<1x16x72xf32>
    %24 = vector.shape_cast %23 : vector<1x16x72xf32> to vector<16x72xf32>
    %cst_26 = arith.constant dense<0.000000e+00> : vector<16x108xf32>
    %25 = tpu.matmul %24, %0, %cst_26 {dimension_numbers = #tpu.dot_dimension_numbers<[1], [0], [0], [1], [0, 0, 1, 1], [], []>} : vector<16x72xf32>, vector<72x108xf32>, vector<16x108xf32> -> vector<16x108xf32>
    %c3_27 = arith.constant 3 : index
    %c0_28 = arith.constant 0 : index
    %c0_29 = arith.constant 0 : index
    %26 = vector.load %arg5[%c3_27, %c0_28, %c0_29] : memref<8x108x256xf32, #tpu.memory_space<vmem>>, vector<1x108x256xf32>
    %27 = vector.shape_cast %26 : vector<1x108x256xf32> to vector<108x256xf32>
    %cst_30 = arith.constant dense<0.000000e+00> : vector<16x256xf32>
    %28 = tpu.matmul %25, %27, %cst_30 {dimension_numbers = #tpu.dot_dimension_numbers<[1], [0], [0], [1], [0, 0, 1, 1], [], []>} : vector<16x108xf32>, vector<108x256xf32>, vector<16x256xf32> -> vector<16x256xf32>
    %29 = arith.addf %22, %28 : vector<16x256xf32>
    %c4 = arith.constant 4 : index
    %c0_31 = arith.constant 0 : index
    %c0_32 = arith.constant 0 : index
    %30 = vector.load %arg2[%c4, %c0_31, %c0_32] : memref<8x16x72xf32, #tpu.memory_space<vmem>>, vector<1x16x72xf32>
    %31 = vector.shape_cast %30 : vector<1x16x72xf32> to vector<16x72xf32>
    %cst_33 = arith.constant dense<0.000000e+00> : vector<16x108xf32>
    %32 = tpu.matmul %31, %0, %cst_33 {dimension_numbers = #tpu.dot_dimension_numbers<[1], [0], [0], [1], [0, 0, 1, 1], [], []>} : vector<16x72xf32>, vector<72x108xf32>, vector<16x108xf32> -> vector<16x108xf32>
    %c4_34 = arith.constant 4 : index
    %c0_35 = arith.constant 0 : index
    %c0_36 = arith.constant 0 : index
    %33 = vector.load %arg5[%c4_34, %c0_35, %c0_36] : memref<8x108x256xf32, #tpu.memory_space<vmem>>, vector<1x108x256xf32>
    %34 = vector.shape_cast %33 : vector<1x108x256xf32> to vector<108x256xf32>
    %cst_37 = arith.constant dense<0.000000e+00> : vector<16x256xf32>
    %35 = tpu.matmul %32, %34, %cst_37 {dimension_numbers = #tpu.dot_dimension_numbers<[1], [0], [0], [1], [0, 0, 1, 1], [], []>} : vector<16x108xf32>, vector<108x256xf32>, vector<16x256xf32> -> vector<16x256xf32>
    %36 = arith.addf %29, %35 : vector<16x256xf32>
    %c5 = arith.constant 5 : index
    %c0_38 = arith.constant 0 : index
    %c0_39 = arith.constant 0 : index
    %37 = vector.load %arg2[%c5, %c0_38, %c0_39] : memref<8x16x72xf32, #tpu.memory_space<vmem>>, vector<1x16x72xf32>
    %38 = vector.shape_cast %37 : vector<1x16x72xf32> to vector<16x72xf32>
    %cst_40 = arith.constant dense<0.000000e+00> : vector<16x108xf32>
    %39 = tpu.matmul %38, %0, %cst_40 {dimension_numbers = #tpu.dot_dimension_numbers<[1], [0], [0], [1], [0, 0, 1, 1], [], []>} : vector<16x72xf32>, vector<72x108xf32>, vector<16x108xf32> -> vector<16x108xf32>
    %c5_41 = arith.constant 5 : index
    %c0_42 = arith.constant 0 : index
    %c0_43 = arith.constant 0 : index
    %40 = vector.load %arg5[%c5_41, %c0_42, %c0_43] : memref<8x108x256xf32, #tpu.memory_space<vmem>>, vector<1x108x256xf32>
    %41 = vector.shape_cast %40 : vector<1x108x256xf32> to vector<108x256xf32>
    %cst_44 = arith.constant dense<0.000000e+00> : vector<16x256xf32>
    %42 = tpu.matmul %39, %41, %cst_44 {dimension_numbers = #tpu.dot_dimension_numbers<[1], [0], [0], [1], [0, 0, 1, 1], [], []>} : vector<16x108xf32>, vector<108x256xf32>, vector<16x256xf32> -> vector<16x256xf32>
    %43 = arith.addf %36, %42 : vector<16x256xf32>
    %c6 = arith.constant 6 : index
    %c0_45 = arith.constant 0 : index
    %c0_46 = arith.constant 0 : index
    %44 = vector.load %arg2[%c6, %c0_45, %c0_46] : memref<8x16x72xf32, #tpu.memory_space<vmem>>, vector<1x16x72xf32>
    %45 = vector.shape_cast %44 : vector<1x16x72xf32> to vector<16x72xf32>
    %cst_47 = arith.constant dense<0.000000e+00> : vector<16x108xf32>
    %46 = tpu.matmul %45, %0, %cst_47 {dimension_numbers = #tpu.dot_dimension_numbers<[1], [0], [0], [1], [0, 0, 1, 1], [], []>} : vector<16x72xf32>, vector<72x108xf32>, vector<16x108xf32> -> vector<16x108xf32>
    %c6_48 = arith.constant 6 : index
    %c0_49 = arith.constant 0 : index
    %c0_50 = arith.constant 0 : index
    %47 = vector.load %arg5[%c6_48, %c0_49, %c0_50] : memref<8x108x256xf32, #tpu.memory_space<vmem>>, vector<1x108x256xf32>
    %48 = vector.shape_cast %47 : vector<1x108x256xf32> to vector<108x256xf32>
    %cst_51 = arith.constant dense<0.000000e+00> : vector<16x256xf32>
    %49 = tpu.matmul %46, %48, %cst_51 {dimension_numbers = #tpu.dot_dimension_numbers<[1], [0], [0], [1], [0, 0, 1, 1], [], []>} : vector<16x108xf32>, vector<108x256xf32>, vector<16x256xf32> -> vector<16x256xf32>
    %50 = arith.addf %43, %49 : vector<16x256xf32>
    %c7 = arith.constant 7 : index
    %c0_52 = arith.constant 0 : index
    %c0_53 = arith.constant 0 : index
    %51 = vector.load %arg2[%c7, %c0_52, %c0_53] : memref<8x16x72xf32, #tpu.memory_space<vmem>>, vector<1x16x72xf32>
    %52 = vector.shape_cast %51 : vector<1x16x72xf32> to vector<16x72xf32>
    %cst_54 = arith.constant dense<0.000000e+00> : vector<16x108xf32>
    %53 = tpu.matmul %52, %0, %cst_54 {dimension_numbers = #tpu.dot_dimension_numbers<[1], [0], [0], [1], [0, 0, 1, 1], [], []>} : vector<16x72xf32>, vector<72x108xf32>, vector<16x108xf32> -> vector<16x108xf32>
    %c7_55 = arith.constant 7 : index
    %c0_56 = arith.constant 0 : index
    %c0_57 = arith.constant 0 : index
    %54 = vector.load %arg5[%c7_55, %c0_56, %c0_57] : memref<8x108x256xf32, #tpu.memory_space<vmem>>, vector<1x108x256xf32>
    %55 = vector.shape_cast %54 : vector<1x108x256xf32> to vector<108x256xf32>
    %cst_58 = arith.constant dense<0.000000e+00> : vector<16x256xf32>
    %56 = tpu.matmul %53, %55, %cst_58 {dimension_numbers = #tpu.dot_dimension_numbers<[1], [0], [0], [1], [0, 0, 1, 1], [], []>} : vector<16x108xf32>, vector<108x256xf32>, vector<16x256xf32> -> vector<16x256xf32>
    %57 = arith.addf %50, %56 : vector<16x256xf32>
    %c0_59 = arith.constant 0 : index
    %c0_60 = arith.constant 0 : index
    %58 = vector.load %arg11[%c0_59, %c0_60] : memref<1x256xf32, #tpu.memory_space<vmem>>, vector<1x256xf32>
    %59 = vector.broadcast %58 : vector<1x256xf32> to vector<16x256xf32>
    %60 = arith.addf %57, %59 : vector<16x256xf32>
    %c0_61 = arith.constant 0 : index
    %c0_62 = arith.constant 0 : index
    %c0_63 = arith.constant 0 : index
    %61 = vector.load %arg3[%c0_61, %c0_62, %c0_63] : memref<4x6x16xf32, #tpu.memory_space<vmem>>, vector<1x6x16xf32>
    %62 = vector.shape_cast %61 : vector<1x6x16xf32> to vector<6x16xf32>
    %cst_64 = arith.constant dense<0.000000e+00> : vector<6x256xf32>
    %63 = tpu.matmul %62, %60, %cst_64 {dimension_numbers = #tpu.dot_dimension_numbers<[1], [0], [0], [1], [0, 0, 1, 1], [], []>} : vector<6x16xf32>, vector<16x256xf32>, vector<6x256xf32> -> vector<6x256xf32>
    %c0_65 = arith.constant 0 : index
    %c0_66 = arith.constant 0 : index
    %c0_67 = arith.constant 0 : index
    %64 = vector.load %arg6[%c0_65, %c0_66, %c0_67] : memref<4x256x192xf32, #tpu.memory_space<vmem>>, vector<1x256x192xf32>
    %65 = vector.shape_cast %64 : vector<1x256x192xf32> to vector<256x192xf32>
    %cst_68 = arith.constant dense<0.000000e+00> : vector<6x192xf32>
    %66 = tpu.matmul %63, %65, %cst_68 {dimension_numbers = #tpu.dot_dimension_numbers<[1], [0], [0], [1], [0, 0, 1, 1], [], []>} : vector<6x256xf32>, vector<256x192xf32>, vector<6x192xf32> -> vector<6x192xf32>
    %c1_69 = arith.constant 1 : index
    %c0_70 = arith.constant 0 : index
    %c0_71 = arith.constant 0 : index
    %67 = vector.load %arg3[%c1_69, %c0_70, %c0_71] : memref<4x6x16xf32, #tpu.memory_space<vmem>>, vector<1x6x16xf32>
    %68 = vector.shape_cast %67 : vector<1x6x16xf32> to vector<6x16xf32>
    %cst_72 = arith.constant dense<0.000000e+00> : vector<6x256xf32>
    %69 = tpu.matmul %68, %60, %cst_72 {dimension_numbers = #tpu.dot_dimension_numbers<[1], [0], [0], [1], [0, 0, 1, 1], [], []>} : vector<6x16xf32>, vector<16x256xf32>, vector<6x256xf32> -> vector<6x256xf32>
    %c1_73 = arith.constant 1 : index
    %c0_74 = arith.constant 0 : index
    %c0_75 = arith.constant 0 : index
    %70 = vector.load %arg6[%c1_73, %c0_74, %c0_75] : memref<4x256x192xf32, #tpu.memory_space<vmem>>, vector<1x256x192xf32>
    %71 = vector.shape_cast %70 : vector<1x256x192xf32> to vector<256x192xf32>
    %cst_76 = arith.constant dense<0.000000e+00> : vector<6x192xf32>
    %72 = tpu.matmul %69, %71, %cst_76 {dimension_numbers = #tpu.dot_dimension_numbers<[1], [0], [0], [1], [0, 0, 1, 1], [], []>} : vector<6x256xf32>, vector<256x192xf32>, vector<6x192xf32> -> vector<6x192xf32>
    %73 = arith.addf %66, %72 : vector<6x192xf32>
    %c2_77 = arith.constant 2 : index
    %c0_78 = arith.constant 0 : index
    %c0_79 = arith.constant 0 : index
    %74 = vector.load %arg3[%c2_77, %c0_78, %c0_79] : memref<4x6x16xf32, #tpu.memory_space<vmem>>, vector<1x6x16xf32>
    %75 = vector.shape_cast %74 : vector<1x6x16xf32> to vector<6x16xf32>
    %cst_80 = arith.constant dense<0.000000e+00> : vector<6x256xf32>
    %76 = tpu.matmul %75, %60, %cst_80 {dimension_numbers = #tpu.dot_dimension_numbers<[1], [0], [0], [1], [0, 0, 1, 1], [], []>} : vector<6x16xf32>, vector<16x256xf32>, vector<6x256xf32> -> vector<6x256xf32>
    %c2_81 = arith.constant 2 : index
    %c0_82 = arith.constant 0 : index
    %c0_83 = arith.constant 0 : index
    %77 = vector.load %arg6[%c2_81, %c0_82, %c0_83] : memref<4x256x192xf32, #tpu.memory_space<vmem>>, vector<1x256x192xf32>
    %78 = vector.shape_cast %77 : vector<1x256x192xf32> to vector<256x192xf32>
    %cst_84 = arith.constant dense<0.000000e+00> : vector<6x192xf32>
    %79 = tpu.matmul %76, %78, %cst_84 {dimension_numbers = #tpu.dot_dimension_numbers<[1], [0], [0], [1], [0, 0, 1, 1], [], []>} : vector<6x256xf32>, vector<256x192xf32>, vector<6x192xf32> -> vector<6x192xf32>
    %80 = arith.addf %73, %79 : vector<6x192xf32>
    %c3_85 = arith.constant 3 : index
    %c0_86 = arith.constant 0 : index
    %c0_87 = arith.constant 0 : index
    %81 = vector.load %arg3[%c3_85, %c0_86, %c0_87] : memref<4x6x16xf32, #tpu.memory_space<vmem>>, vector<1x6x16xf32>
    %82 = vector.shape_cast %81 : vector<1x6x16xf32> to vector<6x16xf32>
    %cst_88 = arith.constant dense<0.000000e+00> : vector<6x256xf32>
    %83 = tpu.matmul %82, %60, %cst_88 {dimension_numbers = #tpu.dot_dimension_numbers<[1], [0], [0], [1], [0, 0, 1, 1], [], []>} : vector<6x16xf32>, vector<16x256xf32>, vector<6x256xf32> -> vector<6x256xf32>
    %c3_89 = arith.constant 3 : index
    %c0_90 = arith.constant 0 : index
    %c0_91 = arith.constant 0 : index
    %84 = vector.load %arg6[%c3_89, %c0_90, %c0_91] : memref<4x256x192xf32, #tpu.memory_space<vmem>>, vector<1x256x192xf32>
    %85 = vector.shape_cast %84 : vector<1x256x192xf32> to vector<256x192xf32>
    %cst_92 = arith.constant dense<0.000000e+00> : vector<6x192xf32>
    %86 = tpu.matmul %83, %85, %cst_92 {dimension_numbers = #tpu.dot_dimension_numbers<[1], [0], [0], [1], [0, 0, 1, 1], [], []>} : vector<6x256xf32>, vector<256x192xf32>, vector<6x192xf32> -> vector<6x192xf32>
    %87 = arith.addf %80, %86 : vector<6x192xf32>
    %c0_93 = arith.constant 0 : index
    %c0_94 = arith.constant 0 : index
    %88 = vector.load %arg12[%c0_93, %c0_94] : memref<1x192xf32, #tpu.memory_space<vmem>>, vector<1x192xf32>
    %89 = vector.broadcast %88 : vector<1x192xf32> to vector<6x192xf32>
    %90 = arith.addf %87, %89 : vector<6x192xf32>
    %c0_95 = arith.constant 0 : index
    %c0_96 = arith.constant 0 : index
    %c0_97 = arith.constant 0 : index
    %91 = vector.load %arg4[%c0_95, %c0_96, %c0_97] : memref<3x2x6xf32, #tpu.memory_space<vmem>>, vector<1x2x6xf32>
    %92 = vector.shape_cast %91 : vector<1x2x6xf32> to vector<2x6xf32>
    %cst_98 = arith.constant dense<0.000000e+00> : vector<2x192xf32>
    %93 = tpu.matmul %92, %90, %cst_98 {dimension_numbers = #tpu.dot_dimension_numbers<[1], [0], [0], [1], [0, 0, 1, 1], [], []>} : vector<2x6xf32>, vector<6x192xf32>, vector<2x192xf32> -> vector<2x192xf32>
    %c0_99 = arith.constant 0 : index
    %c0_100 = arith.constant 0 : index
    %c0_101 = arith.constant 0 : index
    %94 = vector.load %arg7[%c0_99, %c0_100, %c0_101] : memref<3x192x64xf32, #tpu.memory_space<vmem>>, vector<1x192x64xf32>
    %95 = vector.shape_cast %94 : vector<1x192x64xf32> to vector<192x64xf32>
    %cst_102 = arith.constant dense<0.000000e+00> : vector<2x64xf32>
    %96 = tpu.matmul %93, %95, %cst_102 {dimension_numbers = #tpu.dot_dimension_numbers<[1], [0], [0], [1], [0, 0, 1, 1], [], []>} : vector<2x192xf32>, vector<192x64xf32>, vector<2x64xf32> -> vector<2x64xf32>
    %c1_103 = arith.constant 1 : index
    %c0_104 = arith.constant 0 : index
    %c0_105 = arith.constant 0 : index
    %97 = vector.load %arg4[%c1_103, %c0_104, %c0_105] : memref<3x2x6xf32, #tpu.memory_space<vmem>>, vector<1x2x6xf32>
    %98 = vector.shape_cast %97 : vector<1x2x6xf32> to vector<2x6xf32>
    %cst_106 = arith.constant dense<0.000000e+00> : vector<2x192xf32>
    %99 = tpu.matmul %98, %90, %cst_106 {dimension_numbers = #tpu.dot_dimension_numbers<[1], [0], [0], [1], [0, 0, 1, 1], [], []>} : vector<2x6xf32>, vector<6x192xf32>, vector<2x192xf32> -> vector<2x192xf32>
    %c1_107 = arith.constant 1 : index
    %c0_108 = arith.constant 0 : index
    %c0_109 = arith.constant 0 : index
    %100 = vector.load %arg7[%c1_107, %c0_108, %c0_109] : memref<3x192x64xf32, #tpu.memory_space<vmem>>, vector<1x192x64xf32>
    %101 = vector.shape_cast %100 : vector<1x192x64xf32> to vector<192x64xf32>
    %cst_110 = arith.constant dense<0.000000e+00> : vector<2x64xf32>
    %102 = tpu.matmul %99, %101, %cst_110 {dimension_numbers = #tpu.dot_dimension_numbers<[1], [0], [0], [1], [0, 0, 1, 1], [], []>} : vector<2x192xf32>, vector<192x64xf32>, vector<2x64xf32> -> vector<2x64xf32>
    %103 = arith.addf %96, %102 : vector<2x64xf32>
    %c2_111 = arith.constant 2 : index
    %c0_112 = arith.constant 0 : index
    %c0_113 = arith.constant 0 : index
    %104 = vector.load %arg4[%c2_111, %c0_112, %c0_113] : memref<3x2x6xf32, #tpu.memory_space<vmem>>, vector<1x2x6xf32>
    %105 = vector.shape_cast %104 : vector<1x2x6xf32> to vector<2x6xf32>
    %cst_114 = arith.constant dense<0.000000e+00> : vector<2x192xf32>
    %106 = tpu.matmul %105, %90, %cst_114 {dimension_numbers = #tpu.dot_dimension_numbers<[1], [0], [0], [1], [0, 0, 1, 1], [], []>} : vector<2x6xf32>, vector<6x192xf32>, vector<2x192xf32> -> vector<2x192xf32>
    %c2_115 = arith.constant 2 : index
    %c0_116 = arith.constant 0 : index
    %c0_117 = arith.constant 0 : index
    %107 = vector.load %arg7[%c2_115, %c0_116, %c0_117] : memref<3x192x64xf32, #tpu.memory_space<vmem>>, vector<1x192x64xf32>
    %108 = vector.shape_cast %107 : vector<1x192x64xf32> to vector<192x64xf32>
    %cst_118 = arith.constant dense<0.000000e+00> : vector<2x64xf32>
    %109 = tpu.matmul %106, %108, %cst_118 {dimension_numbers = #tpu.dot_dimension_numbers<[1], [0], [0], [1], [0, 0, 1, 1], [], []>} : vector<2x192xf32>, vector<192x64xf32>, vector<2x64xf32> -> vector<2x64xf32>
    %110 = arith.addf %103, %109 : vector<2x64xf32>
    %c0_119 = arith.constant 0 : index
    %c0_120 = arith.constant 0 : index
    %111 = vector.load %arg13[%c0_119, %c0_120] : memref<1x64xf32, #tpu.memory_space<vmem>>, vector<1x64xf32>
    %112 = vector.broadcast %111 : vector<1x64xf32> to vector<2x64xf32>
    %113 = arith.addf %110, %112 : vector<2x64xf32>
    %c0_121 = arith.constant 0 : index
    %c0_122 = arith.constant 0 : index
    %c0_123 = arith.constant 0 : index
    %114 = vector.load %arg2[%c0_121, %c0_122, %c0_123] : memref<8x16x72xf32, #tpu.memory_space<vmem>>, vector<1x16x72xf32>
    %115 = vector.shape_cast %114 : vector<1x16x72xf32> to vector<16x72xf32>
    %cst_124 = arith.constant dense<0.000000e+00> : vector<16x108xf32>
    %116 = tpu.matmul %115, %2, %cst_124 {dimension_numbers = #tpu.dot_dimension_numbers<[1], [0], [0], [1], [0, 0, 1, 1], [], []>} : vector<16x72xf32>, vector<72x108xf32>, vector<16x108xf32> -> vector<16x108xf32>
    %c0_125 = arith.constant 0 : index
    %c0_126 = arith.constant 0 : index
    %c0_127 = arith.constant 0 : index
    %117 = vector.load %arg8[%c0_125, %c0_126, %c0_127] : memref<8x108x256xf32, #tpu.memory_space<vmem>>, vector<1x108x256xf32>
    %118 = vector.shape_cast %117 : vector<1x108x256xf32> to vector<108x256xf32>
    %cst_128 = arith.constant dense<0.000000e+00> : vector<16x256xf32>
    %119 = tpu.matmul %116, %118, %cst_128 {dimension_numbers = #tpu.dot_dimension_numbers<[1], [0], [0], [1], [0, 0, 1, 1], [], []>} : vector<16x108xf32>, vector<108x256xf32>, vector<16x256xf32> -> vector<16x256xf32>
    %c1_129 = arith.constant 1 : index
    %c0_130 = arith.constant 0 : index
    %c0_131 = arith.constant 0 : index
    %120 = vector.load %arg2[%c1_129, %c0_130, %c0_131] : memref<8x16x72xf32, #tpu.memory_space<vmem>>, vector<1x16x72xf32>
    %121 = vector.shape_cast %120 : vector<1x16x72xf32> to vector<16x72xf32>
    %cst_132 = arith.constant dense<0.000000e+00> : vector<16x108xf32>
    %122 = tpu.matmul %121, %2, %cst_132 {dimension_numbers = #tpu.dot_dimension_numbers<[1], [0], [0], [1], [0, 0, 1, 1], [], []>} : vector<16x72xf32>, vector<72x108xf32>, vector<16x108xf32> -> vector<16x108xf32>
    %c1_133 = arith.constant 1 : index
    %c0_134 = arith.constant 0 : index
    %c0_135 = arith.constant 0 : index
    %123 = vector.load %arg8[%c1_133, %c0_134, %c0_135] : memref<8x108x256xf32, #tpu.memory_space<vmem>>, vector<1x108x256xf32>
    %124 = vector.shape_cast %123 : vector<1x108x256xf32> to vector<108x256xf32>
    %cst_136 = arith.constant dense<0.000000e+00> : vector<16x256xf32>
    %125 = tpu.matmul %122, %124, %cst_136 {dimension_numbers = #tpu.dot_dimension_numbers<[1], [0], [0], [1], [0, 0, 1, 1], [], []>} : vector<16x108xf32>, vector<108x256xf32>, vector<16x256xf32> -> vector<16x256xf32>
    %126 = arith.addf %119, %125 : vector<16x256xf32>
    %c2_137 = arith.constant 2 : index
    %c0_138 = arith.constant 0 : index
    %c0_139 = arith.constant 0 : index
    %127 = vector.load %arg2[%c2_137, %c0_138, %c0_139] : memref<8x16x72xf32, #tpu.memory_space<vmem>>, vector<1x16x72xf32>
    %128 = vector.shape_cast %127 : vector<1x16x72xf32> to vector<16x72xf32>
    %cst_140 = arith.constant dense<0.000000e+00> : vector<16x108xf32>
    %129 = tpu.matmul %128, %2, %cst_140 {dimension_numbers = #tpu.dot_dimension_numbers<[1], [0], [0], [1], [0, 0, 1, 1], [], []>} : vector<16x72xf32>, vector<72x108xf32>, vector<16x108xf32> -> vector<16x108xf32>
    %c2_141 = arith.constant 2 : index
    %c0_142 = arith.constant 0 : index
    %c0_143 = arith.constant 0 : index
    %130 = vector.load %arg8[%c2_141, %c0_142, %c0_143] : memref<8x108x256xf32, #tpu.memory_space<vmem>>, vector<1x108x256xf32>
    %131 = vector.shape_cast %130 : vector<1x108x256xf32> to vector<108x256xf32>
    %cst_144 = arith.constant dense<0.000000e+00> : vector<16x256xf32>
    %132 = tpu.matmul %129, %131, %cst_144 {dimension_numbers = #tpu.dot_dimension_numbers<[1], [0], [0], [1], [0, 0, 1, 1], [], []>} : vector<16x108xf32>, vector<108x256xf32>, vector<16x256xf32> -> vector<16x256xf32>
    %133 = arith.addf %126, %132 : vector<16x256xf32>
    %c3_145 = arith.constant 3 : index
    %c0_146 = arith.constant 0 : index
    %c0_147 = arith.constant 0 : index
    %134 = vector.load %arg2[%c3_145, %c0_146, %c0_147] : memref<8x16x72xf32, #tpu.memory_space<vmem>>, vector<1x16x72xf32>
    %135 = vector.shape_cast %134 : vector<1x16x72xf32> to vector<16x72xf32>
    %cst_148 = arith.constant dense<0.000000e+00> : vector<16x108xf32>
    %136 = tpu.matmul %135, %2, %cst_148 {dimension_numbers = #tpu.dot_dimension_numbers<[1], [0], [0], [1], [0, 0, 1, 1], [], []>} : vector<16x72xf32>, vector<72x108xf32>, vector<16x108xf32> -> vector<16x108xf32>
    %c3_149 = arith.constant 3 : index
    %c0_150 = arith.constant 0 : index
    %c0_151 = arith.constant 0 : index
    %137 = vector.load %arg8[%c3_149, %c0_150, %c0_151] : memref<8x108x256xf32, #tpu.memory_space<vmem>>, vector<1x108x256xf32>
    %138 = vector.shape_cast %137 : vector<1x108x256xf32> to vector<108x256xf32>
    %cst_152 = arith.constant dense<0.000000e+00> : vector<16x256xf32>
    %139 = tpu.matmul %136, %138, %cst_152 {dimension_numbers = #tpu.dot_dimension_numbers<[1], [0], [0], [1], [0, 0, 1, 1], [], []>} : vector<16x108xf32>, vector<108x256xf32>, vector<16x256xf32> -> vector<16x256xf32>
    %140 = arith.addf %133, %139 : vector<16x256xf32>
    %c4_153 = arith.constant 4 : index
    %c0_154 = arith.constant 0 : index
    %c0_155 = arith.constant 0 : index
    %141 = vector.load %arg2[%c4_153, %c0_154, %c0_155] : memref<8x16x72xf32, #tpu.memory_space<vmem>>, vector<1x16x72xf32>
    %142 = vector.shape_cast %141 : vector<1x16x72xf32> to vector<16x72xf32>
    %cst_156 = arith.constant dense<0.000000e+00> : vector<16x108xf32>
    %143 = tpu.matmul %142, %2, %cst_156 {dimension_numbers = #tpu.dot_dimension_numbers<[1], [0], [0], [1], [0, 0, 1, 1], [], []>} : vector<16x72xf32>, vector<72x108xf32>, vector<16x108xf32> -> vector<16x108xf32>
    %c4_157 = arith.constant 4 : index
    %c0_158 = arith.constant 0 : index
    %c0_159 = arith.constant 0 : index
    %144 = vector.load %arg8[%c4_157, %c0_158, %c0_159] : memref<8x108x256xf32, #tpu.memory_space<vmem>>, vector<1x108x256xf32>
    %145 = vector.shape_cast %144 : vector<1x108x256xf32> to vector<108x256xf32>
    %cst_160 = arith.constant dense<0.000000e+00> : vector<16x256xf32>
    %146 = tpu.matmul %143, %145, %cst_160 {dimension_numbers = #tpu.dot_dimension_numbers<[1], [0], [0], [1], [0, 0, 1, 1], [], []>} : vector<16x108xf32>, vector<108x256xf32>, vector<16x256xf32> -> vector<16x256xf32>
    %147 = arith.addf %140, %146 : vector<16x256xf32>
    %c5_161 = arith.constant 5 : index
    %c0_162 = arith.constant 0 : index
    %c0_163 = arith.constant 0 : index
    %148 = vector.load %arg2[%c5_161, %c0_162, %c0_163] : memref<8x16x72xf32, #tpu.memory_space<vmem>>, vector<1x16x72xf32>
    %149 = vector.shape_cast %148 : vector<1x16x72xf32> to vector<16x72xf32>
    %cst_164 = arith.constant dense<0.000000e+00> : vector<16x108xf32>
    %150 = tpu.matmul %149, %2, %cst_164 {dimension_numbers = #tpu.dot_dimension_numbers<[1], [0], [0], [1], [0, 0, 1, 1], [], []>} : vector<16x72xf32>, vector<72x108xf32>, vector<16x108xf32> -> vector<16x108xf32>
    %c5_165 = arith.constant 5 : index
    %c0_166 = arith.constant 0 : index
    %c0_167 = arith.constant 0 : index
    %151 = vector.load %arg8[%c5_165, %c0_166, %c0_167] : memref<8x108x256xf32, #tpu.memory_space<vmem>>, vector<1x108x256xf32>
    %152 = vector.shape_cast %151 : vector<1x108x256xf32> to vector<108x256xf32>
    %cst_168 = arith.constant dense<0.000000e+00> : vector<16x256xf32>
    %153 = tpu.matmul %150, %152, %cst_168 {dimension_numbers = #tpu.dot_dimension_numbers<[1], [0], [0], [1], [0, 0, 1, 1], [], []>} : vector<16x108xf32>, vector<108x256xf32>, vector<16x256xf32> -> vector<16x256xf32>
    %154 = arith.addf %147, %153 : vector<16x256xf32>
    %c6_169 = arith.constant 6 : index
    %c0_170 = arith.constant 0 : index
    %c0_171 = arith.constant 0 : index
    %155 = vector.load %arg2[%c6_169, %c0_170, %c0_171] : memref<8x16x72xf32, #tpu.memory_space<vmem>>, vector<1x16x72xf32>
    %156 = vector.shape_cast %155 : vector<1x16x72xf32> to vector<16x72xf32>
    %cst_172 = arith.constant dense<0.000000e+00> : vector<16x108xf32>
    %157 = tpu.matmul %156, %2, %cst_172 {dimension_numbers = #tpu.dot_dimension_numbers<[1], [0], [0], [1], [0, 0, 1, 1], [], []>} : vector<16x72xf32>, vector<72x108xf32>, vector<16x108xf32> -> vector<16x108xf32>
    %c6_173 = arith.constant 6 : index
    %c0_174 = arith.constant 0 : index
    %c0_175 = arith.constant 0 : index
    %158 = vector.load %arg8[%c6_173, %c0_174, %c0_175] : memref<8x108x256xf32, #tpu.memory_space<vmem>>, vector<1x108x256xf32>
    %159 = vector.shape_cast %158 : vector<1x108x256xf32> to vector<108x256xf32>
    %cst_176 = arith.constant dense<0.000000e+00> : vector<16x256xf32>
    %160 = tpu.matmul %157, %159, %cst_176 {dimension_numbers = #tpu.dot_dimension_numbers<[1], [0], [0], [1], [0, 0, 1, 1], [], []>} : vector<16x108xf32>, vector<108x256xf32>, vector<16x256xf32> -> vector<16x256xf32>
    %161 = arith.addf %154, %160 : vector<16x256xf32>
    %c7_177 = arith.constant 7 : index
    %c0_178 = arith.constant 0 : index
    %c0_179 = arith.constant 0 : index
    %162 = vector.load %arg2[%c7_177, %c0_178, %c0_179] : memref<8x16x72xf32, #tpu.memory_space<vmem>>, vector<1x16x72xf32>
    %163 = vector.shape_cast %162 : vector<1x16x72xf32> to vector<16x72xf32>
    %cst_180 = arith.constant dense<0.000000e+00> : vector<16x108xf32>
    %164 = tpu.matmul %163, %2, %cst_180 {dimension_numbers = #tpu.dot_dimension_numbers<[1], [0], [0], [1], [0, 0, 1, 1], [], []>} : vector<16x72xf32>, vector<72x108xf32>, vector<16x108xf32> -> vector<16x108xf32>
    %c7_181 = arith.constant 7 : index
    %c0_182 = arith.constant 0 : index
    %c0_183 = arith.constant 0 : index
    %165 = vector.load %arg8[%c7_181, %c0_182, %c0_183] : memref<8x108x256xf32, #tpu.memory_space<vmem>>, vector<1x108x256xf32>
    %166 = vector.shape_cast %165 : vector<1x108x256xf32> to vector<108x256xf32>
    %cst_184 = arith.constant dense<0.000000e+00> : vector<16x256xf32>
    %167 = tpu.matmul %164, %166, %cst_184 {dimension_numbers = #tpu.dot_dimension_numbers<[1], [0], [0], [1], [0, 0, 1, 1], [], []>} : vector<16x108xf32>, vector<108x256xf32>, vector<16x256xf32> -> vector<16x256xf32>
    %168 = arith.addf %161, %167 : vector<16x256xf32>
    %c0_185 = arith.constant 0 : index
    %c0_186 = arith.constant 0 : index
    %169 = vector.load %arg14[%c0_185, %c0_186] : memref<1x256xf32, #tpu.memory_space<vmem>>, vector<1x256xf32>
    %170 = vector.broadcast %169 : vector<1x256xf32> to vector<16x256xf32>
    %171 = arith.addf %168, %170 : vector<16x256xf32>
    %c0_187 = arith.constant 0 : index
    %c0_188 = arith.constant 0 : index
    %c0_189 = arith.constant 0 : index
    %172 = vector.load %arg3[%c0_187, %c0_188, %c0_189] : memref<4x6x16xf32, #tpu.memory_space<vmem>>, vector<1x6x16xf32>
    %173 = vector.shape_cast %172 : vector<1x6x16xf32> to vector<6x16xf32>
    %cst_190 = arith.constant dense<0.000000e+00> : vector<6x256xf32>
    %174 = tpu.matmul %173, %171, %cst_190 {dimension_numbers = #tpu.dot_dimension_numbers<[1], [0], [0], [1], [0, 0, 1, 1], [], []>} : vector<6x16xf32>, vector<16x256xf32>, vector<6x256xf32> -> vector<6x256xf32>
    %c0_191 = arith.constant 0 : index
    %c0_192 = arith.constant 0 : index
    %c0_193 = arith.constant 0 : index
    %175 = vector.load %arg9[%c0_191, %c0_192, %c0_193] : memref<4x256x192xf32, #tpu.memory_space<vmem>>, vector<1x256x192xf32>
    %176 = vector.shape_cast %175 : vector<1x256x192xf32> to vector<256x192xf32>
    %cst_194 = arith.constant dense<0.000000e+00> : vector<6x192xf32>
    %177 = tpu.matmul %174, %176, %cst_194 {dimension_numbers = #tpu.dot_dimension_numbers<[1], [0], [0], [1], [0, 0, 1, 1], [], []>} : vector<6x256xf32>, vector<256x192xf32>, vector<6x192xf32> -> vector<6x192xf32>
    %c1_195 = arith.constant 1 : index
    %c0_196 = arith.constant 0 : index
    %c0_197 = arith.constant 0 : index
    %178 = vector.load %arg3[%c1_195, %c0_196, %c0_197] : memref<4x6x16xf32, #tpu.memory_space<vmem>>, vector<1x6x16xf32>
    %179 = vector.shape_cast %178 : vector<1x6x16xf32> to vector<6x16xf32>
    %cst_198 = arith.constant dense<0.000000e+00> : vector<6x256xf32>
    %180 = tpu.matmul %179, %171, %cst_198 {dimension_numbers = #tpu.dot_dimension_numbers<[1], [0], [0], [1], [0, 0, 1, 1], [], []>} : vector<6x16xf32>, vector<16x256xf32>, vector<6x256xf32> -> vector<6x256xf32>
    %c1_199 = arith.constant 1 : index
    %c0_200 = arith.constant 0 : index
    %c0_201 = arith.constant 0 : index
    %181 = vector.load %arg9[%c1_199, %c0_200, %c0_201] : memref<4x256x192xf32, #tpu.memory_space<vmem>>, vector<1x256x192xf32>
    %182 = vector.shape_cast %181 : vector<1x256x192xf32> to vector<256x192xf32>
    %cst_202 = arith.constant dense<0.000000e+00> : vector<6x192xf32>
    %183 = tpu.matmul %180, %182, %cst_202 {dimension_numbers = #tpu.dot_dimension_numbers<[1], [0], [0], [1], [0, 0, 1, 1], [], []>} : vector<6x256xf32>, vector<256x192xf32>, vector<6x192xf32> -> vector<6x192xf32>
    %184 = arith.addf %177, %183 : vector<6x192xf32>
    %c2_203 = arith.constant 2 : index
    %c0_204 = arith.constant 0 : index
    %c0_205 = arith.constant 0 : index
    %185 = vector.load %arg3[%c2_203, %c0_204, %c0_205] : memref<4x6x16xf32, #tpu.memory_space<vmem>>, vector<1x6x16xf32>
    %186 = vector.shape_cast %185 : vector<1x6x16xf32> to vector<6x16xf32>
    %cst_206 = arith.constant dense<0.000000e+00> : vector<6x256xf32>
    %187 = tpu.matmul %186, %171, %cst_206 {dimension_numbers = #tpu.dot_dimension_numbers<[1], [0], [0], [1], [0, 0, 1, 1], [], []>} : vector<6x16xf32>, vector<16x256xf32>, vector<6x256xf32> -> vector<6x256xf32>
    %c2_207 = arith.constant 2 : index
    %c0_208 = arith.constant 0 : index
    %c0_209 = arith.constant 0 : index
    %188 = vector.load %arg9[%c2_207, %c0_208, %c0_209] : memref<4x256x192xf32, #tpu.memory_space<vmem>>, vector<1x256x192xf32>
    %189 = vector.shape_cast %188 : vector<1x256x192xf32> to vector<256x192xf32>
    %cst_210 = arith.constant dense<0.000000e+00> : vector<6x192xf32>
    %190 = tpu.matmul %187, %189, %cst_210 {dimension_numbers = #tpu.dot_dimension_numbers<[1], [0], [0], [1], [0, 0, 1, 1], [], []>} : vector<6x256xf32>, vector<256x192xf32>, vector<6x192xf32> -> vector<6x192xf32>
    %191 = arith.addf %184, %190 : vector<6x192xf32>
    %c3_211 = arith.constant 3 : index
    %c0_212 = arith.constant 0 : index
    %c0_213 = arith.constant 0 : index
    %192 = vector.load %arg3[%c3_211, %c0_212, %c0_213] : memref<4x6x16xf32, #tpu.memory_space<vmem>>, vector<1x6x16xf32>
    %193 = vector.shape_cast %192 : vector<1x6x16xf32> to vector<6x16xf32>
    %cst_214 = arith.constant dense<0.000000e+00> : vector<6x256xf32>
    %194 = tpu.matmul %193, %171, %cst_214 {dimension_numbers = #tpu.dot_dimension_numbers<[1], [0], [0], [1], [0, 0, 1, 1], [], []>} : vector<6x16xf32>, vector<16x256xf32>, vector<6x256xf32> -> vector<6x256xf32>
    %c3_215 = arith.constant 3 : index
    %c0_216 = arith.constant 0 : index
    %c0_217 = arith.constant 0 : index
    %195 = vector.load %arg9[%c3_215, %c0_216, %c0_217] : memref<4x256x192xf32, #tpu.memory_space<vmem>>, vector<1x256x192xf32>
    %196 = vector.shape_cast %195 : vector<1x256x192xf32> to vector<256x192xf32>
    %cst_218 = arith.constant dense<0.000000e+00> : vector<6x192xf32>
    %197 = tpu.matmul %194, %196, %cst_218 {dimension_numbers = #tpu.dot_dimension_numbers<[1], [0], [0], [1], [0, 0, 1, 1], [], []>} : vector<6x256xf32>, vector<256x192xf32>, vector<6x192xf32> -> vector<6x192xf32>
    %198 = arith.addf %191, %197 : vector<6x192xf32>
    %c0_219 = arith.constant 0 : index
    %c0_220 = arith.constant 0 : index
    %199 = vector.load %arg15[%c0_219, %c0_220] : memref<1x192xf32, #tpu.memory_space<vmem>>, vector<1x192xf32>
    %200 = vector.broadcast %199 : vector<1x192xf32> to vector<6x192xf32>
    %201 = arith.addf %198, %200 : vector<6x192xf32>
    %c0_221 = arith.constant 0 : index
    %c0_222 = arith.constant 0 : index
    %c0_223 = arith.constant 0 : index
    %202 = vector.load %arg4[%c0_221, %c0_222, %c0_223] : memref<3x2x6xf32, #tpu.memory_space<vmem>>, vector<1x2x6xf32>
    %203 = vector.shape_cast %202 : vector<1x2x6xf32> to vector<2x6xf32>
    %cst_224 = arith.constant dense<0.000000e+00> : vector<2x192xf32>
    %204 = tpu.matmul %203, %201, %cst_224 {dimension_numbers = #tpu.dot_dimension_numbers<[1], [0], [0], [1], [0, 0, 1, 1], [], []>} : vector<2x6xf32>, vector<6x192xf32>, vector<2x192xf32> -> vector<2x192xf32>
    %c0_225 = arith.constant 0 : index
    %c0_226 = arith.constant 0 : index
    %c0_227 = arith.constant 0 : index
    %205 = vector.load %arg10[%c0_225, %c0_226, %c0_227] : memref<3x192x64xf32, #tpu.memory_space<vmem>>, vector<1x192x64xf32>
    %206 = vector.shape_cast %205 : vector<1x192x64xf32> to vector<192x64xf32>
    %cst_228 = arith.constant dense<0.000000e+00> : vector<2x64xf32>
    %207 = tpu.matmul %204, %206, %cst_228 {dimension_numbers = #tpu.dot_dimension_numbers<[1], [0], [0], [1], [0, 0, 1, 1], [], []>} : vector<2x192xf32>, vector<192x64xf32>, vector<2x64xf32> -> vector<2x64xf32>
    %c1_229 = arith.constant 1 : index
    %c0_230 = arith.constant 0 : index
    %c0_231 = arith.constant 0 : index
    %208 = vector.load %arg4[%c1_229, %c0_230, %c0_231] : memref<3x2x6xf32, #tpu.memory_space<vmem>>, vector<1x2x6xf32>
    %209 = vector.shape_cast %208 : vector<1x2x6xf32> to vector<2x6xf32>
    %cst_232 = arith.constant dense<0.000000e+00> : vector<2x192xf32>
    %210 = tpu.matmul %209, %201, %cst_232 {dimension_numbers = #tpu.dot_dimension_numbers<[1], [0], [0], [1], [0, 0, 1, 1], [], []>} : vector<2x6xf32>, vector<6x192xf32>, vector<2x192xf32> -> vector<2x192xf32>
    %c1_233 = arith.constant 1 : index
    %c0_234 = arith.constant 0 : index
    %c0_235 = arith.constant 0 : index
    %211 = vector.load %arg10[%c1_233, %c0_234, %c0_235] : memref<3x192x64xf32, #tpu.memory_space<vmem>>, vector<1x192x64xf32>
    %212 = vector.shape_cast %211 : vector<1x192x64xf32> to vector<192x64xf32>
    %cst_236 = arith.constant dense<0.000000e+00> : vector<2x64xf32>
    %213 = tpu.matmul %210, %212, %cst_236 {dimension_numbers = #tpu.dot_dimension_numbers<[1], [0], [0], [1], [0, 0, 1, 1], [], []>} : vector<2x192xf32>, vector<192x64xf32>, vector<2x64xf32> -> vector<2x64xf32>
    %214 = arith.addf %207, %213 : vector<2x64xf32>
    %c2_237 = arith.constant 2 : index
    %c0_238 = arith.constant 0 : index
    %c0_239 = arith.constant 0 : index
    %215 = vector.load %arg4[%c2_237, %c0_238, %c0_239] : memref<3x2x6xf32, #tpu.memory_space<vmem>>, vector<1x2x6xf32>
    %216 = vector.shape_cast %215 : vector<1x2x6xf32> to vector<2x6xf32>
    %cst_240 = arith.constant dense<0.000000e+00> : vector<2x192xf32>
    %217 = tpu.matmul %216, %201, %cst_240 {dimension_numbers = #tpu.dot_dimension_numbers<[1], [0], [0], [1], [0, 0, 1, 1], [], []>} : vector<2x6xf32>, vector<6x192xf32>, vector<2x192xf32> -> vector<2x192xf32>
    %c2_241 = arith.constant 2 : index
    %c0_242 = arith.constant 0 : index
    %c0_243 = arith.constant 0 : index
    %218 = vector.load %arg10[%c2_241, %c0_242, %c0_243] : memref<3x192x64xf32, #tpu.memory_space<vmem>>, vector<1x192x64xf32>
    %219 = vector.shape_cast %218 : vector<1x192x64xf32> to vector<192x64xf32>
    %cst_244 = arith.constant dense<0.000000e+00> : vector<2x64xf32>
    %220 = tpu.matmul %217, %219, %cst_244 {dimension_numbers = #tpu.dot_dimension_numbers<[1], [0], [0], [1], [0, 0, 1, 1], [], []>} : vector<2x192xf32>, vector<192x64xf32>, vector<2x64xf32> -> vector<2x64xf32>
    %221 = arith.addf %214, %220 : vector<2x64xf32>
    %c0_245 = arith.constant 0 : index
    %c0_246 = arith.constant 0 : index
    %222 = vector.load %arg16[%c0_245, %c0_246] : memref<1x64xf32, #tpu.memory_space<vmem>>, vector<1x64xf32>
    %223 = vector.broadcast %222 : vector<1x64xf32> to vector<2x64xf32>
    %224 = arith.addf %221, %223 : vector<2x64xf32>
    %c0_247 = arith.constant 0 : index
    %c0_248 = arith.constant 0 : index
    %225 = vector.load %arg17[%c0_247, %c0_248] : memref<64x18xf32, #tpu.memory_space<vmem>>, vector<64x18xf32>
    %cst_249 = arith.constant dense<0.000000e+00> : vector<2x18xf32>
    %226 = tpu.matmul %113, %225, %cst_249 {dimension_numbers = #tpu.dot_dimension_numbers<[1], [0], [0], [1], [0, 0, 1, 1], [], []>} : vector<2x64xf32>, vector<64x18xf32>, vector<2x18xf32> -> vector<2x18xf32>
    %cst_250 = arith.constant dense<0.000000e+00> : vector<2x18xf32>
    %227 = tpu.matmul %224, %225, %cst_250 {dimension_numbers = #tpu.dot_dimension_numbers<[1], [0], [0], [1], [0, 0, 1, 1], [], []>} : vector<2x64xf32>, vector<64x18xf32>, vector<2x18xf32> -> vector<2x18xf32>
    %228 = arith.addf %226, %227 : vector<2x18xf32>
    %c0_251 = arith.constant 0 : index
    %c0_252 = arith.constant 0 : index
    %229 = vector.load %arg18[%c0_251, %c0_252] : memref<1x18xf32, #tpu.memory_space<vmem>>, vector<1x18xf32>
    %230 = vector.broadcast %229 : vector<1x18xf32> to vector<2x18xf32>
    %231 = arith.addf %228, %230 : vector<2x18xf32>
    %c0_253 = arith.constant 0 : index
    %c0_254 = arith.constant 0 : index
    %232 = vector.load %arg19[%c0_253, %c0_254] : memref<2x18xf32, #tpu.memory_space<vmem>>, vector<2x18xf32>
    tpu.vector_store %arg19[%c0_253, %c0_254], %231 {strides = array<i32>} : memref<2x18xf32, #tpu.memory_space<vmem>>, vector<2x18xf32>,
    return
  }
}

</mosaic_0001>

<llo_original>
// kernel: atari_policy_forward.1
$region0: #{atari_policy_forward.1}
  #allocation0 [shape = 'u32[]', space=smem, size = 0x4, offset = 0x4, fixed_abs, tag = 'smem constant byte address 0x4 - core index']
  #allocation1 [shape = 'u32[72,128]{1,0:T(1,128)}', space=vmem, size = 0x9000, scoped, tag = 'internal scratch']
  %s0 = inlined_call_operand.vmem [shape: f32[72,108], index: 0, kind: input, shape index: {}]
  %s1 = inlined_call_operand.vmem [shape: f32[72,108], index: 1, kind: input, shape index: {}]
  %s2 = inlined_call_operand.vmem [shape: f32[8,16,72], index: 2, kind: input, shape index: {}]
  %s3 = inlined_call_operand.vmem [shape: f32[4,6,16], index: 3, kind: input, shape index: {}]
  %s4 = inlined_call_operand.vmem [shape: f32[3,2,6], index: 4, kind: input, shape index: {}]
  %s5 = inlined_call_operand.vmem [shape: f32[8,108,256], index: 5, kind: input, shape index: {}]
  %s6 = inlined_call_operand.vmem [shape: f32[4,256,192], index: 6, kind: input, shape index: {}]
  %s7 = inlined_call_operand.vmem [shape: f32[3,192,64], index: 7, kind: input, shape index: {}]
  %s8 = inlined_call_operand.vmem [shape: f32[8,108,256], index: 8, kind: input, shape index: {}]
  %s9 = inlined_call_operand.vmem [shape: f32[4,256,192], index: 9, kind: input, shape index: {}]
  %s10 = inlined_call_operand.vmem [shape: f32[3,192,64], index: 10, kind: input, shape index: {}]
  %s11 = inlined_call_operand.vmem [shape: f32[1,256], index: 11, kind: input, shape index: {}]
  %s12 = inlined_call_operand.vmem [shape: f32[1,192], index: 12, kind: input, shape index: {}]
  %s13 = inlined_call_operand.vmem [shape: f32[1,64], index: 13, kind: input, shape index: {}]
  %s14 = inlined_call_operand.vmem [shape: f32[1,256], index: 14, kind: input, shape index: {}]
  %s15 = inlined_call_operand.vmem [shape: f32[1,192], index: 15, kind: input, shape index: {}]
  %s16 = inlined_call_operand.vmem [shape: f32[1,64], index: 16, kind: input, shape index: {}]
  %s17 = inlined_call_operand.vmem [shape: f32[64,18], index: 17, kind: input, shape index: {}]
  %s18 = inlined_call_operand.vmem [shape: f32[1,18], index: 18, kind: input, shape index: {}]
  %s19 = inlined_call_operand.hbm [shape: f32[2,18], index: 19, kind: output, shape index: {}]
  %s20 = sld [smem:[#allocation0]]
  $region86: #{atari_policy_forward.1} parent=0
    _
  %s22 = ssub.s32 1, %s20
  %s23 = scalar_select 0, %s22, %s20
  $region1: #{atari_policy_forward.1} parent=0
    #allocation2 [shape = 'u8[1024]{0}', space=vmem, size = 0x400, scoped, tag = 'output window, operand 0, single buffered']
    #allocation3 [shape = 's32[1]{0}', space=sflag, size = 0x4, scoped, tag = 'scoped memory for atari_policy_forward.1']
    %24 = vsyncpa [#allocation3], 0
    // Predicated region
    $region2: #{atari_policy_forward.1} parent=1 // pred_check
      _
    $region3: #{atari_policy_forward.1} parent=1 // pred_check_branch
      %26 = sbr.rel (0) target = $region5
    $region4: #{atari_policy_forward.1} parent=1 // pred_region
      _
    $region5: #{atari_policy_forward.1} parent=1 // pred_fallthru
      _
    // Predicated region
    $region6: #{atari_policy_forward.1} parent=1 // pred_check
      _
    $region7: #{atari_policy_forward.1} parent=1 // pred_check_branch
      %28 = sbr.rel (0) target = $region9
    $region8: #{atari_policy_forward.1} parent=1 // pred_region
      _
    $region9: #{atari_policy_forward.1} parent=1 // pred_fallthru
      _
    // Predicated region
    $region10: #{atari_policy_forward.1} parent=1 // pred_check
      _
    $region11: #{atari_policy_forward.1} parent=1 // pred_check_branch
      %30 = sbr.rel (0) target = $region13
    $region12: #{atari_policy_forward.1} parent=1 // pred_region
      _
    $region13: #{atari_policy_forward.1} parent=1 // pred_fallthru
      _
    // Predicated region
    $region14: #{atari_policy_forward.1} parent=1 // pred_check
      _
    $region15: #{atari_policy_forward.1} parent=1 // pred_check_branch
      %32 = sbr.rel (0) target = $region17
    $region16: #{atari_policy_forward.1} parent=1 // pred_region
      _
    $region17: #{atari_policy_forward.1} parent=1 // pred_fallthru
      _
    // Predicated region
    $region18: #{atari_policy_forward.1} parent=1 // pred_check
      _
    $region19: #{atari_policy_forward.1} parent=1 // pred_check_branch
      %34 = sbr.rel (0) target = $region21
    $region20: #{atari_policy_forward.1} parent=1 // pred_region
      _
    $region21: #{atari_policy_forward.1} parent=1 // pred_fallthru
      _
    // Predicated region
    $region22: #{atari_policy_forward.1} parent=1 // pred_check
      _
    $region23: #{atari_policy_forward.1} parent=1 // pred_check_branch
      %36 = sbr.rel (0) target = $region25
    $region24: #{atari_policy_forward.1} parent=1 // pred_region
      _
    $region25: #{atari_policy_forward.1} parent=1 // pred_fallthru
      _
    // Predicated region
    $region26: #{atari_policy_forward.1} parent=1 // pred_check
      _
    $region27: #{atari_policy_forward.1} parent=1 // pred_check_branch
      %38 = sbr.rel (0) target = $region29
    $region28: #{atari_policy_forward.1} parent=1 // pred_region
      _
    $region29: #{atari_policy_forward.1} parent=1 // pred_fallthru
      _
    // Predicated region
    $region30: #{atari_policy_forward.1} parent=1 // pred_check
      _
    $region31: #{atari_policy_forward.1} parent=1 // pred_check_branch
      %40 = sbr.rel (0) target = $region33
    $region32: #{atari_policy_forward.1} parent=1 // pred_region
      _
    $region33: #{atari_policy_forward.1} parent=1 // pred_fallthru
      _
    // Predicated region
    $region34: #{atari_policy_forward.1} parent=1 // pred_check
      _
    $region35: #{atari_policy_forward.1} parent=1 // pred_check_branch
      %42 = sbr.rel (0) target = $region37
    $region36: #{atari_policy_forward.1} parent=1 // pred_region
      _
    $region37: #{atari_policy_forward.1} parent=1 // pred_fallthru
      _
    // Predicated region
    $region38: #{atari_policy_forward.1} parent=1 // pred_check
      _
    $region39: #{atari_policy_forward.1} parent=1 // pred_check_branch
      %44 = sbr.rel (0) target = $region41
    $region40: #{atari_policy_forward.1} parent=1 // pred_region
      _
    $region41: #{atari_policy_forward.1} parent=1 // pred_fallthru
      _
    // Predicated region
    $region42: #{atari_policy_forward.1} parent=1 // pred_check
      _
    $region43: #{atari_policy_forward.1} parent=1 // pred_check_branch
      %46 = sbr.rel (0) target = $region45
    $region44: #{atari_policy_forward.1} parent=1 // pred_region
      _
    $region45: #{atari_policy_forward.1} parent=1 // pred_fallthru
      _
    // Predicated region
    $region46: #{atari_policy_forward.1} parent=1 // pred_check
      _
    $region47: #{atari_policy_forward.1} parent=1 // pred_check_branch
      %48 = sbr.rel (0) target = $region49
    $region48: #{atari_policy_forward.1} parent=1 // pred_region
      _
    $region49: #{atari_policy_forward.1} parent=1 // pred_fallthru
      _
    // Predicated region
    $region50: #{atari_policy_forward.1} parent=1 // pred_check
      _
    $region51: #{atari_policy_forward.1} parent=1 // pred_check_branch
      %50 = sbr.rel (0) target = $region53
    $region52: #{atari_policy_forward.1} parent=1 // pred_region
      _
    $region53: #{atari_policy_forward.1} parent=1 // pred_fallthru
      _
    // Predicated region
    $region54: #{atari_policy_forward.1} parent=1 // pred_check
      _
    $region55: #{atari_policy_forward.1} parent=1 // pred_check_branch
      %52 = sbr.rel (0) target = $region57
    $region56: #{atari_policy_forward.1} parent=1 // pred_region
      _
    $region57: #{atari_policy_forward.1} parent=1 // pred_fallthru
      _
    // Predicated region
    $region58: #{atari_policy_forward.1} parent=1 // pred_check
      _
    $region59: #{atari_policy_forward.1} parent=1 // pred_check_branch
      %54 = sbr.rel (0) target = $region61
    $region60: #{atari_policy_forward.1} parent=1 // pred_region
      _
    $region61: #{atari_policy_forward.1} parent=1 // pred_fallthru
      _
    // Predicated region
    $region62: #{atari_policy_forward.1} parent=1 // pred_check
      _
    $region63: #{atari_policy_forward.1} parent=1 // pred_check_branch
      %56 = sbr.rel (0) target = $region65
    $region64: #{atari_policy_forward.1} parent=1 // pred_region
      _
    $region65: #{atari_policy_forward.1} parent=1 // pred_fallthru
      _
    // Predicated region
    $region66: #{atari_policy_forward.1} parent=1 // pred_check
      _
    $region67: #{atari_policy_forward.1} parent=1 // pred_check_branch
      %58 = sbr.rel (0) target = $region69
    $region68: #{atari_policy_forward.1} parent=1 // pred_region
      _
    $region69: #{atari_policy_forward.1} parent=1 // pred_fallthru
      _
    // Predicated region
    $region70: #{atari_policy_forward.1} parent=1 // pred_check
      _
    $region71: #{atari_policy_forward.1} parent=1 // pred_check_branch
      %60 = sbr.rel (0) target = $region73
    $region72: #{atari_policy_forward.1} parent=1 // pred_region
      _
    $region73: #{atari_policy_forward.1} parent=1 // pred_fallthru
      _
    // Predicated region
    $region74: #{atari_policy_forward.1} parent=1 // pred_check
      _
    $region75: #{atari_policy_forward.1} parent=1 // pred_check_branch
      %62 = sbr.rel (0) target = $region77
    $region76: #{atari_policy_forward.1} parent=1 // pred_region
      _
    $region77: #{atari_policy_forward.1} parent=1 // pred_fallthru
      _
    %v63 = vld [vmem:[%s0] sm:$0xff]
    %v64 = vld [vmem:[%s0 + $0x8] sm:$0xff]
    %v65 = vld [vmem:[%s0 + $0x10] sm:$0xff]
    %v66 = vld [vmem:[%s0 + $0x18] sm:$0xff]
    %v67 = vld [vmem:[%s0 + $0x20] sm:$0xff]
    %v68 = vld [vmem:[%s0 + $0x28] sm:$0xff]
    %v69 = vld [vmem:[%s0 + $0x30] sm:$0xff]
    %v70 = vld [vmem:[%s0 + $0x38] sm:$0xff]
    %v71 = vld [vmem:[%s0 + $0x40] sm:$0xff]
    %v72 = vld [vmem:[%s1] sm:$0xff]
    %v73 = vld [vmem:[%s1 + $0x8] sm:$0xff]
    %v74 = vld [vmem:[%s1 + $0x10] sm:$0xff]
    %v75 = vld [vmem:[%s1 + $0x18] sm:$0xff]
    %v76 = vld [vmem:[%s1 + $0x20] sm:$0xff]
    %v77 = vld [vmem:[%s1 + $0x28] sm:$0xff]
    %v78 = vld [vmem:[%s1 + $0x30] sm:$0xff]
    %v79 = vld [vmem:[%s1 + $0x38] sm:$0xff]
    %v80 = vld [vmem:[%s1 + $0x40] sm:$0xff]
    %v81 = vmul.f32 %v63, %v72
    %v82 = vmul.f32 %v64, %v73
    %v83 = vmul.f32 %v65, %v74
    %v84 = vmul.f32 %v66, %v75
    %v85 = vmul.f32 %v67, %v76
    %v86 = vmul.f32 %v68, %v77
    %v87 = vmul.f32 %v69, %v78
    %v88 = vmul.f32 %v70, %v79
    %v89 = vmul.f32 %v71, %v80
    %v90 = vld [vmem:[%s2] sm:$0xff]
    %v91 = vld [vmem:[%s2 + $0x8] sm:$0xff]
    %vm92 = vcmask 588800
    %v94 = vsel %vm92, %v90, 0
    %v97 = vsel %vm92, %v91, 0
    %99 = vmatpush.msra.mxu0 0.0
    %100 = vmatpush.msra.mxu0 0.0
    %101 = vmatpush.msra.mxu0 0.0
    %102 = vmatpush.msra.mxu0 0.0
    %103 = vmatpush.msra.mxu0 0.0
    %104 = vmatpush.msra.mxu0 0.0
    %105 = vmatpush.msra.mxu0 0.0
    %106 = vmatpush.msra.mxu0 %v71
    %107 = vmatpush.msra.mxu0 %v70
    %108 = vmatpush.msra.mxu0 %v69
    %109 = vmatpush.msra.mxu0 %v68
    %110 = vmatpush.msra.mxu0 %v67
    %111 = vmatpush.msra.mxu0 %v66
    %112 = vmatpush.msra.mxu0 %v65
    %113 = vmatpush.msra.mxu0 %v64
    %114 = vmatpush.msra.mxu0 %v63
    %115 = vmatmul.f32.gmra.mxu0 %v94
    %v116 = vpop.f32.mrf.mxu0
    %v117 = vadd.f32 0.0, %v116
    %118 = vmatmul.f32.gmra.mxu0 %v97
    %v119 = vpop.f32.mrf.mxu0
    %v120 = vadd.f32 0.0, %v119
    %121 = vdwg.mxu0
    %v122 = vld [vmem:[%s5] sm:$0xff]
    %v123 = vld [vmem:[%s5 + $0x8] sm:$0xff]
    %v124 = vld [vmem:[%s5 + $0x10] sm:$0xff]
    %v125 = vld [vmem:[%s5 + $0x18] sm:$0xff]
    %v126 = vld [vmem:[%s5 + $0x20] sm:$0xff]
    %v127 = vld [vmem:[%s5 + $0x28] sm:$0xff]
    %v128 = vld [vmem:[%s5 + $0x30] sm:$0xff]
    %v129 = vld [vmem:[%s5 + $0x38] sm:$0xff]
    %v130 = vld [vmem:[%s5 + $0x40] sm:$0xff]
    %v131 = vld [vmem:[%s5 + $0x48] sm:$0xff]
    %v132 = vld [vmem:[%s5 + $0x50] sm:$0xff]
    %v133 = vld [vmem:[%s5 + $0x58] sm:$0xff]
    %v134 = vld [vmem:[%s5 + $0x60] sm:$0xff]
    %v135 = vld [vmem:[%s5 + $0x68] sm:$0xff]
    %v136 = vld [vmem:[%s5 + $0x70] sm:$0xff]
    %v137 = vld [vmem:[%s5 + $0x78] sm:$0xff]
    %v138 = vld [vmem:[%s5 + $0x80] sm:$0xff]
    %v139 = vld [vmem:[%s5 + $0x88] sm:$0xff]
    %v140 = vld [vmem:[%s5 + $0x90] sm:$0xff]
    %v141 = vld [vmem:[%s5 + $0x98] sm:$0xff]
    %v142 = vld [vmem:[%s5 + $0xa0] sm:$0xff]
    %v143 = vld [vmem:[%s5 + $0xa8] sm:$0xff]
    %v144 = vld [vmem:[%s5 + $0xb0] sm:$0xff]
    %v145 = vld [vmem:[%s5 + $0xb8] sm:$0xff]
    %v146 = vld [vmem:[%s5 + $0xc0] sm:$0xff]
    %v147 = vld [vmem:[%s5 + $0xc8] sm:$0xff]
    %v148 = vld [vmem:[%s5 + $0xd0] sm:$0xf]
    %v149 = vld [vmem:[%s5 + $0xd8] sm:$0xf]
    %s150 = scalar_lea.vmem %s2, 16
    %v151 = vld [vmem:[%s150] sm:$0xff]
    %v152 = vld [vmem:[%s150 + $0x8] sm:$0xff]
    %v154 = vsel %vm92, %v151, 0
    %v157 = vsel %vm92, %v152, 0
    %159 = vmatpush.msra.mxu0 0.0
    %160 = vmatpush.msra.mxu0 0.0
    %161 = vmatpush.msra.mxu0 0.0
    %162 = vmatpush.msra.mxu0 0.0
    %163 = vmatpush.msra.mxu0 0.0
    %164 = vmatpush.msra.mxu0 0.0
    %165 = vmatpush.msra.mxu0 0.0
    %166 = vmatpush.msra.mxu0 %v71
    %167 = vmatpush.msra.mxu0 %v70
    %168 = vmatpush.msra.mxu0 %v69
    %169 = vmatpush.msra.mxu0 %v68
    %170 = vmatpush.msra.mxu0 %v67
    %171 = vmatpush.msra.mxu0 %v66
    %172 = vmatpush.msra.mxu0 %v65
    %173 = vmatpush.msra.mxu0 %v64
    %174 = vmatpush.msra.mxu0 %v63
    %175 = vmatmul.f32.gmra.mxu0 %v154
    %v176 = vpop.f32.mrf.mxu0
    %v177 = vadd.f32 0.0, %v176
    %178 = vmatmul.f32.gmra.mxu0 %v157
    %v179 = vpop.f32.mrf.mxu0
    %v180 = vadd.f32 0.0, %v179
    %181 = vdwg.mxu0
    %s182 = scalar_lea.vmem %s5, 224
    %v183 = vld [vmem:[%s182] sm:$0xff]
    %v184 = vld [vmem:[%s182 + $0x8] sm:$0xff]
    %v185 = vld [vmem:[%s182 + $0x10] sm:$0xff]
    %v186 = vld [vmem:[%s182 + $0x18] sm:$0xff]
    %v187 = vld [vmem:[%s182 + $0x20] sm:$0xff]
    %v188 = vld [vmem:[%s182 + $0x28] sm:$0xff]
    %v189 = vld [vmem:[%s182 + $0x30] sm:$0xff]
    %v190 = vld [vmem:[%s182 + $0x38] sm:$0xff]
    %v191 = vld [vmem:[%s182 + $0x40] sm:$0xff]
    %v192 = vld [vmem:[%s182 + $0x48] sm:$0xff]
    %v193 = vld [vmem:[%s182 + $0x50] sm:$0xff]
    %v194 = vld [vmem:[%s182 + $0x58] sm:$0xff]
    %v195 = vld [vmem:[%s182 + $0x60] sm:$0xff]
    %v196 = vld [vmem:[%s182 + $0x68] sm:$0xff]
    %v197 = vld [vmem:[%s182 + $0x70] sm:$0xff]
    %v198 = vld [vmem:[%s182 + $0x78] sm:$0xff]
    %v199 = vld [vmem:[%s182 + $0x80] sm:$0xff]
    %v200 = vld [vmem:[%s182 + $0x88] sm:$0xff]
    %v201 = vld [vmem:[%s182 + $0x90] sm:$0xff]
    %v202 = vld [vmem:[%s182 + $0x98] sm:$0xff]
    %v203 = vld [vmem:[%s182 + $0xa0] sm:$0xff]
    %v204 = vld [vmem:[%s182 + $0xa8] sm:$0xff]
    %v205 = vld [vmem:[%s182 + $0xb0] sm:$0xff]
    %v206 = vld [vmem:[%s182 + $0xb8] sm:$0xff]
    %v207 = vld [vmem:[%s182 + $0xc0] sm:$0xff]
    %v208 = vld [vmem:[%s182 + $0xc8] sm:$0xff]
    %v209 = vld [vmem:[%s182 + $0xd0] sm:$0xf]
    %v210 = vld [vmem:[%s182 + $0xd8] sm:$0xf]
    %vm211 = vcmask 883712
    %v213 = vsel %vm211, %v177, 0
    %v216 = vsel %vm211, %v180, 0
    %vm218 = vcmask 1043456
    %v220 = vsel %vm218, %v209, 0
    %v223 = vsel %vm218, %v210, 0
    %225 = vmatpush.msra.mxu0 0.0
    %226 = vmatpush.msra.mxu0 0.0
    %227 = vmatpush.msra.mxu0 %v220
    %228 = vmatpush.msra.mxu0 %v207
    %229 = vmatpush.msra.mxu0 %v205
    %230 = vmatpush.msra.mxu0 %v203
    %231 = vmatpush.msra.mxu0 %v201
    %232 = vmatpush.msra.mxu0 %v199
    %233 = vmatpush.msra.mxu0 %v197
    %234 = vmatpush.msra.mxu0 %v195
    %235 = vmatpush.msra.mxu0 %v193
    %236 = vmatpush.msra.mxu0 %v191
    %237 = vmatpush.msra.mxu0 %v189
    %238 = vmatpush.msra.mxu0 %v187
    %239 = vmatpush.msra.mxu0 %v185
    %240 = vmatpush.msra.mxu0 %v183
    %241 = vmatmul.f32.gmra.mxu0 %v213
    %v242 = vpop.f32.mrf.mxu0
    %v243 = vadd.f32 0.0, %v242
    %244 = vmatmul.f32.gmra.mxu0 %v216
    %v245 = vpop.f32.mrf.mxu0
    %v246 = vadd.f32 0.0, %v245
    %247 = vdwg.mxu0
    %248 = vmatpush.msra.mxu0 0.0
    %249 = vmatpush.msra.mxu0 0.0
    %250 = vmatpush.msra.mxu0 %v223
    %251 = vmatpush.msra.mxu0 %v208
    %252 = vmatpush.msra.mxu0 %v206
    %253 = vmatpush.msra.mxu0 %v204
    %254 = vmatpush.msra.mxu0 %v202
    %255 = vmatpush.msra.mxu0 %v200
    %256 = vmatpush.msra.mxu0 %v198
    %257 = vmatpush.msra.mxu0 %v196
    %258 = vmatpush.msra.mxu0 %v194
    %259 = vmatpush.msra.mxu0 %v192
    %260 = vmatpush.msra.mxu0 %v190
    %261 = vmatpush.msra.mxu0 %v188
    %262 = vmatpush.msra.mxu0 %v186
    %263 = vmatpush.msra.mxu0 %v184
    %264 = vmatmul.f32.gmra.mxu0 %v213
    %v265 = vpop.f32.mrf.mxu0
    %v266 = vadd.f32 0.0, %v265
    %267 = vmatmul.f32.gmra.mxu0 %v216
    %v268 = vpop.f32.mrf.mxu0
    %v269 = vadd.f32 0.0, %v268
    %270 = vdwg.mxu0
    %v272 = vsel %vm211, %v117, 0
    %v275 = vsel %vm211, %v120, 0
    %v278 = vsel %vm218, %v148, 0
    %v281 = vsel %vm218, %v149, 0
    %283 = vmatpush.msra.mxu0 0.0
    %284 = vmatpush.msra.mxu0 0.0
    %285 = vmatpush.msra.mxu0 %v278
    %286 = vmatpush.msra.mxu0 %v146
    %287 = vmatpush.msra.mxu0 %v144
    %288 = vmatpush.msra.mxu0 %v142
    %289 = vmatpush.msra.mxu0 %v140
    %290 = vmatpush.msra.mxu0 %v138
    %291 = vmatpush.msra.mxu0 %v136
    %292 = vmatpush.msra.mxu0 %v134
    %293 = vmatpush.msra.mxu0 %v132
    %294 = vmatpush.msra.mxu0 %v130
    %295 = vmatpush.msra.mxu0 %v128
    %296 = vmatpush.msra.mxu0 %v126
    %297 = vmatpush.msra.mxu0 %v124
    %298 = vmatpush.msra.mxu0 %v122
    %299 = vmatmul.f32.gmra.mxu0 %v272
    %v300 = vpop.f32.mrf.mxu0
    %v301 = vadd.f32 %v243, %v300
    %302 = vmatmul.f32.gmra.mxu0 %v275
    %v303 = vpop.f32.mrf.mxu0
    %v304 = vadd.f32 %v246, %v303
    %305 = vdwg.mxu0
    %306 = vmatpush.msra.mxu0 0.0
    %307 = vmatpush.msra.mxu0 0.0
    %308 = vmatpush.msra.mxu0 %v281
    %309 = vmatpush.msra.mxu0 %v147
    %310 = vmatpush.msra.mxu0 %v145
    %311 = vmatpush.msra.mxu0 %v143
    %312 = vmatpush.msra.mxu0 %v141
    %313 = vmatpush.msra.mxu0 %v139
    %314 = vmatpush.msra.mxu0 %v137
    %315 = vmatpush.msra.mxu0 %v135
    %316 = vmatpush.msra.mxu0 %v133
    %317 = vmatpush.msra.mxu0 %v131
    %318 = vmatpush.msra.mxu0 %v129
    %319 = vmatpush.msra.mxu0 %v127
    %320 = vmatpush.msra.mxu0 %v125
    %321 = vmatpush.msra.mxu0 %v123
    %322 = vmatmul.f32.gmra.mxu0 %v272
    %v323 = vpop.f32.mrf.mxu0
    %v324 = vadd.f32 %v266, %v323
    %325 = vmatmul.f32.gmra.mxu0 %v275
    %v326 = vpop.f32.mrf.mxu0
    %v327 = vadd.f32 %v269, %v326
    %328 = vdwg.mxu0
    %s329 = scalar_lea.vmem %s2, 32
    %v330 = vld [vmem:[%s329] sm:$0xff]
    %v331 = vld [vmem:[%s329 + $0x8] sm:$0xff]
    %v333 = vsel %vm92, %v330, 0
    %v336 = vsel %vm92, %v331, 0
    %338 = vmatpush.msra.mxu0 0.0
    %339 = vmatpush.msra.mxu0 0.0
    %340 = vmatpush.msra.mxu0 0.0
    %341 = vmatpush.msra.mxu0 0.0
    %342 = vmatpush.msra.mxu0 0.0
    %343 = vmatpush.msra.mxu0 0.0
    %344 = vmatpush.msra.mxu0 0.0
    %345 = vmatpush.msra.mxu0 %v71
    %346 = vmatpush.msra.mxu0 %v70
    %347 = vmatpush.msra.mxu0 %v69
    %348 = vmatpush.msra.mxu0 %v68
    %349 = vmatpush.msra.mxu0 %v67
    %350 = vmatpush.msra.mxu0 %v66
    %351 = vmatpush.msra.mxu0 %v65
    %352 = vmatpush.msra.mxu0 %v64
    %353 = vmatpush.msra.mxu0 %v63
    %354 = vmatmul.f32.gmra.mxu0 %v333
    %v355 = vpop.f32.mrf.mxu0
    %v356 = vadd.f32 0.0, %v355
    %357 = vmatmul.f32.gmra.mxu0 %v336
    %v358 = vpop.f32.mrf.mxu0
    %v359 = vadd.f32 0.0, %v358
    %360 = vdwg.mxu0
    %s361 = scalar_lea.vmem %s5, 448
    %v362 = vld [vmem:[%s361] sm:$0xff]
    %v363 = vld [vmem:[%s361 + $0x8] sm:$0xff]
    %v364 = vld [vmem:[%s361 + $0x10] sm:$0xff]
    %v365 = vld [vmem:[%s361 + $0x18] sm:$0xff]
    %v366 = vld [vmem:[%s361 + $0x20] sm:$0xff]
    %v367 = vld [vmem:[%s361 + $0x28] sm:$0xff]
    %v368 = vld [vmem:[%s361 + $0x30] sm:$0xff]
    %v369 = vld [vmem:[%s361 + $0x38] sm:$0xff]
    %v370 = vld [vmem:[%s361 + $0x40] sm:$0xff]
    %v371 = vld [vmem:[%s361 + $0x48] sm:$0xff]
    %v372 = vld [vmem:[%s361 + $0x50] sm:$0xff]
    %v373 = vld [vmem:[%s361 + $0x58] sm:$0xff]
    %v374 = vld [vmem:[%s361 + $0x60] sm:$0xff]
    %v375 = vld [vmem:[%s361 + $0x68] sm:$0xff]
    %v376 = vld [vmem:[%s361 + $0x70] sm:$0xff]
    %v377 = vld [vmem:[%s361 + $0x78] sm:$0xff]
    %v378 = vld [vmem:[%s361 + $0x80] sm:$0xff]
    %v379 = vld [vmem:[%s361 + $0x88] sm:$0xff]
    %v380 = vld [vmem:[%s361 + $0x90] sm:$0xff]
    %v381 = vld [vmem:[%s361 + $0x98] sm:$0xff]
    %v382 = vld [vmem:[%s361 + $0xa0] sm:$0xff]
    %v383 = vld [vmem:[%s361 + $0xa8] sm:$0xff]
    %v384 = vld [vmem:[%s361 + $0xb0] sm:$0xff]
    %v385 = vld [vmem:[%s361 + $0xb8] sm:$0xff]
    %v386 = vld [vmem:[%s361 + $0xc0] sm:$0xff]
    %v387 = vld [vmem:[%s361 + $0xc8] sm:$0xff]
    %v388 = vld [vmem:[%s361 + $0xd0] sm:$0xf]
    %v389 = vld [vmem:[%s361 + $0xd8] sm:$0xf]
    %v391 = vsel %vm211, %v356, 0
    %v394 = vsel %vm211, %v359, 0
    %v397 = vsel %vm218, %v388, 0
    %v400 = vsel %vm218, %v389, 0
    %402 = vmatpush.msra.mxu0 0.0
    %403 = vmatpush.msra.mxu0 0.0
    %404 = vmatpush.msra.mxu0 %v397
    %405 = vmatpush.msra.mxu0 %v386
    %406 = vmatpush.msra.mxu0 %v384
    %407 = vmatpush.msra.mxu0 %v382
    %408 = vmatpush.msra.mxu0 %v380
    %409 = vmatpush.msra.mxu0 %v378
    %410 = vmatpush.msra.mxu0 %v376
    %411 = vmatpush.msra.mxu0 %v374
    %412 = vmatpush.msra.mxu0 %v372
    %413 = vmatpush.msra.mxu0 %v370
    %414 = vmatpush.msra.mxu0 %v368
    %415 = vmatpush.msra.mxu0 %v366
    %416 = vmatpush.msra.mxu0 %v364
    %417 = vmatpush.msra.mxu0 %v362
    %418 = vmatmul.f32.gmra.mxu0 %v391
    %v419 = vpop.f32.mrf.mxu0
    %v420 = vadd.f32 0.0, %v419
    %421 = vmatmul.f32.gmra.mxu0 %v394
    %v422 = vpop.f32.mrf.mxu0
    %v423 = vadd.f32 0.0, %v422
    %424 = vdwg.mxu0
    %425 = vmatpush.msra.mxu0 0.0
    %426 = vmatpush.msra.mxu0 0.0
    %427 = vmatpush.msra.mxu0 %v400
    %428 = vmatpush.msra.mxu0 %v387
    %429 = vmatpush.msra.mxu0 %v385
    %430 = vmatpush.msra.mxu0 %v383
    %431 = vmatpush.msra.mxu0 %v381
    %432 = vmatpush.msra.mxu0 %v379
    %433 = vmatpush.msra.mxu0 %v377
    %434 = vmatpush.msra.mxu0 %v375
    %435 = vmatpush.msra.mxu0 %v373
    %436 = vmatpush.msra.mxu0 %v371
    %437 = vmatpush.msra.mxu0 %v369
    %438 = vmatpush.msra.mxu0 %v367
    %439 = vmatpush.msra.mxu0 %v365
    %440 = vmatpush.msra.mxu0 %v363
    %441 = vmatmul.f32.gmra.mxu0 %v391
    %v442 = vpop.f32.mrf.mxu0
    %v443 = vadd.f32 0.0, %v442
    %444 = vmatmul.f32.gmra.mxu0 %v394
    %v445 = vpop.f32.mrf.mxu0
    %v446 = vadd.f32 0.0, %v445
    %447 = vdwg.mxu0
    %v448 = vadd.f32 %v301, %v420
    %v449 = vadd.f32 %v324, %v443
    %v450 = vadd.f32 %v304, %v423
    %v451 = vadd.f32 %v327, %v446
    %s452 = scalar_lea.vmem %s2, 48
    %v453 = vld [vmem:[%s452] sm:$0xff]
    %v454 = vld [vmem:[%s452 + $0x8] sm:$0xff]
    %v456 = vsel %vm92, %v453, 0
    %v459 = vsel %vm92, %v454, 0
    %461 = vmatpush.msra.mxu0 0.0
    %462 = vmatpush.msra.mxu0 0.0
    %463 = vmatpush.msra.mxu0 0.0
    %464 = vmatpush.msra.mxu0 0.0
    %465 = vmatpush.msra.mxu0 0.0
    %466 = vmatpush.msra.mxu0 0.0
    %467 = vmatpush.msra.mxu0 0.0
    %468 = vmatpush.msra.mxu0 %v71
    %469 = vmatpush.msra.mxu0 %v70
    %470 = vmatpush.msra.mxu0 %v69
    %471 = vmatpush.msra.mxu0 %v68
    %472 = vmatpush.msra.mxu0 %v67
    %473 = vmatpush.msra.mxu0 %v66
    %474 = vmatpush.msra.mxu0 %v65
    %475 = vmatpush.msra.mxu0 %v64
    %476 = vmatpush.msra.mxu0 %v63
    %477 = vmatmul.f32.gmra.mxu0 %v456
    %v478 = vpop.f32.mrf.mxu0
    %v479 = vadd.f32 0.0, %v478
    %480 = vmatmul.f32.gmra.mxu0 %v459
    %v481 = vpop.f32.mrf.mxu0
    %v482 = vadd.f32 0.0, %v481
    %483 = vdwg.mxu0
    %s484 = scalar_lea.vmem %s5, 672
    %v485 = vld [vmem:[%s484] sm:$0xff]
    %v486 = vld [vmem:[%s484 + $0x8] sm:$0xff]
    %v487 = vld [vmem:[%s484 + $0x10] sm:$0xff]
    %v488 = vld [vmem:[%s484 + $0x18] sm:$0xff]
    %v489 = vld [vmem:[%s484 + $0x20] sm:$0xff]
    %v490 = vld [vmem:[%s484 + $0x28] sm:$0xff]
    %v491 = vld [vmem:[%s484 + $0x30] sm:$0xff]
    %v492 = vld [vmem:[%s484 + $0x38] sm:$0xff]
    %v493 = vld [vmem:[%s484 + $0x40] sm:$0xff]
    %v494 = vld [vmem:[%s484 + $0x48] sm:$0xff]
    %v495 = vld [vmem:[%s484 + $0x50] sm:$0xff]
    %v496 = vld [vmem:[%s484 + $0x58] sm:$0xff]
    %v497 = vld [vmem:[%s484 + $0x60] sm:$0xff]
    %v498 = vld [vmem:[%s484 + $0x68] sm:$0xff]
    %v499 = vld [vmem:[%s484 + $0x70] sm:$0xff]
    %v500 = vld [vmem:[%s484 + $0x78] sm:$0xff]
    %v501 = vld [vmem:[%s484 + $0x80] sm:$0xff]
    %v502 = vld [vmem:[%s484 + $0x88] sm:$0xff]
    %v503 = vld [vmem:[%s484 + $0x90] sm:$0xff]
    %v504 = vld [vmem:[%s484 + $0x98] sm:$0xff]
    %v505 = vld [vmem:[%s484 + $0xa0] sm:$0xff]
    %v506 = vld [vmem:[%s484 + $0xa8] sm:$0xff]
    %v507 = vld [vmem:[%s484 + $0xb0] sm:$0xff]
    %v508 = vld [vmem:[%s484 + $0xb8] sm:$0xff]
    %v509 = vld [vmem:[%s484 + $0xc0] sm:$0xff]
    %v510 = vld [vmem:[%s484 + $0xc8] sm:$0xff]
    %v511 = vld [vmem:[%s484 + $0xd0] sm:$0xf]
    %v512 = vld [vmem:[%s484 + $0xd8] sm:$0xf]
    %v514 = vsel %vm211, %v479, 0
    %v517 = vsel %vm211, %v482, 0
    %v520 = vsel %vm218, %v511, 0
    %v523 = vsel %vm218, %v512, 0
    %525 = vmatpush.msra.mxu0 0.0
    %526 = vmatpush.msra.mxu0 0.0
    %527 = vmatpush.msra.mxu0 %v520
    %528 = vmatpush.msra.mxu0 %v509
    %529 = vmatpush.msra.mxu0 %v507
    %530 = vmatpush.msra.mxu0 %v505
    %531 = vmatpush.msra.mxu0 %v503
    %532 = vmatpush.msra.mxu0 %v501
    %533 = vmatpush.msra.mxu0 %v499
    %534 = vmatpush.msra.mxu0 %v497
    %535 = vmatpush.msra.mxu0 %v495
    %536 = vmatpush.msra.mxu0 %v493
    %537 = vmatpush.msra.mxu0 %v491
    %538 = vmatpush.msra.mxu0 %v489
    %539 = vmatpush.msra.mxu0 %v487
    %540 = vmatpush.msra.mxu0 %v485
    %541 = vmatmul.f32.gmra.mxu0 %v514
    %v542 = vpop.f32.mrf.mxu0
    %v543 = vadd.f32 0.0, %v542
    %544 = vmatmul.f32.gmra.mxu0 %v517
    %v545 = vpop.f32.mrf.mxu0
    %v546 = vadd.f32 0.0, %v545
    %547 = vdwg.mxu0
    %548 = vmatpush.msra.mxu0 0.0
    %549 = vmatpush.msra.mxu0 0.0
    %550 = vmatpush.msra.mxu0 %v523
    %551 = vmatpush.msra.mxu0 %v510
    %552 = vmatpush.msra.mxu0 %v508
    %553 = vmatpush.msra.mxu0 %v506
    %554 = vmatpush.msra.mxu0 %v504
    %555 = vmatpush.msra.mxu0 %v502
    %556 = vmatpush.msra.mxu0 %v500
    %557 = vmatpush.msra.mxu0 %v498
    %558 = vmatpush.msra.mxu0 %v496
    %559 = vmatpush.msra.mxu0 %v494
    %560 = vmatpush.msra.mxu0 %v492
    %561 = vmatpush.msra.mxu0 %v490
    %562 = vmatpush.msra.mxu0 %v488
    %563 = vmatpush.msra.mxu0 %v486
    %564 = vmatmul.f32.gmra.mxu0 %v514
    %v565 = vpop.f32.mrf.mxu0
    %v566 = vadd.f32 0.0, %v565
    %567 = vmatmul.f32.gmra.mxu0 %v517
    %v568 = vpop.f32.mrf.mxu0
    %v569 = vadd.f32 0.0, %v568
    %570 = vdwg.mxu0
    %v571 = vadd.f32 %v448, %v543
    %v572 = vadd.f32 %v449, %v566
    %v573 = vadd.f32 %v450, %v546
    %v574 = vadd.f32 %v451, %v569
    %s575 = scalar_lea.vmem %s2, 64
    %v576 = vld [vmem:[%s575] sm:$0xff]
    %v577 = vld [vmem:[%s575 + $0x8] sm:$0xff]
    %v579 = vsel %vm92, %v576, 0
    %v582 = vsel %vm92, %v577, 0
    %584 = vmatpush.msra.mxu0 0.0
    %585 = vmatpush.msra.mxu0 0.0
    %586 = vmatpush.msra.mxu0 0.0
    %587 = vmatpush.msra.mxu0 0.0
    %588 = vmatpush.msra.mxu0 0.0
    %589 = vmatpush.msra.mxu0 0.0
    %590 = vmatpush.msra.mxu0 0.0
    %591 = vmatpush.msra.mxu0 %v71
    %592 = vmatpush.msra.mxu0 %v70
    %593 = vmatpush.msra.mxu0 %v69
    %594 = vmatpush.msra.mxu0 %v68
    %595 = vmatpush.msra.mxu0 %v67
    %596 = vmatpush.msra.mxu0 %v66
    %597 = vmatpush.msra.mxu0 %v65
    %598 = vmatpush.msra.mxu0 %v64
    %599 = vmatpush.msra.mxu0 %v63
    %600 = vmatmul.f32.gmra.mxu0 %v579
    %v601 = vpop.f32.mrf.mxu0
    %v602 = vadd.f32 0.0, %v601
    %603 = vmatmul.f32.gmra.mxu0 %v582
    %v604 = vpop.f32.mrf.mxu0
    %v605 = vadd.f32 0.0, %v604
    %606 = vdwg.mxu0
    %s607 = scalar_lea.vmem %s5, 896
    %v608 = vld [vmem:[%s607] sm:$0xff]
    %v609 = vld [vmem:[%s607 + $0x8] sm:$0xff]
    %v610 = vld [vmem:[%s607 + $0x10] sm:$0xff]
    %v611 = vld [vmem:[%s607 + $0x18] sm:$0xff]
    %v612 = vld [vmem:[%s607 + $0x20] sm:$0xff]
    %v613 = vld [vmem:[%s607 + $0x28] sm:$0xff]
    %v614 = vld [vmem:[%s607 + $0x30] sm:$0xff]
    %v615 = vld [vmem:[%s607 + $0x38] sm:$0xff]
    %v616 = vld [vmem:[%s607 + $0x40] sm:$0xff]
    %v617 = vld [vmem:[%s607 + $0x48] sm:$0xff]
    %v618 = vld [vmem:[%s607 + $0x50] sm:$0xff]
    %v619 = vld [vmem:[%s607 + $0x58] sm:$0xff]
    %v620 = vld [vmem:[%s607 + $0x60] sm:$0xff]
    %v621 = vld [vmem:[%s607 + $0x68] sm:$0xff]
    %v622 = vld [vmem:[%s607 + $0x70] sm:$0xff]
    %v623 = vld [vmem:[%s607 + $0x78] sm:$0xff]
    %v624 = vld [vmem:[%s607 + $0x80] sm:$0xff]
    %v625 = vld [vmem:[%s607 + $0x88] sm:$0xff]
    %v626 = vld [vmem:[%s607 + $0x90] sm:$0xff]
    %v627 = vld [vmem:[%s607 + $0x98] sm:$0xff]
    %v628 = vld [vmem:[%s607 + $0xa0] sm:$0xff]
    %v629 = vld [vmem:[%s607 + $0xa8] sm:$0xff]
    %v630 = vld [vmem:[%s607 + $0xb0] sm:$0xff]
    %v631 = vld [vmem:[%s607 + $0xb8] sm:$0xff]
    %v632 = vld [vmem:[%s607 + $0xc0] sm:$0xff]
    %v633 = vld [vmem:[%s607 + $0xc8] sm:$0xff]
    %v634 = vld [vmem:[%s607 + $0xd0] sm:$0xf]
    %v635 = vld [vmem:[%s607 + $0xd8] sm:$0xf]
    %v637 = vsel %vm211, %v602, 0
    %v640 = vsel %vm211, %v605, 0
    %v643 = vsel %vm218, %v634, 0
    %v646 = vsel %vm218, %v635, 0
    %648 = vmatpush.msra.mxu0 0.0
    %649 = vmatpush.msra.mxu0 0.0
    %650 = vmatpush.msra.mxu0 %v643
    %651 = vmatpush.msra.mxu0 %v632
    %652 = vmatpush.msra.mxu0 %v630
    %653 = vmatpush.msra.mxu0 %v628
    %654 = vmatpush.msra.mxu0 %v626
    %655 = vmatpush.msra.mxu0 %v624
    %656 = vmatpush.msra.mxu0 %v622
    %657 = vmatpush.msra.mxu0 %v620
    %658 = vmatpush.msra.mxu0 %v618
    %659 = vmatpush.msra.mxu0 %v616
    %660 = vmatpush.msra.mxu0 %v614
    %661 = vmatpush.msra.mxu0 %v612
    %662 = vmatpush.msra.mxu0 %v610
    %663 = vmatpush.msra.mxu0 %v608
    %664 = vmatmul.f32.gmra.mxu0 %v637
    %v665 = vpop.f32.mrf.mxu0
    %v666 = vadd.f32 0.0, %v665
    %667 = vmatmul.f32.gmra.mxu0 %v640
    %v668 = vpop.f32.mrf.mxu0
    %v669 = vadd.f32 0.0, %v668
    %670 = vdwg.mxu0
    %671 = vmatpush.msra.mxu0 0.0
    %672 = vmatpush.msra.mxu0 0.0
    %673 = vmatpush.msra.mxu0 %v646
    %674 = vmatpush.msra.mxu0 %v633
    %675 = vmatpush.msra.mxu0 %v631
    %676 = vmatpush.msra.mxu0 %v629
    %677 = vmatpush.msra.mxu0 %v627
    %678 = vmatpush.msra.mxu0 %v625
    %679 = vmatpush.msra.mxu0 %v623
    %680 = vmatpush.msra.mxu0 %v621
    %681 = vmatpush.msra.mxu0 %v619
    %682 = vmatpush.msra.mxu0 %v617
    %683 = vmatpush.msra.mxu0 %v615
    %684 = vmatpush.msra.mxu0 %v613
    %685 = vmatpush.msra.mxu0 %v611
    %686 = vmatpush.msra.mxu0 %v609
    %687 = vmatmul.f32.gmra.mxu0 %v637
    %v688 = vpop.f32.mrf.mxu0
    %v689 = vadd.f32 0.0, %v688
    %690 = vmatmul.f32.gmra.mxu0 %v640
    %v691 = vpop.f32.mrf.mxu0
    %v692 = vadd.f32 0.0, %v691
    %693 = vdwg.mxu0
    %v694 = vadd.f32 %v571, %v666
    %v695 = vadd.f32 %v572, %v689
    %v696 = vadd.f32 %v573, %v669
    %v697 = vadd.f32 %v574, %v692
    %s698 = scalar_lea.vmem %s2, 80
    %v699 = vld [vmem:[%s698] sm:$0xff]
    %v700 = vld [vmem:[%s698 + $0x8] sm:$0xff]
    %v702 = vsel %vm92, %v699, 0
    %v705 = vsel %vm92, %v700, 0
    %707 = vmatpush.msra.mxu0 0.0
    %708 = vmatpush.msra.mxu0 0.0
    %709 = vmatpush.msra.mxu0 0.0
    %710 = vmatpush.msra.mxu0 0.0
    %711 = vmatpush.msra.mxu0 0.0
    %712 = vmatpush.msra.mxu0 0.0
    %713 = vmatpush.msra.mxu0 0.0
    %714 = vmatpush.msra.mxu0 %v71
    %715 = vmatpush.msra.mxu0 %v70
    %716 = vmatpush.msra.mxu0 %v69
    %717 = vmatpush.msra.mxu0 %v68
    %718 = vmatpush.msra.mxu0 %v67
    %719 = vmatpush.msra.mxu0 %v66
    %720 = vmatpush.msra.mxu0 %v65
    %721 = vmatpush.msra.mxu0 %v64
    %722 = vmatpush.msra.mxu0 %v63
    %723 = vmatmul.f32.gmra.mxu0 %v702
    %v724 = vpop.f32.mrf.mxu0
    %v725 = vadd.f32 0.0, %v724
    %726 = vmatmul.f32.gmra.mxu0 %v705
    %v727 = vpop.f32.mrf.mxu0
    %v728 = vadd.f32 0.0, %v727
    %729 = vdwg.mxu0
    %s730 = scalar_lea.vmem %s5, 1120
    %v731 = vld [vmem:[%s730] sm:$0xff]
    %v732 = vld [vmem:[%s730 + $0x8] sm:$0xff]
    %v733 = vld [vmem:[%s730 + $0x10] sm:$0xff]
    %v734 = vld [vmem:[%s730 + $0x18] sm:$0xff]
    %v735 = vld [vmem:[%s730 + $0x20] sm:$0xff]
    %v736 = vld [vmem:[%s730 + $0x28] sm:$0xff]
    %v737 = vld [vmem:[%s730 + $0x30] sm:$0xff]
    %v738 = vld [vmem:[%s730 + $0x38] sm:$0xff]
    %v739 = vld [vmem:[%s730 + $0x40] sm:$0xff]
    %v740 = vld [vmem:[%s730 + $0x48] sm:$0xff]
    %v741 = vld [vmem:[%s730 + $0x50] sm:$0xff]
    %v742 = vld [vmem:[%s730 + $0x58] sm:$0xff]
    %v743 = vld [vmem:[%s730 + $0x60] sm:$0xff]
    %v744 = vld [vmem:[%s730 + $0x68] sm:$0xff]
    %v745 = vld [vmem:[%s730 + $0x70] sm:$0xff]
    %v746 = vld [vmem:[%s730 + $0x78] sm:$0xff]
    %v747 = vld [vmem:[%s730 + $0x80] sm:$0xff]
    %v748 = vld [vmem:[%s730 + $0x88] sm:$0xff]
    %v749 = vld [vmem:[%s730 + $0x90] sm:$0xff]
    %v750 = vld [vmem:[%s730 + $0x98] sm:$0xff]
    %v751 = vld [vmem:[%s730 + $0xa0] sm:$0xff]
    %v752 = vld [vmem:[%s730 + $0xa8] sm:$0xff]
    %v753 = vld [vmem:[%s730 + $0xb0] sm:$0xff]
    %v754 = vld [vmem:[%s730 + $0xb8] sm:$0xff]
    %v755 = vld [vmem:[%s730 + $0xc0] sm:$0xff]
    %v756 = vld [vmem:[%s730 + $0xc8] sm:$0xff]
    %v757 = vld [vmem:[%s730 + $0xd0] sm:$0xf]
    %v758 = vld [vmem:[%s730 + $0xd8] sm:$0xf]
    %v760 = vsel %vm211, %v725, 0
    %v763 = vsel %vm211, %v728, 0
    %v766 = vsel %vm218, %v757, 0
    %v769 = vsel %vm218, %v758, 0
    %771 = vmatpush.msra.mxu0 0.0
    %772 = vmatpush.msra.mxu0 0.0
    %773 = vmatpush.msra.mxu0 %v766
    %774 = vmatpush.msra.mxu0 %v755
    %775 = vmatpush.msra.mxu0 %v753
    %776 = vmatpush.msra.mxu0 %v751
    %777 = vmatpush.msra.mxu0 %v749
    %778 = vmatpush.msra.mxu0 %v747
    %779 = vmatpush.msra.mxu0 %v745
    %780 = vmatpush.msra.mxu0 %v743
    %781 = vmatpush.msra.mxu0 %v741
    %782 = vmatpush.msra.mxu0 %v739
    %783 = vmatpush.msra.mxu0 %v737
    %784 = vmatpush.msra.mxu0 %v735
    %785 = vmatpush.msra.mxu0 %v733
    %786 = vmatpush.msra.mxu0 %v731
    %787 = vmatmul.f32.gmra.mxu0 %v760
    %v788 = vpop.f32.mrf.mxu0
    %v789 = vadd.f32 0.0, %v788
    %790 = vmatmul.f32.gmra.mxu0 %v763
    %v791 = vpop.f32.mrf.mxu0
    %v792 = vadd.f32 0.0, %v791
    %793 = vdwg.mxu0
    %794 = vmatpush.msra.mxu0 0.0
    %795 = vmatpush.msra.mxu0 0.0
    %796 = vmatpush.msra.mxu0 %v769
    %797 = vmatpush.msra.mxu0 %v756
    %798 = vmatpush.msra.mxu0 %v754
    %799 = vmatpush.msra.mxu0 %v752
    %800 = vmatpush.msra.mxu0 %v750
    %801 = vmatpush.msra.mxu0 %v748
    %802 = vmatpush.msra.mxu0 %v746
    %803 = vmatpush.msra.mxu0 %v744
    %804 = vmatpush.msra.mxu0 %v742
    %805 = vmatpush.msra.mxu0 %v740
    %806 = vmatpush.msra.mxu0 %v738
    %807 = vmatpush.msra.mxu0 %v736
    %808 = vmatpush.msra.mxu0 %v734
    %809 = vmatpush.msra.mxu0 %v732
    %810 = vmatmul.f32.gmra.mxu0 %v760
    %v811 = vpop.f32.mrf.mxu0
    %v812 = vadd.f32 0.0, %v811
    %813 = vmatmul.f32.gmra.mxu0 %v763
    %v814 = vpop.f32.mrf.mxu0
    %v815 = vadd.f32 0.0, %v814
    %816 = vdwg.mxu0
    %v817 = vadd.f32 %v694, %v789
    %v818 = vadd.f32 %v695, %v812
    %v819 = vadd.f32 %v696, %v792
    %v820 = vadd.f32 %v697, %v815
    %s821 = scalar_lea.vmem %s2, 96
    %v822 = vld [vmem:[%s821] sm:$0xff]
    %v823 = vld [vmem:[%s821 + $0x8] sm:$0xff]
    %v825 = vsel %vm92, %v822, 0
    %v828 = vsel %vm92, %v823, 0
    %830 = vmatpush.msra.mxu0 0.0
    %831 = vmatpush.msra.mxu0 0.0
    %832 = vmatpush.msra.mxu0 0.0
    %833 = vmatpush.msra.mxu0 0.0
    %834 = vmatpush.msra.mxu0 0.0
    %835 = vmatpush.msra.mxu0 0.0
    %836 = vmatpush.msra.mxu0 0.0
    %837 = vmatpush.msra.mxu0 %v71
    %838 = vmatpush.msra.mxu0 %v70
    %839 = vmatpush.msra.mxu0 %v69
    %840 = vmatpush.msra.mxu0 %v68
    %841 = vmatpush.msra.mxu0 %v67
    %842 = vmatpush.msra.mxu0 %v66
    %843 = vmatpush.msra.mxu0 %v65
    %844 = vmatpush.msra.mxu0 %v64
    %845 = vmatpush.msra.mxu0 %v63
    %846 = vmatmul.f32.gmra.mxu0 %v825
    %v847 = vpop.f32.mrf.mxu0
    %v848 = vadd.f32 0.0, %v847
    %849 = vmatmul.f32.gmra.mxu0 %v828
    %v850 = vpop.f32.mrf.mxu0
    %v851 = vadd.f32 0.0, %v850
    %852 = vdwg.mxu0
    %s853 = scalar_lea.vmem %s5, 1344
    %v854 = vld [vmem:[%s853] sm:$0xff]
    %v855 = vld [vmem:[%s853 + $0x8] sm:$0xff]
    %v856 = vld [vmem:[%s853 + $0x10] sm:$0xff]
    %v857 = vld [vmem:[%s853 + $0x18] sm:$0xff]
    %v858 = vld [vmem:[%s853 + $0x20] sm:$0xff]
    %v859 = vld [vmem:[%s853 + $0x28] sm:$0xff]
    %v860 = vld [vmem:[%s853 + $0x30] sm:$0xff]
    %v861 = vld [vmem:[%s853 + $0x38] sm:$0xff]
    %v862 = vld [vmem:[%s853 + $0x40] sm:$0xff]
    %v863 = vld [vmem:[%s853 + $0x48] sm:$0xff]
    %v864 = vld [vmem:[%s853 + $0x50] sm:$0xff]
    %v865 = vld [vmem:[%s853 + $0x58] sm:$0xff]
    %v866 = vld [vmem:[%s853 + $0x60] sm:$0xff]
    %v867 = vld [vmem:[%s853 + $0x68] sm:$0xff]
    %v868 = vld [vmem:[%s853 + $0x70] sm:$0xff]
    %v869 = vld [vmem:[%s853 + $0x78] sm:$0xff]
    %v870 = vld [vmem:[%s853 + $0x80] sm:$0xff]
    %v871 = vld [vmem:[%s853 + $0x88] sm:$0xff]
    %v872 = vld [vmem:[%s853 + $0x90] sm:$0xff]
    %v873 = vld [vmem:[%s853 + $0x98] sm:$0xff]
    %v874 = vld [vmem:[%s853 + $0xa0] sm:$0xff]
    %v875 = vld [vmem:[%s853 + $0xa8] sm:$0xff]
    %v876 = vld [vmem:[%s853 + $0xb0] sm:$0xff]
    %v877 = vld [vmem:[%s853 + $0xb8] sm:$0xff]
    %v878 = vld [vmem:[%s853 + $0xc0] sm:$0xff]
    %v879 = vld [vmem:[%s853 + $0xc8] sm:$0xff]
    %v880 = vld [vmem:[%s853 + $0xd0] sm:$0xf]
    %v881 = vld [vmem:[%s853 + $0xd8] sm:$0xf]
    %v883 = vsel %vm211, %v848, 0
    %v886 = vsel %vm211, %v851, 0
    %v889 = vsel %vm218, %v880, 0
    %v892 = vsel %vm218, %v881, 0
    %894 = vmatpush.msra.mxu0 0.0
    %895 = vmatpush.msra.mxu0 0.0
    %896 = vmatpush.msra.mxu0 %v889
    %897 = vmatpush.msra.mxu0 %v878
    %898 = vmatpush.msra.mxu0 %v876
    %899 = vmatpush.msra.mxu0 %v874
    %900 = vmatpush.msra.mxu0 %v872
    %901 = vmatpush.msra.mxu0 %v870
    %902 = vmatpush.msra.mxu0 %v868
    %903 = vmatpush.msra.mxu0 %v866
    %904 = vmatpush.msra.mxu0 %v864
    %905 = vmatpush.msra.mxu0 %v862
    %906 = vmatpush.msra.mxu0 %v860
    %907 = vmatpush.msra.mxu0 %v858
    %908 = vmatpush.msra.mxu0 %v856
    %909 = vmatpush.msra.mxu0 %v854
    %910 = vmatmul.f32.gmra.mxu0 %v883
    %v911 = vpop.f32.mrf.mxu0
    %v912 = vadd.f32 0.0, %v911
    %913 = vmatmul.f32.gmra.mxu0 %v886
    %v914 = vpop.f32.mrf.mxu0
    %v915 = vadd.f32 0.0, %v914
    %916 = vdwg.mxu0
    %917 = vmatpush.msra.mxu0 0.0
    %918 = vmatpush.msra.mxu0 0.0
    %919 = vmatpush.msra.mxu0 %v892
    %920 = vmatpush.msra.mxu0 %v879
    %921 = vmatpush.msra.mxu0 %v877
    %922 = vmatpush.msra.mxu0 %v875
    %923 = vmatpush.msra.mxu0 %v873
    %924 = vmatpush.msra.mxu0 %v871
    %925 = vmatpush.msra.mxu0 %v869
    %926 = vmatpush.msra.mxu0 %v867
    %927 = vmatpush.msra.mxu0 %v865
    %928 = vmatpush.msra.mxu0 %v863
    %929 = vmatpush.msra.mxu0 %v861
    %930 = vmatpush.msra.mxu0 %v859
    %931 = vmatpush.msra.mxu0 %v857
    %932 = vmatpush.msra.mxu0 %v855
    %933 = vmatmul.f32.gmra.mxu0 %v883
    %v934 = vpop.f32.mrf.mxu0
    %v935 = vadd.f32 0.0, %v934
    %936 = vmatmul.f32.gmra.mxu0 %v886
    %v937 = vpop.f32.mrf.mxu0
    %v938 = vadd.f32 0.0, %v937
    %939 = vdwg.mxu0
    %v940 = vadd.f32 %v817, %v912
    %v941 = vadd.f32 %v818, %v935
    %v942 = vadd.f32 %v819, %v915
    %v943 = vadd.f32 %v820, %v938
    %s944 = scalar_lea.vmem %s2, 112
    %v945 = vld [vmem:[%s944] sm:$0xff]
    %v946 = vld [vmem:[%s944 + $0x8] sm:$0xff]
    %v948 = vsel %vm92, %v945, 0
    %v951 = vsel %vm92, %v946, 0
    %953 = vmatpush.msra.mxu0 0.0
    %954 = vmatpush.msra.mxu0 0.0
    %955 = vmatpush.msra.mxu0 0.0
    %956 = vmatpush.msra.mxu0 0.0
    %957 = vmatpush.msra.mxu0 0.0
    %958 = vmatpush.msra.mxu0 0.0
    %959 = vmatpush.msra.mxu0 0.0
    %960 = vmatpush.msra.mxu0 %v71
    %961 = vmatpush.msra.mxu0 %v70
    %962 = vmatpush.msra.mxu0 %v69
    %963 = vmatpush.msra.mxu0 %v68
    %964 = vmatpush.msra.mxu0 %v67
    %965 = vmatpush.msra.mxu0 %v66
    %966 = vmatpush.msra.mxu0 %v65
    %967 = vmatpush.msra.mxu0 %v64
    %968 = vmatpush.msra.mxu0 %v63
    %969 = vmatmul.f32.gmra.mxu0 %v948
    %v970 = vpop.f32.mrf.mxu0
    %v971 = vadd.f32 0.0, %v970
    %972 = vmatmul.f32.gmra.mxu0 %v951
    %v973 = vpop.f32.mrf.mxu0
    %v974 = vadd.f32 0.0, %v973
    %975 = vdwg.mxu0
    %s976 = scalar_lea.vmem %s5, 1568
    %v977 = vld [vmem:[%s976] sm:$0xff]
    %v978 = vld [vmem:[%s976 + $0x8] sm:$0xff]
    %v979 = vld [vmem:[%s976 + $0x10] sm:$0xff]
    %v980 = vld [vmem:[%s976 + $0x18] sm:$0xff]
    %v981 = vld [vmem:[%s976 + $0x20] sm:$0xff]
    %v982 = vld [vmem:[%s976 + $0x28] sm:$0xff]
    %v983 = vld [vmem:[%s976 + $0x30] sm:$0xff]
    %v984 = vld [vmem:[%s976 + $0x38] sm:$0xff]
    %v985 = vld [vmem:[%s976 + $0x40] sm:$0xff]
    %v986 = vld [vmem:[%s976 + $0x48] sm:$0xff]
    %v987 = vld [vmem:[%s976 + $0x50] sm:$0xff]
    %v988 = vld [vmem:[%s976 + $0x58] sm:$0xff]
    %v989 = vld [vmem:[%s976 + $0x60] sm:$0xff]
    %v990 = vld [vmem:[%s976 + $0x68] sm:$0xff]
    %v991 = vld [vmem:[%s976 + $0x70] sm:$0xff]
    %v992 = vld [vmem:[%s976 + $0x78] sm:$0xff]
    %v993 = vld [vmem:[%s976 + $0x80] sm:$0xff]
    %v994 = vld [vmem:[%s976 + $0x88] sm:$0xff]
    %v995 = vld [vmem:[%s976 + $0x90] sm:$0xff]
    %v996 = vld [vmem:[%s976 + $0x98] sm:$0xff]
    %v997 = vld [vmem:[%s976 + $0xa0] sm:$0xff]
    %v998 = vld [vmem:[%s976 + $0xa8] sm:$0xff]
    %v999 = vld [vmem:[%s976 + $0xb0] sm:$0xff]
    %v1000 = vld [vmem:[%s976 + $0xb8] sm:$0xff]
    %v1001 = vld [vmem:[%s976 + $0xc0] sm:$0xff]
    %v1002 = vld [vmem:[%s976 + $0xc8] sm:$0xff]
    %v1003 = vld [vmem:[%s976 + $0xd0] sm:$0xf]
    %v1004 = vld [vmem:[%s976 + $0xd8] sm:$0xf]
    %v1006 = vsel %vm211, %v971, 0
    %v1009 = vsel %vm211, %v974, 0
    %v1012 = vsel %vm218, %v1003, 0
    %v1015 = vsel %vm218, %v1004, 0
    %1017 = vmatpush.msra.mxu0 0.0
    %1018 = vmatpush.msra.mxu0 0.0
    %1019 = vmatpush.msra.mxu0 %v1012
    %1020 = vmatpush.msra.mxu0 %v1001
    %1021 = vmatpush.msra.mxu0 %v999
    %1022 = vmatpush.msra.mxu0 %v997
    %1023 = vmatpush.msra.mxu0 %v995
    %1024 = vmatpush.msra.mxu0 %v993
    %1025 = vmatpush.msra.mxu0 %v991
    %1026 = vmatpush.msra.mxu0 %v989
    %1027 = vmatpush.msra.mxu0 %v987
    %1028 = vmatpush.msra.mxu0 %v985
    %1029 = vmatpush.msra.mxu0 %v983
    %1030 = vmatpush.msra.mxu0 %v981
    %1031 = vmatpush.msra.mxu0 %v979
    %1032 = vmatpush.msra.mxu0 %v977
    %1033 = vmatmul.f32.gmra.mxu0 %v1006
    %v1034 = vpop.f32.mrf.mxu0
    %v1035 = vadd.f32 0.0, %v1034
    %1036 = vmatmul.f32.gmra.mxu0 %v1009
    %v1037 = vpop.f32.mrf.mxu0
    %v1038 = vadd.f32 0.0, %v1037
    %1039 = vdwg.mxu0
    %1040 = vmatpush.msra.mxu0 0.0
    %1041 = vmatpush.msra.mxu0 0.0
    %1042 = vmatpush.msra.mxu0 %v1015
    %1043 = vmatpush.msra.mxu0 %v1002
    %1044 = vmatpush.msra.mxu0 %v1000
    %1045 = vmatpush.msra.mxu0 %v998
    %1046 = vmatpush.msra.mxu0 %v996
    %1047 = vmatpush.msra.mxu0 %v994
    %1048 = vmatpush.msra.mxu0 %v992
    %1049 = vmatpush.msra.mxu0 %v990
    %1050 = vmatpush.msra.mxu0 %v988
    %1051 = vmatpush.msra.mxu0 %v986
    %1052 = vmatpush.msra.mxu0 %v984
    %1053 = vmatpush.msra.mxu0 %v982
    %1054 = vmatpush.msra.mxu0 %v980
    %1055 = vmatpush.msra.mxu0 %v978
    %1056 = vmatmul.f32.gmra.mxu0 %v1006
    %v1057 = vpop.f32.mrf.mxu0
    %v1058 = vadd.f32 0.0, %v1057
    %1059 = vmatmul.f32.gmra.mxu0 %v1009
    %v1060 = vpop.f32.mrf.mxu0
    %v1061 = vadd.f32 0.0, %v1060
    %1062 = vdwg.mxu0
    %v1063 = vadd.f32 %v940, %v1035
    %v1064 = vadd.f32 %v941, %v1058
    %v1065 = vadd.f32 %v942, %v1038
    %v1066 = vadd.f32 %v943, %v1061
    %v1067 = vld [vmem:[%s11] sm:$0x3]
    %v1069 = vperm.slane %v1067, 0
    %v1070 = vperm.slane %v1067, 1
    %v1073 = vadd.f32 %v1063, %v1069
    %v1074 = vadd.f32 %v1064, %v1070
    %v1075 = vadd.f32 %v1065, %v1069
    %v1076 = vadd.f32 %v1066, %v1070
    %v1077 = vld [vmem:[%s3] sm:$0x3f]
    %vm1078 = vcmask 130048
    %v1080 = vsel %vm1078, %v1077, 0
    %1082 = vmatpush.msra.mxu0 0.0
    %1083 = vmatpush.msra.mxu0 0.0
    %1084 = vmatpush.msra.mxu0 0.0
    %1085 = vmatpush.msra.mxu0 0.0
    %1086 = vmatpush.msra.mxu0 0.0
    %1087 = vmatpush.msra.mxu0 0.0
    %1088 = vmatpush.msra.mxu0 0.0
    %1089 = vmatpush.msra.mxu0 0.0
    %1090 = vmatpush.msra.mxu0 0.0
    %1091 = vmatpush.msra.mxu0 0.0
    %1092 = vmatpush.msra.mxu0 0.0
    %1093 = vmatpush.msra.mxu0 0.0
    %1094 = vmatpush.msra.mxu0 0.0
    %1095 = vmatpush.msra.mxu0 0.0
    %1096 = vmatpush.msra.mxu0 %v1075
    %1097 = vmatpush.msra.mxu0 %v1073
    %1098 = vmatmul.f32.gmra.mxu0 %v1080
    %v1099 = vpop.f32.mrf.mxu0
    %v1100 = vadd.f32 0.0, %v1099
    %1101 = vdwg.mxu0
    %1102 = vmatpush.msra.mxu0 0.0
    %1103 = vmatpush.msra.mxu0 0.0
    %1104 = vmatpush.msra.mxu0 0.0
    %1105 = vmatpush.msra.mxu0 0.0
    %1106 = vmatpush.msra.mxu0 0.0
    %1107 = vmatpush.msra.mxu0 0.0
    %1108 = vmatpush.msra.mxu0 0.0
    %1109 = vmatpush.msra.mxu0 0.0
    %1110 = vmatpush.msra.mxu0 0.0
    %1111 = vmatpush.msra.mxu0 0.0
    %1112 = vmatpush.msra.mxu0 0.0
    %1113 = vmatpush.msra.mxu0 0.0
    %1114 = vmatpush.msra.mxu0 0.0
    %1115 = vmatpush.msra.mxu0 0.0
    %1116 = vmatpush.msra.mxu0 %v1076
    %1117 = vmatpush.msra.mxu0 %v1074
    %1118 = vmatmul.f32.gmra.mxu0 %v1080
    %v1119 = vpop.f32.mrf.mxu0
    %v1120 = vadd.f32 0.0, %v1119
    %1121 = vdwg.mxu0
    %v1122 = vld [vmem:[%s6] sm:$0xff]
    %v1123 = vld [vmem:[%s6 + $0x8] sm:$0xff]
    %v1124 = vld [vmem:[%s6 + $0x10] sm:$0xff]
    %v1125 = vld [vmem:[%s6 + $0x18] sm:$0xff]
    %v1126 = vld [vmem:[%s6 + $0x20] sm:$0xff]
    %v1127 = vld [vmem:[%s6 + $0x28] sm:$0xff]
    %v1128 = vld [vmem:[%s6 + $0x30] sm:$0xff]
    %v1129 = vld [vmem:[%s6 + $0x38] sm:$0xff]
    %v1130 = vld [vmem:[%s6 + $0x40] sm:$0xff]
    %v1131 = vld [vmem:[%s6 + $0x48] sm:$0xff]
    %v1132 = vld [vmem:[%s6 + $0x50] sm:$0xff]
    %v1133 = vld [vmem:[%s6 + $0x58] sm:$0xff]
    %v1134 = vld [vmem:[%s6 + $0x60] sm:$0xff]
    %v1135 = vld [vmem:[%s6 + $0x68] sm:$0xff]
    %v1136 = vld [vmem:[%s6 + $0x70] sm:$0xff]
    %v1137 = vld [vmem:[%s6 + $0x78] sm:$0xff]
    %v1138 = vld [vmem:[%s6 + $0x80] sm:$0xff]
    %v1139 = vld [vmem:[%s6 + $0x88] sm:$0xff]
    %v1140 = vld [vmem:[%s6 + $0x90] sm:$0xff]
    %v1141 = vld [vmem:[%s6 + $0x98] sm:$0xff]
    %v1142 = vld [vmem:[%s6 + $0xa0] sm:$0xff]
    %v1143 = vld [vmem:[%s6 + $0xa8] sm:$0xff]
    %v1144 = vld [vmem:[%s6 + $0xb0] sm:$0xff]
    %v1145 = vld [vmem:[%s6 + $0xb8] sm:$0xff]
    %v1146 = vld [vmem:[%s6 + $0xc0] sm:$0xff]
    %v1147 = vld [vmem:[%s6 + $0xc8] sm:$0xff]
    %v1148 = vld [vmem:[%s6 + $0xd0] sm:$0xff]
    %v1149 = vld [vmem:[%s6 + $0xd8] sm:$0xff]
    %v1150 = vld [vmem:[%s6 + $0xe0] sm:$0xff]
    %v1151 = vld [vmem:[%s6 + $0xe8] sm:$0xff]
    %v1152 = vld [vmem:[%s6 + $0xf0] sm:$0xff]
    %v1153 = vld [vmem:[%s6 + $0xf8] sm:$0xff]
    %v1154 = vld [vmem:[%s6 + $0x100] sm:$0xff]
    %v1155 = vld [vmem:[%s6 + $0x108] sm:$0xff]
    %v1156 = vld [vmem:[%s6 + $0x110] sm:$0xff]
    %v1157 = vld [vmem:[%s6 + $0x118] sm:$0xff]
    %v1158 = vld [vmem:[%s6 + $0x120] sm:$0xff]
    %v1159 = vld [vmem:[%s6 + $0x128] sm:$0xff]
    %v1160 = vld [vmem:[%s6 + $0x130] sm:$0xff]
    %v1161 = vld [vmem:[%s6 + $0x138] sm:$0xff]
    %v1162 = vld [vmem:[%s6 + $0x140] sm:$0xff]
    %v1163 = vld [vmem:[%s6 + $0x148] sm:$0xff]
    %v1164 = vld [vmem:[%s6 + $0x150] sm:$0xff]
    %v1165 = vld [vmem:[%s6 + $0x158] sm:$0xff]
    %v1166 = vld [vmem:[%s6 + $0x160] sm:$0xff]
    %v1167 = vld [vmem:[%s6 + $0x168] sm:$0xff]
    %v1168 = vld [vmem:[%s6 + $0x170] sm:$0xff]
    %v1169 = vld [vmem:[%s6 + $0x178] sm:$0xff]
    %v1170 = vld [vmem:[%s6 + $0x180] sm:$0xff]
    %v1171 = vld [vmem:[%s6 + $0x188] sm:$0xff]
    %v1172 = vld [vmem:[%s6 + $0x190] sm:$0xff]
    %v1173 = vld [vmem:[%s6 + $0x198] sm:$0xff]
    %v1174 = vld [vmem:[%s6 + $0x1a0] sm:$0xff]
    %v1175 = vld [vmem:[%s6 + $0x1a8] sm:$0xff]
    %v1176 = vld [vmem:[%s6 + $0x1b0] sm:$0xff]
    %v1177 = vld [vmem:[%s6 + $0x1b8] sm:$0xff]
    %v1178 = vld [vmem:[%s6 + $0x1c0] sm:$0xff]
    %v1179 = vld [vmem:[%s6 + $0x1c8] sm:$0xff]
    %v1180 = vld [vmem:[%s6 + $0x1d0] sm:$0xff]
    %v1181 = vld [vmem:[%s6 + $0x1d8] sm:$0xff]
    %v1182 = vld [vmem:[%s6 + $0x1e0] sm:$0xff]
    %v1183 = vld [vmem:[%s6 + $0x1e8] sm:$0xff]
    %v1184 = vld [vmem:[%s6 + $0x1f0] sm:$0xff]
    %v1185 = vld [vmem:[%s6 + $0x1f8] sm:$0xff]
    %s1186 = scalar_lea.vmem %s3, 8
    %v1187 = vld [vmem:[%s1186] sm:$0x3f]
    %v1189 = vsel %vm1078, %v1187, 0
    %1191 = vmatpush.msra.mxu0 0.0
    %1192 = vmatpush.msra.mxu0 0.0
    %1193 = vmatpush.msra.mxu0 0.0
    %1194 = vmatpush.msra.mxu0 0.0
    %1195 = vmatpush.msra.mxu0 0.0
    %1196 = vmatpush.msra.mxu0 0.0
    %1197 = vmatpush.msra.mxu0 0.0
    %1198 = vmatpush.msra.mxu0 0.0
    %1199 = vmatpush.msra.mxu0 0.0
    %1200 = vmatpush.msra.mxu0 0.0
    %1201 = vmatpush.msra.mxu0 0.0
    %1202 = vmatpush.msra.mxu0 0.0
    %1203 = vmatpush.msra.mxu0 0.0
    %1204 = vmatpush.msra.mxu0 0.0
    %1205 = vmatpush.msra.mxu0 %v1075
    %1206 = vmatpush.msra.mxu0 %v1073
    %1207 = vmatmul.f32.gmra.mxu0 %v1189
    %v1208 = vpop.f32.mrf.mxu0
    %v1209 = vadd.f32 0.0, %v1208
    %1210 = vdwg.mxu0
    %1211 = vmatpush.msra.mxu0 0.0
    %1212 = vmatpush.msra.mxu0 0.0
    %1213 = vmatpush.msra.mxu0 0.0
    %1214 = vmatpush.msra.mxu0 0.0
    %1215 = vmatpush.msra.mxu0 0.0
    %1216 = vmatpush.msra.mxu0 0.0
    %1217 = vmatpush.msra.mxu0 0.0
    %1218 = vmatpush.msra.mxu0 0.0
    %1219 = vmatpush.msra.mxu0 0.0
    %1220 = vmatpush.msra.mxu0 0.0
    %1221 = vmatpush.msra.mxu0 0.0
    %1222 = vmatpush.msra.mxu0 0.0
    %1223 = vmatpush.msra.mxu0 0.0
    %1224 = vmatpush.msra.mxu0 0.0
    %1225 = vmatpush.msra.mxu0 %v1076
    %1226 = vmatpush.msra.mxu0 %v1074
    %1227 = vmatmul.f32.gmra.mxu0 %v1189
    %v1228 = vpop.f32.mrf.mxu0
    %v1229 = vadd.f32 0.0, %v1228
    %1230 = vdwg.mxu0
    %s1231 = scalar_lea.vmem %s6, 512
    %v1232 = vld [vmem:[%s1231] sm:$0xff]
    %v1233 = vld [vmem:[%s1231 + $0x8] sm:$0xff]
    %v1234 = vld [vmem:[%s1231 + $0x10] sm:$0xff]
    %v1235 = vld [vmem:[%s1231 + $0x18] sm:$0xff]
    %v1236 = vld [vmem:[%s1231 + $0x20] sm:$0xff]
    %v1237 = vld [vmem:[%s1231 + $0x28] sm:$0xff]
    %v1238 = vld [vmem:[%s1231 + $0x30] sm:$0xff]
    %v1239 = vld [vmem:[%s1231 + $0x38] sm:$0xff]
    %v1240 = vld [vmem:[%s1231 + $0x40] sm:$0xff]
    %v1241 = vld [vmem:[%s1231 + $0x48] sm:$0xff]
    %v1242 = vld [vmem:[%s1231 + $0x50] sm:$0xff]
    %v1243 = vld [vmem:[%s1231 + $0x58] sm:$0xff]
    %v1244 = vld [vmem:[%s1231 + $0x60] sm:$0xff]
    %v1245 = vld [vmem:[%s1231 + $0x68] sm:$0xff]
    %v1246 = vld [vmem:[%s1231 + $0x70] sm:$0xff]
    %v1247 = vld [vmem:[%s1231 + $0x78] sm:$0xff]
    %v1248 = vld [vmem:[%s1231 + $0x80] sm:$0xff]
    %v1249 = vld [vmem:[%s1231 + $0x88] sm:$0xff]
    %v1250 = vld [vmem:[%s1231 + $0x90] sm:$0xff]
    %v1251 = vld [vmem:[%s1231 + $0x98] sm:$0xff]
    %v1252 = vld [vmem:[%s1231 + $0xa0] sm:$0xff]
    %v1253 = vld [vmem:[%s1231 + $0xa8] sm:$0xff]
    %v1254 = vld [vmem:[%s1231 + $0xb0] sm:$0xff]
    %v1255 = vld [vmem:[%s1231 + $0xb8] sm:$0xff]
    %v1256 = vld [vmem:[%s1231 + $0xc0] sm:$0xff]
    %v1257 = vld [vmem:[%s1231 + $0xc8] sm:$0xff]
    %v1258 = vld [vmem:[%s1231 + $0xd0] sm:$0xff]
    %v1259 = vld [vmem:[%s1231 + $0xd8] sm:$0xff]
    %v1260 = vld [vmem:[%s1231 + $0xe0] sm:$0xff]
    %v1261 = vld [vmem:[%s1231 + $0xe8] sm:$0xff]
    %v1262 = vld [vmem:[%s1231 + $0xf0] sm:$0xff]
    %v1263 = vld [vmem:[%s1231 + $0xf8] sm:$0xff]
    %v1264 = vld [vmem:[%s1231 + $0x100] sm:$0xff]
    %v1265 = vld [vmem:[%s1231 + $0x108] sm:$0xff]
    %v1266 = vld [vmem:[%s1231 + $0x110] sm:$0xff]
    %v1267 = vld [vmem:[%s1231 + $0x118] sm:$0xff]
    %v1268 = vld [vmem:[%s1231 + $0x120] sm:$0xff]
    %v1269 = vld [vmem:[%s1231 + $0x128] sm:$0xff]
    %v1270 = vld [vmem:[%s1231 + $0x130] sm:$0xff]
    %v1271 = vld [vmem:[%s1231 + $0x138] sm:$0xff]
    %v1272 = vld [vmem:[%s1231 + $0x140] sm:$0xff]
    %v1273 = vld [vmem:[%s1231 + $0x148] sm:$0xff]
    %v1274 = vld [vmem:[%s1231 + $0x150] sm:$0xff]
    %v1275 = vld [vmem:[%s1231 + $0x158] sm:$0xff]
    %v1276 = vld [vmem:[%s1231 + $0x160] sm:$0xff]
    %v1277 = vld [vmem:[%s1231 + $0x168] sm:$0xff]
    %v1278 = vld [vmem:[%s1231 + $0x170] sm:$0xff]
    %v1279 = vld [vmem:[%s1231 + $0x178] sm:$0xff]
    %v1280 = vld [vmem:[%s1231 + $0x180] sm:$0xff]
    %v1281 = vld [vmem:[%s1231 + $0x188] sm:$0xff]
    %v1282 = vld [vmem:[%s1231 + $0x190] sm:$0xff]
    %v1283 = vld [vmem:[%s1231 + $0x198] sm:$0xff]
    %v1284 = vld [vmem:[%s1231 + $0x1a0] sm:$0xff]
    %v1285 = vld [vmem:[%s1231 + $0x1a8] sm:$0xff]
    %v1286 = vld [vmem:[%s1231 + $0x1b0] sm:$0xff]
    %v1287 = vld [vmem:[%s1231 + $0x1b8] sm:$0xff]
    %v1288 = vld [vmem:[%s1231 + $0x1c0] sm:$0xff]
    %v1289 = vld [vmem:[%s1231 + $0x1c8] sm:$0xff]
    %v1290 = vld [vmem:[%s1231 + $0x1d0] sm:$0xff]
    %v1291 = vld [vmem:[%s1231 + $0x1d8] sm:$0xff]
    %v1292 = vld [vmem:[%s1231 + $0x1e0] sm:$0xff]
    %v1293 = vld [vmem:[%s1231 + $0x1e8] sm:$0xff]
    %v1294 = vld [vmem:[%s1231 + $0x1f0] sm:$0xff]
    %v1295 = vld [vmem:[%s1231 + $0x1f8] sm:$0xff]
    %1296 = vmatpush.msra.mxu0 %v1262
    %1297 = vmatpush.msra.mxu0 %v1260
    %1298 = vmatpush.msra.mxu0 %v1258
    %1299 = vmatpush.msra.mxu0 %v1256
    %1300 = vmatpush.msra.mxu0 %v1254
    %1301 = vmatpush.msra.mxu0 %v1252
    %1302 = vmatpush.msra.mxu0 %v1250
    %1303 = vmatpush.msra.mxu0 %v1248
    %1304 = vmatpush.msra.mxu0 %v1246
    %1305 = vmatpush.msra.mxu0 %v1244
    %1306 = vmatpush.msra.mxu0 %v1242
    %1307 = vmatpush.msra.mxu0 %v1240
    %1308 = vmatpush.msra.mxu0 %v1238
    %1309 = vmatpush.msra.mxu0 %v1236
    %1310 = vmatpush.msra.mxu0 %v1234
    %1311 = vmatpush.msra.mxu0 %v1232
    %1312 = vmatmul.f32.gmra.mxu0 %v1209
    %v1313 = vpop.f32.mrf.mxu0
    %v1314 = vadd.f32 0.0, %v1313
    %1315 = vdwg.mxu0
    %1316 = vmatpush.msra.mxu0 %v1294
    %1317 = vmatpush.msra.mxu0 %v1292
    %1318 = vmatpush.msra.mxu0 %v1290
    %1319 = vmatpush.msra.mxu0 %v1288
    %1320 = vmatpush.msra.mxu0 %v1286
    %1321 = vmatpush.msra.mxu0 %v1284
    %1322 = vmatpush.msra.mxu0 %v1282
    %1323 = vmatpush.msra.mxu0 %v1280
    %1324 = vmatpush.msra.mxu0 %v1278
    %1325 = vmatpush.msra.mxu0 %v1276
    %1326 = vmatpush.msra.mxu0 %v1274
    %1327 = vmatpush.msra.mxu0 %v1272
    %1328 = vmatpush.msra.mxu0 %v1270
    %1329 = vmatpush.msra.mxu0 %v1268
    %1330 = vmatpush.msra.mxu0 %v1266
    %1331 = vmatpush.msra.mxu0 %v1264
    %1332 = vmatmul.f32.gmra.mxu0 %v1229
    %v1333 = vpop.f32.mrf.mxu0
    %v1334 = vadd.f32 %v1314, %v1333
    %1335 = vdwg.mxu0
    %1336 = vmatpush.msra.mxu0 %v1263
    %1337 = vmatpush.msra.mxu0 %v1261
    %1338 = vmatpush.msra.mxu0 %v1259
    %1339 = vmatpush.msra.mxu0 %v1257
    %1340 = vmatpush.msra.mxu0 %v1255
    %1341 = vmatpush.msra.mxu0 %v1253
    %1342 = vmatpush.msra.mxu0 %v1251
    %1343 = vmatpush.msra.mxu0 %v1249
    %1344 = vmatpush.msra.mxu0 %v1247
    %1345 = vmatpush.msra.mxu0 %v1245
    %1346 = vmatpush.msra.mxu0 %v1243
    %1347 = vmatpush.msra.mxu0 %v1241
    %1348 = vmatpush.msra.mxu0 %v1239
    %1349 = vmatpush.msra.mxu0 %v1237
    %1350 = vmatpush.msra.mxu0 %v1235
    %1351 = vmatpush.msra.mxu0 %v1233
    %1352 = vmatmul.f32.gmra.mxu0 %v1209
    %v1353 = vpop.f32.mrf.mxu0
    %v1354 = vadd.f32 0.0, %v1353
    %1355 = vdwg.mxu0
    %1356 = vmatpush.msra.mxu0 %v1295
    %1357 = vmatpush.msra.mxu0 %v1293
    %1358 = vmatpush.msra.mxu0 %v1291
    %1359 = vmatpush.msra.mxu0 %v1289
    %1360 = vmatpush.msra.mxu0 %v1287
    %1361 = vmatpush.msra.mxu0 %v1285
    %1362 = vmatpush.msra.mxu0 %v1283
    %1363 = vmatpush.msra.mxu0 %v1281
    %1364 = vmatpush.msra.mxu0 %v1279
    %1365 = vmatpush.msra.mxu0 %v1277
    %1366 = vmatpush.msra.mxu0 %v1275
    %1367 = vmatpush.msra.mxu0 %v1273
    %1368 = vmatpush.msra.mxu0 %v1271
    %1369 = vmatpush.msra.mxu0 %v1269
    %1370 = vmatpush.msra.mxu0 %v1267
    %1371 = vmatpush.msra.mxu0 %v1265
    %1372 = vmatmul.f32.gmra.mxu0 %v1229
    %v1373 = vpop.f32.mrf.mxu0
    %v1374 = vadd.f32 %v1354, %v1373
    %1375 = vdwg.mxu0
    %1376 = vmatpush.msra.mxu0 %v1152
    %1377 = vmatpush.msra.mxu0 %v1150
    %1378 = vmatpush.msra.mxu0 %v1148
    %1379 = vmatpush.msra.mxu0 %v1146
    %1380 = vmatpush.msra.mxu0 %v1144
    %1381 = vmatpush.msra.mxu0 %v1142
    %1382 = vmatpush.msra.mxu0 %v1140
    %1383 = vmatpush.msra.mxu0 %v1138
    %1384 = vmatpush.msra.mxu0 %v1136
    %1385 = vmatpush.msra.mxu0 %v1134
    %1386 = vmatpush.msra.mxu0 %v1132
    %1387 = vmatpush.msra.mxu0 %v1130
    %1388 = vmatpush.msra.mxu0 %v1128
    %1389 = vmatpush.msra.mxu0 %v1126
    %1390 = vmatpush.msra.mxu0 %v1124
    %1391 = vmatpush.msra.mxu0 %v1122
    %1392 = vmatmul.f32.gmra.mxu0 %v1100
    %v1393 = vpop.f32.mrf.mxu0
    %v1394 = vadd.f32 %v1334, %v1393
    %1395 = vdwg.mxu0
    %1396 = vmatpush.msra.mxu0 %v1184
    %1397 = vmatpush.msra.mxu0 %v1182
    %1398 = vmatpush.msra.mxu0 %v1180
    %1399 = vmatpush.msra.mxu0 %v1178
    %1400 = vmatpush.msra.mxu0 %v1176
    %1401 = vmatpush.msra.mxu0 %v1174
    %1402 = vmatpush.msra.mxu0 %v1172
    %1403 = vmatpush.msra.mxu0 %v1170
    %1404 = vmatpush.msra.mxu0 %v1168
    %1405 = vmatpush.msra.mxu0 %v1166
    %1406 = vmatpush.msra.mxu0 %v1164
    %1407 = vmatpush.msra.mxu0 %v1162
    %1408 = vmatpush.msra.mxu0 %v1160
    %1409 = vmatpush.msra.mxu0 %v1158
    %1410 = vmatpush.msra.mxu0 %v1156
    %1411 = vmatpush.msra.mxu0 %v1154
    %1412 = vmatmul.f32.gmra.mxu0 %v1120
    %v1413 = vpop.f32.mrf.mxu0
    %v1414 = vadd.f32 %v1394, %v1413
    %1415 = vdwg.mxu0
    %1416 = vmatpush.msra.mxu0 %v1153
    %1417 = vmatpush.msra.mxu0 %v1151
    %1418 = vmatpush.msra.mxu0 %v1149
    %1419 = vmatpush.msra.mxu0 %v1147
    %1420 = vmatpush.msra.mxu0 %v1145
    %1421 = vmatpush.msra.mxu0 %v1143
    %1422 = vmatpush.msra.mxu0 %v1141
    %1423 = vmatpush.msra.mxu0 %v1139
    %1424 = vmatpush.msra.mxu0 %v1137
    %1425 = vmatpush.msra.mxu0 %v1135
    %1426 = vmatpush.msra.mxu0 %v1133
    %1427 = vmatpush.msra.mxu0 %v1131
    %1428 = vmatpush.msra.mxu0 %v1129
    %1429 = vmatpush.msra.mxu0 %v1127
    %1430 = vmatpush.msra.mxu0 %v1125
    %1431 = vmatpush.msra.mxu0 %v1123
    %1432 = vmatmul.f32.gmra.mxu0 %v1100
    %v1433 = vpop.f32.mrf.mxu0
    %v1434 = vadd.f32 %v1374, %v1433
    %1435 = vdwg.mxu0
    %1436 = vmatpush.msra.mxu0 %v1185
    %1437 = vmatpush.msra.mxu0 %v1183
    %1438 = vmatpush.msra.mxu0 %v1181
    %1439 = vmatpush.msra.mxu0 %v1179
    %1440 = vmatpush.msra.mxu0 %v1177
    %1441 = vmatpush.msra.mxu0 %v1175
    %1442 = vmatpush.msra.mxu0 %v1173
    %1443 = vmatpush.msra.mxu0 %v1171
    %1444 = vmatpush.msra.mxu0 %v1169
    %1445 = vmatpush.msra.mxu0 %v1167
    %1446 = vmatpush.msra.mxu0 %v1165
    %1447 = vmatpush.msra.mxu0 %v1163
    %1448 = vmatpush.msra.mxu0 %v1161
    %1449 = vmatpush.msra.mxu0 %v1159
    %1450 = vmatpush.msra.mxu0 %v1157
    %1451 = vmatpush.msra.mxu0 %v1155
    %1452 = vmatmul.f32.gmra.mxu0 %v1120
    %v1453 = vpop.f32.mrf.mxu0
    %v1454 = vadd.f32 %v1434, %v1453
    %1455 = vdwg.mxu0
    %s1456 = scalar_lea.vmem %s3, 16
    %v1457 = vld [vmem:[%s1456] sm:$0x3f]
    %v1459 = vsel %vm1078, %v1457, 0
    %1461 = vmatpush.msra.mxu0 0.0
    %1462 = vmatpush.msra.mxu0 0.0
    %1463 = vmatpush.msra.mxu0 0.0
    %1464 = vmatpush.msra.mxu0 0.0
    %1465 = vmatpush.msra.mxu0 0.0
    %1466 = vmatpush.msra.mxu0 0.0
    %1467 = vmatpush.msra.mxu0 0.0
    %1468 = vmatpush.msra.mxu0 0.0
    %1469 = vmatpush.msra.mxu0 0.0
    %1470 = vmatpush.msra.mxu0 0.0
    %1471 = vmatpush.msra.mxu0 0.0
    %1472 = vmatpush.msra.mxu0 0.0
    %1473 = vmatpush.msra.mxu0 0.0
    %1474 = vmatpush.msra.mxu0 0.0
    %1475 = vmatpush.msra.mxu0 %v1075
    %1476 = vmatpush.msra.mxu0 %v1073
    %1477 = vmatmul.f32.gmra.mxu0 %v1459
    %v1478 = vpop.f32.mrf.mxu0
    %v1479 = vadd.f32 0.0, %v1478
    %1480 = vdwg.mxu0
    %1481 = vmatpush.msra.mxu0 0.0
    %1482 = vmatpush.msra.mxu0 0.0
    %1483 = vmatpush.msra.mxu0 0.0
    %1484 = vmatpush.msra.mxu0 0.0
    %1485 = vmatpush.msra.mxu0 0.0
    %1486 = vmatpush.msra.mxu0 0.0
    %1487 = vmatpush.msra.mxu0 0.0
    %1488 = vmatpush.msra.mxu0 0.0
    %1489 = vmatpush.msra.mxu0 0.0
    %1490 = vmatpush.msra.mxu0 0.0
    %1491 = vmatpush.msra.mxu0 0.0
    %1492 = vmatpush.msra.mxu0 0.0
    %1493 = vmatpush.msra.mxu0 0.0
    %1494 = vmatpush.msra.mxu0 0.0
    %1495 = vmatpush.msra.mxu0 %v1076
    %1496 = vmatpush.msra.mxu0 %v1074
    %1497 = vmatmul.f32.gmra.mxu0 %v1459
    %v1498 = vpop.f32.mrf.mxu0
    %v1499 = vadd.f32 0.0, %v1498
    %1500 = vdwg.mxu0
    %s1501 = scalar_lea.vmem %s6, 1024
    %v1502 = vld [vmem:[%s1501] sm:$0xff]
    %v1503 = vld [vmem:[%s1501 + $0x8] sm:$0xff]
    %v1504 = vld [vmem:[%s1501 + $0x10] sm:$0xff]
    %v1505 = vld [vmem:[%s1501 + $0x18] sm:$0xff]
    %v1506 = vld [vmem:[%s1501 + $0x20] sm:$0xff]
    %v1507 = vld [vmem:[%s1501 + $0x28] sm:$0xff]
    %v1508 = vld [vmem:[%s1501 + $0x30] sm:$0xff]
    %v1509 = vld [vmem:[%s1501 + $0x38] sm:$0xff]
    %v1510 = vld [vmem:[%s1501 + $0x40] sm:$0xff]
    %v1511 = vld [vmem:[%s1501 + $0x48] sm:$0xff]
    %v1512 = vld [vmem:[%s1501 + $0x50] sm:$0xff]
    %v1513 = vld [vmem:[%s1501 + $0x58] sm:$0xff]
    %v1514 = vld [vmem:[%s1501 + $0x60] sm:$0xff]
    %v1515 = vld [vmem:[%s1501 + $0x68] sm:$0xff]
    %v1516 = vld [vmem:[%s1501 + $0x70] sm:$0xff]
    %v1517 = vld [vmem:[%s1501 + $0x78] sm:$0xff]
    %v1518 = vld [vmem:[%s1501 + $0x80] sm:$0xff]
    %v1519 = vld [vmem:[%s1501 + $0x88] sm:$0xff]
    %v1520 = vld [vmem:[%s1501 + $0x90] sm:$0xff]
    %v1521 = vld [vmem:[%s1501 + $0x98] sm:$0xff]
    %v1522 = vld [vmem:[%s1501 + $0xa0] sm:$0xff]
    %v1523 = vld [vmem:[%s1501 + $0xa8] sm:$0xff]
    %v1524 = vld [vmem:[%s1501 + $0xb0] sm:$0xff]
    %v1525 = vld [vmem:[%s1501 + $0xb8] sm:$0xff]
    %v1526 = vld [vmem:[%s1501 + $0xc0] sm:$0xff]
    %v1527 = vld [vmem:[%s1501 + $0xc8] sm:$0xff]
    %v1528 = vld [vmem:[%s1501 + $0xd0] sm:$0xff]
    %v1529 = vld [vmem:[%s1501 + $0xd8] sm:$0xff]
    %v1530 = vld [vmem:[%s1501 + $0xe0] sm:$0xff]
    %v1531 = vld [vmem:[%s1501 + $0xe8] sm:$0xff]
    %v1532 = vld [vmem:[%s1501 + $0xf0] sm:$0xff]
    %v1533 = vld [vmem:[%s1501 + $0xf8] sm:$0xff]
    %v1534 = vld [vmem:[%s1501 + $0x100] sm:$0xff]
    %v1535 = vld [vmem:[%s1501 + $0x108] sm:$0xff]
    %v1536 = vld [vmem:[%s1501 + $0x110] sm:$0xff]
    %v1537 = vld [vmem:[%s1501 + $0x118] sm:$0xff]
    %v1538 = vld [vmem:[%s1501 + $0x120] sm:$0xff]
    %v1539 = vld [vmem:[%s1501 + $0x128] sm:$0xff]
    %v1540 = vld [vmem:[%s1501 + $0x130] sm:$0xff]
    %v1541 = vld [vmem:[%s1501 + $0x138] sm:$0xff]
    %v1542 = vld [vmem:[%s1501 + $0x140] sm:$0xff]
    %v1543 = vld [vmem:[%s1501 + $0x148] sm:$0xff]
    %v1544 = vld [vmem:[%s1501 + $0x150] sm:$0xff]
    %v1545 = vld [vmem:[%s1501 + $0x158] sm:$0xff]
    %v1546 = vld [vmem:[%s1501 + $0x160] sm:$0xff]
    %v1547 = vld [vmem:[%s1501 + $0x168] sm:$0xff]
    %v1548 = vld [vmem:[%s1501 + $0x170] sm:$0xff]
    %v1549 = vld [vmem:[%s1501 + $0x178] sm:$0xff]
    %v1550 = vld [vmem:[%s1501 + $0x180] sm:$0xff]
    %v1551 = vld [vmem:[%s1501 + $0x188] sm:$0xff]
    %v1552 = vld [vmem:[%s1501 + $0x190] sm:$0xff]
    %v1553 = vld [vmem:[%s1501 + $0x198] sm:$0xff]
    %v1554 = vld [vmem:[%s1501 + $0x1a0] sm:$0xff]
    %v1555 = vld [vmem:[%s1501 + $0x1a8] sm:$0xff]
    %v1556 = vld [vmem:[%s1501 + $0x1b0] sm:$0xff]
    %v1557 = vld [vmem:[%s1501 + $0x1b8] sm:$0xff]
    %v1558 = vld [vmem:[%s1501 + $0x1c0] sm:$0xff]
    %v1559 = vld [vmem:[%s1501 + $0x1c8] sm:$0xff]
    %v1560 = vld [vmem:[%s1501 + $0x1d0] sm:$0xff]
    %v1561 = vld [vmem:[%s1501 + $0x1d8] sm:$0xff]
    %v1562 = vld [vmem:[%s1501 + $0x1e0] sm:$0xff]
    %v1563 = vld [vmem:[%s1501 + $0x1e8] sm:$0xff]
    %v1564 = vld [vmem:[%s1501 + $0x1f0] sm:$0xff]
    %v1565 = vld [vmem:[%s1501 + $0x1f8] sm:$0xff]
    %1566 = vmatpush.msra.mxu0 %v1532
    %1567 = vmatpush.msra.mxu0 %v1530
    %1568 = vmatpush.msra.mxu0 %v1528
    %1569 = vmatpush.msra.mxu0 %v1526
    %1570 = vmatpush.msra.mxu0 %v1524
    %1571 = vmatpush.msra.mxu0 %v1522
    %1572 = vmatpush.msra.mxu0 %v1520
    %1573 = vmatpush.msra.mxu0 %v1518
    %1574 = vmatpush.msra.mxu0 %v1516
    %1575 = vmatpush.msra.mxu0 %v1514
    %1576 = vmatpush.msra.mxu0 %v1512
    %1577 = vmatpush.msra.mxu0 %v1510
    %1578 = vmatpush.msra.mxu0 %v1508
    %1579 = vmatpush.msra.mxu0 %v1506
    %1580 = vmatpush.msra.mxu0 %v1504
    %1581 = vmatpush.msra.mxu0 %v1502
    %1582 = vmatmul.f32.gmra.mxu0 %v1479
    %v1583 = vpop.f32.mrf.mxu0
    %v1584 = vadd.f32 0.0, %v1583
    %1585 = vdwg.mxu0
    %1586 = vmatpush.msra.mxu0 %v1564
    %1587 = vmatpush.msra.mxu0 %v1562
    %1588 = vmatpush.msra.mxu0 %v1560
    %1589 = vmatpush.msra.mxu0 %v1558
    %1590 = vmatpush.msra.mxu0 %v1556
    %1591 = vmatpush.msra.mxu0 %v1554
    %1592 = vmatpush.msra.mxu0 %v1552
    %1593 = vmatpush.msra.mxu0 %v1550
    %1594 = vmatpush.msra.mxu0 %v1548
    %1595 = vmatpush.msra.mxu0 %v1546
    %1596 = vmatpush.msra.mxu0 %v1544
    %1597 = vmatpush.msra.mxu0 %v1542
    %1598 = vmatpush.msra.mxu0 %v1540
    %1599 = vmatpush.msra.mxu0 %v1538
    %1600 = vmatpush.msra.mxu0 %v1536
    %1601 = vmatpush.msra.mxu0 %v1534
    %1602 = vmatmul.f32.gmra.mxu0 %v1499
    %v1603 = vpop.f32.mrf.mxu0
    %v1604 = vadd.f32 %v1584, %v1603
    %1605 = vdwg.mxu0
    %1606 = vmatpush.msra.mxu0 %v1533
    %1607 = vmatpush.msra.mxu0 %v1531
    %1608 = vmatpush.msra.mxu0 %v1529
    %1609 = vmatpush.msra.mxu0 %v1527
    %1610 = vmatpush.msra.mxu0 %v1525
    %1611 = vmatpush.msra.mxu0 %v1523
    %1612 = vmatpush.msra.mxu0 %v1521
    %1613 = vmatpush.msra.mxu0 %v1519
    %1614 = vmatpush.msra.mxu0 %v1517
    %1615 = vmatpush.msra.mxu0 %v1515
    %1616 = vmatpush.msra.mxu0 %v1513
    %1617 = vmatpush.msra.mxu0 %v1511
    %1618 = vmatpush.msra.mxu0 %v1509
    %1619 = vmatpush.msra.mxu0 %v1507
    %1620 = vmatpush.msra.mxu0 %v1505
    %1621 = vmatpush.msra.mxu0 %v1503
    %1622 = vmatmul.f32.gmra.mxu0 %v1479
    %v1623 = vpop.f32.mrf.mxu0
    %v1624 = vadd.f32 0.0, %v1623
    %1625 = vdwg.mxu0
    %1626 = vmatpush.msra.mxu0 %v1565
    %1627 = vmatpush.msra.mxu0 %v1563
    %1628 = vmatpush.msra.mxu0 %v1561
    %1629 = vmatpush.msra.mxu0 %v1559
    %1630 = vmatpush.msra.mxu0 %v1557
    %1631 = vmatpush.msra.mxu0 %v1555
    %1632 = vmatpush.msra.mxu0 %v1553
    %1633 = vmatpush.msra.mxu0 %v1551
    %1634 = vmatpush.msra.mxu0 %v1549
    %1635 = vmatpush.msra.mxu0 %v1547
    %1636 = vmatpush.msra.mxu0 %v1545
    %1637 = vmatpush.msra.mxu0 %v1543
    %1638 = vmatpush.msra.mxu0 %v1541
    %1639 = vmatpush.msra.mxu0 %v1539
    %1640 = vmatpush.msra.mxu0 %v1537
    %1641 = vmatpush.msra.mxu0 %v1535
    %1642 = vmatmul.f32.gmra.mxu0 %v1499
    %v1643 = vpop.f32.mrf.mxu0
    %v1644 = vadd.f32 %v1624, %v1643
    %1645 = vdwg.mxu0
    %v1646 = vadd.f32 %v1414, %v1604
    %v1647 = vadd.f32 %v1454, %v1644
    %s1648 = scalar_lea.vmem %s3, 24
    %v1649 = vld [vmem:[%s1648] sm:$0x3f]
    %v1651 = vsel %vm1078, %v1649, 0
    %1653 = vmatpush.msra.mxu0 0.0
    %1654 = vmatpush.msra.mxu0 0.0
    %1655 = vmatpush.msra.mxu0 0.0
    %1656 = vmatpush.msra.mxu0 0.0
    %1657 = vmatpush.msra.mxu0 0.0
    %1658 = vmatpush.msra.mxu0 0.0
    %1659 = vmatpush.msra.mxu0 0.0
    %1660 = vmatpush.msra.mxu0 0.0
    %1661 = vmatpush.msra.mxu0 0.0
    %1662 = vmatpush.msra.mxu0 0.0
    %1663 = vmatpush.msra.mxu0 0.0
    %1664 = vmatpush.msra.mxu0 0.0
    %1665 = vmatpush.msra.mxu0 0.0
    %1666 = vmatpush.msra.mxu0 0.0
    %1667 = vmatpush.msra.mxu0 %v1075
    %1668 = vmatpush.msra.mxu0 %v1073
    %1669 = vmatmul.f32.gmra.mxu0 %v1651
    %v1670 = vpop.f32.mrf.mxu0
    %v1671 = vadd.f32 0.0, %v1670
    %1672 = vdwg.mxu0
    %1673 = vmatpush.msra.mxu0 0.0
    %1674 = vmatpush.msra.mxu0 0.0
    %1675 = vmatpush.msra.mxu0 0.0
    %1676 = vmatpush.msra.mxu0 0.0
    %1677 = vmatpush.msra.mxu0 0.0
    %1678 = vmatpush.msra.mxu0 0.0
    %1679 = vmatpush.msra.mxu0 0.0
    %1680 = vmatpush.msra.mxu0 0.0
    %1681 = vmatpush.msra.mxu0 0.0
    %1682 = vmatpush.msra.mxu0 0.0
    %1683 = vmatpush.msra.mxu0 0.0
    %1684 = vmatpush.msra.mxu0 0.0
    %1685 = vmatpush.msra.mxu0 0.0
    %1686 = vmatpush.msra.mxu0 0.0
    %1687 = vmatpush.msra.mxu0 %v1076
    %1688 = vmatpush.msra.mxu0 %v1074
    %1689 = vmatmul.f32.gmra.mxu0 %v1651
    %v1690 = vpop.f32.mrf.mxu0
    %v1691 = vadd.f32 0.0, %v1690
    %1692 = vdwg.mxu0
    %s1693 = scalar_lea.vmem %s6, 1536
    %v1694 = vld [vmem:[%s1693] sm:$0xff]
    %v1695 = vld [vmem:[%s1693 + $0x8] sm:$0xff]
    %v1696 = vld [vmem:[%s1693 + $0x10] sm:$0xff]
    %v1697 = vld [vmem:[%s1693 + $0x18] sm:$0xff]
    %v1698 = vld [vmem:[%s1693 + $0x20] sm:$0xff]
    %v1699 = vld [vmem:[%s1693 + $0x28] sm:$0xff]
    %v1700 = vld [vmem:[%s1693 + $0x30] sm:$0xff]
    %v1701 = vld [vmem:[%s1693 + $0x38] sm:$0xff]
    %v1702 = vld [vmem:[%s1693 + $0x40] sm:$0xff]
    %v1703 = vld [vmem:[%s1693 + $0x48] sm:$0xff]
    %v1704 = vld [vmem:[%s1693 + $0x50] sm:$0xff]
    %v1705 = vld [vmem:[%s1693 + $0x58] sm:$0xff]
    %v1706 = vld [vmem:[%s1693 + $0x60] sm:$0xff]
    %v1707 = vld [vmem:[%s1693 + $0x68] sm:$0xff]
    %v1708 = vld [vmem:[%s1693 + $0x70] sm:$0xff]
    %v1709 = vld [vmem:[%s1693 + $0x78] sm:$0xff]
    %v1710 = vld [vmem:[%s1693 + $0x80] sm:$0xff]
    %v1711 = vld [vmem:[%s1693 + $0x88] sm:$0xff]
    %v1712 = vld [vmem:[%s1693 + $0x90] sm:$0xff]
    %v1713 = vld [vmem:[%s1693 + $0x98] sm:$0xff]
    %v1714 = vld [vmem:[%s1693 + $0xa0] sm:$0xff]
    %v1715 = vld [vmem:[%s1693 + $0xa8] sm:$0xff]
    %v1716 = vld [vmem:[%s1693 + $0xb0] sm:$0xff]
    %v1717 = vld [vmem:[%s1693 + $0xb8] sm:$0xff]
    %v1718 = vld [vmem:[%s1693 + $0xc0] sm:$0xff]
    %v1719 = vld [vmem:[%s1693 + $0xc8] sm:$0xff]
    %v1720 = vld [vmem:[%s1693 + $0xd0] sm:$0xff]
    %v1721 = vld [vmem:[%s1693 + $0xd8] sm:$0xff]
    %v1722 = vld [vmem:[%s1693 + $0xe0] sm:$0xff]
    %v1723 = vld [vmem:[%s1693 + $0xe8] sm:$0xff]
    %v1724 = vld [vmem:[%s1693 + $0xf0] sm:$0xff]
    %v1725 = vld [vmem:[%s1693 + $0xf8] sm:$0xff]
    %v1726 = vld [vmem:[%s1693 + $0x100] sm:$0xff]
    %v1727 = vld [vmem:[%s1693 + $0x108] sm:$0xff]
    %v1728 = vld [vmem:[%s1693 + $0x110] sm:$0xff]
    %v1729 = vld [vmem:[%s1693 + $0x118] sm:$0xff]
    %v1730 = vld [vmem:[%s1693 + $0x120] sm:$0xff]
    %v1731 = vld [vmem:[%s1693 + $0x128] sm:$0xff]
    %v1732 = vld [vmem:[%s1693 + $0x130] sm:$0xff]
    %v1733 = vld [vmem:[%s1693 + $0x138] sm:$0xff]
    %v1734 = vld [vmem:[%s1693 + $0x140] sm:$0xff]
    %v1735 = vld [vmem:[%s1693 + $0x148] sm:$0xff]
    %v1736 = vld [vmem:[%s1693 + $0x150] sm:$0xff]
    %v1737 = vld [vmem:[%s1693 + $0x158] sm:$0xff]
    %v1738 = vld [vmem:[%s1693 + $0x160] sm:$0xff]
    %v1739 = vld [vmem:[%s1693 + $0x168] sm:$0xff]
    %v1740 = vld [vmem:[%s1693 + $0x170] sm:$0xff]
    %v1741 = vld [vmem:[%s1693 + $0x178] sm:$0xff]
    %v1742 = vld [vmem:[%s1693 + $0x180] sm:$0xff]
    %v1743 = vld [vmem:[%s1693 + $0x188] sm:$0xff]
    %v1744 = vld [vmem:[%s1693 + $0x190] sm:$0xff]
    %v1745 = vld [vmem:[%s1693 + $0x198] sm:$0xff]
    %v1746 = vld [vmem:[%s1693 + $0x1a0] sm:$0xff]
    %v1747 = vld [vmem:[%s1693 + $0x1a8] sm:$0xff]
    %v1748 = vld [vmem:[%s1693 + $0x1b0] sm:$0xff]
    %v1749 = vld [vmem:[%s1693 + $0x1b8] sm:$0xff]
    %v1750 = vld [vmem:[%s1693 + $0x1c0] sm:$0xff]
    %v1751 = vld [vmem:[%s1693 + $0x1c8] sm:$0xff]
    %v1752 = vld [vmem:[%s1693 + $0x1d0] sm:$0xff]
    %v1753 = vld [vmem:[%s1693 + $0x1d8] sm:$0xff]
    %v1754 = vld [vmem:[%s1693 + $0x1e0] sm:$0xff]
    %v1755 = vld [vmem:[%s1693 + $0x1e8] sm:$0xff]
    %v1756 = vld [vmem:[%s1693 + $0x1f0] sm:$0xff]
    %v1757 = vld [vmem:[%s1693 + $0x1f8] sm:$0xff]
    %1758 = vmatpush.msra.mxu0 %v1724
    %1759 = vmatpush.msra.mxu0 %v1722
    %1760 = vmatpush.msra.mxu0 %v1720
    %1761 = vmatpush.msra.mxu0 %v1718
    %1762 = vmatpush.msra.mxu0 %v1716
    %1763 = vmatpush.msra.mxu0 %v1714
    %1764 = vmatpush.msra.mxu0 %v1712
    %1765 = vmatpush.msra.mxu0 %v1710
    %1766 = vmatpush.msra.mxu0 %v1708
    %1767 = vmatpush.msra.mxu0 %v1706
    %1768 = vmatpush.msra.mxu0 %v1704
    %1769 = vmatpush.msra.mxu0 %v1702
    %1770 = vmatpush.msra.mxu0 %v1700
    %1771 = vmatpush.msra.mxu0 %v1698
    %1772 = vmatpush.msra.mxu0 %v1696
    %1773 = vmatpush.msra.mxu0 %v1694
    %1774 = vmatmul.f32.gmra.mxu0 %v1671
    %v1775 = vpop.f32.mrf.mxu0
    %v1776 = vadd.f32 0.0, %v1775
    %1777 = vdwg.mxu0
    %1778 = vmatpush.msra.mxu0 %v1756
    %1779 = vmatpush.msra.mxu0 %v1754
    %1780 = vmatpush.msra.mxu0 %v1752
    %1781 = vmatpush.msra.mxu0 %v1750
    %1782 = vmatpush.msra.mxu0 %v1748
    %1783 = vmatpush.msra.mxu0 %v1746
    %1784 = vmatpush.msra.mxu0 %v1744
    %1785 = vmatpush.msra.mxu0 %v1742
    %1786 = vmatpush.msra.mxu0 %v1740
    %1787 = vmatpush.msra.mxu0 %v1738
    %1788 = vmatpush.msra.mxu0 %v1736
    %1789 = vmatpush.msra.mxu0 %v1734
    %1790 = vmatpush.msra.mxu0 %v1732
    %1791 = vmatpush.msra.mxu0 %v1730
    %1792 = vmatpush.msra.mxu0 %v1728
    %1793 = vmatpush.msra.mxu0 %v1726
    %1794 = vmatmul.f32.gmra.mxu0 %v1691
    %v1795 = vpop.f32.mrf.mxu0
    %v1796 = vadd.f32 %v1776, %v1795
    %1797 = vdwg.mxu0
    %1798 = vmatpush.msra.mxu0 %v1725
    %1799 = vmatpush.msra.mxu0 %v1723
    %1800 = vmatpush.msra.mxu0 %v1721
    %1801 = vmatpush.msra.mxu0 %v1719
    %1802 = vmatpush.msra.mxu0 %v1717
    %1803 = vmatpush.msra.mxu0 %v1715
    %1804 = vmatpush.msra.mxu0 %v1713
    %1805 = vmatpush.msra.mxu0 %v1711
    %1806 = vmatpush.msra.mxu0 %v1709
    %1807 = vmatpush.msra.mxu0 %v1707
    %1808 = vmatpush.msra.mxu0 %v1705
    %1809 = vmatpush.msra.mxu0 %v1703
    %1810 = vmatpush.msra.mxu0 %v1701
    %1811 = vmatpush.msra.mxu0 %v1699
    %1812 = vmatpush.msra.mxu0 %v1697
    %1813 = vmatpush.msra.mxu0 %v1695
    %1814 = vmatmul.f32.gmra.mxu0 %v1671
    %v1815 = vpop.f32.mrf.mxu0
    %v1816 = vadd.f32 0.0, %v1815
    %1817 = vdwg.mxu0
    %1818 = vmatpush.msra.mxu0 %v1757
    %1819 = vmatpush.msra.mxu0 %v1755
    %1820 = vmatpush.msra.mxu0 %v1753
    %1821 = vmatpush.msra.mxu0 %v1751
    %1822 = vmatpush.msra.mxu0 %v1749
    %1823 = vmatpush.msra.mxu0 %v1747
    %1824 = vmatpush.msra.mxu0 %v1745
    %1825 = vmatpush.msra.mxu0 %v1743
    %1826 = vmatpush.msra.mxu0 %v1741
    %1827 = vmatpush.msra.mxu0 %v1739
    %1828 = vmatpush.msra.mxu0 %v1737
    %1829 = vmatpush.msra.mxu0 %v1735
    %1830 = vmatpush.msra.mxu0 %v1733
    %1831 = vmatpush.msra.mxu0 %v1731
    %1832 = vmatpush.msra.mxu0 %v1729
    %1833 = vmatpush.msra.mxu0 %v1727
    %1834 = vmatmul.f32.gmra.mxu0 %v1691
    %v1835 = vpop.f32.mrf.mxu0
    %v1836 = vadd.f32 %v1816, %v1835
    %1837 = vdwg.mxu0
    %v1838 = vadd.f32 %v1646, %v1796
    %v1839 = vadd.f32 %v1647, %v1836
    %v1840 = vld [vmem:[%s12] sm:$0x3]
    %v1842 = vperm.slane %v1840, 0
    %v1843 = vperm.slane %v1840, 1
    %v1846 = vadd.f32 %v1838, %v1842
    %v1847 = vadd.f32 %v1839, %v1843
    %v1848 = vld [vmem:[%s4] sm:$0x3]
    %vm1849 = vcmask 48128
    %v1851 = vsel %vm1849, %v1848, 0
    %vm1853 = vcmask 1045504
    %v1855 = vsel %vm1853, %v1846, 0
    %v1858 = vsel %vm1853, %v1847, 0
    %1860 = vmatpush.msra.mxu0 0.0
    %1861 = vmatpush.msra.mxu0 0.0
    %1862 = vmatpush.msra.mxu0 0.0
    %1863 = vmatpush.msra.mxu0 0.0
    %1864 = vmatpush.msra.mxu0 0.0
    %1865 = vmatpush.msra.mxu0 0.0
    %1866 = vmatpush.msra.mxu0 0.0
    %1867 = vmatpush.msra.mxu0 0.0
    %1868 = vmatpush.msra.mxu0 0.0
    %1869 = vmatpush.msra.mxu0 0.0
    %1870 = vmatpush.msra.mxu0 0.0
    %1871 = vmatpush.msra.mxu0 0.0
    %1872 = vmatpush.msra.mxu0 0.0
    %1873 = vmatpush.msra.mxu0 0.0
    %1874 = vmatpush.msra.mxu0 0.0
    %1875 = vmatpush.msra.mxu0 %v1855
    %1876 = vmatmul.f32.gmra.mxu0 %v1851
    %v1877 = vpop.f32.mrf.mxu0
    %v1878 = vadd.f32 0.0, %v1877
    %1879 = vdwg.mxu0
    %1880 = vmatpush.msra.mxu0 0.0
    %1881 = vmatpush.msra.mxu0 0.0
    %1882 = vmatpush.msra.mxu0 0.0
    %1883 = vmatpush.msra.mxu0 0.0
    %1884 = vmatpush.msra.mxu0 0.0
    %1885 = vmatpush.msra.mxu0 0.0
    %1886 = vmatpush.msra.mxu0 0.0
    %1887 = vmatpush.msra.mxu0 0.0
    %1888 = vmatpush.msra.mxu0 0.0
    %1889 = vmatpush.msra.mxu0 0.0
    %1890 = vmatpush.msra.mxu0 0.0
    %1891 = vmatpush.msra.mxu0 0.0
    %1892 = vmatpush.msra.mxu0 0.0
    %1893 = vmatpush.msra.mxu0 0.0
    %1894 = vmatpush.msra.mxu0 0.0
    %1895 = vmatpush.msra.mxu0 %v1858
    %1896 = vmatmul.f32.gmra.mxu0 %v1851
    %v1897 = vpop.f32.mrf.mxu0
    %v1898 = vadd.f32 0.0, %v1897
    %1899 = vdwg.mxu0
    %v1900 = vld [vmem:[%s7] sm:$0xff]
    %v1901 = vld [vmem:[%s7 + $0x8] sm:$0xff]
    %v1902 = vld [vmem:[%s7 + $0x10] sm:$0xff]
    %v1903 = vld [vmem:[%s7 + $0x18] sm:$0xff]
    %v1904 = vld [vmem:[%s7 + $0x20] sm:$0xff]
    %v1905 = vld [vmem:[%s7 + $0x28] sm:$0xff]
    %v1906 = vld [vmem:[%s7 + $0x30] sm:$0xff]
    %v1907 = vld [vmem:[%s7 + $0x38] sm:$0xff]
    %v1908 = vld [vmem:[%s7 + $0x40] sm:$0xff]
    %v1909 = vld [vmem:[%s7 + $0x48] sm:$0xff]
    %v1910 = vld [vmem:[%s7 + $0x50] sm:$0xff]
    %v1911 = vld [vmem:[%s7 + $0x58] sm:$0xff]
    %v1912 = vld [vmem:[%s7 + $0x60] sm:$0xff]
    %v1913 = vld [vmem:[%s7 + $0x68] sm:$0xff]
    %v1914 = vld [vmem:[%s7 + $0x70] sm:$0xff]
    %v1915 = vld [vmem:[%s7 + $0x78] sm:$0xff]
    %v1916 = vld [vmem:[%s7 + $0x80] sm:$0xff]
    %v1917 = vld [vmem:[%s7 + $0x88] sm:$0xff]
    %v1918 = vld [vmem:[%s7 + $0x90] sm:$0xff]
    %v1919 = vld [vmem:[%s7 + $0x98] sm:$0xff]
    %v1920 = vld [vmem:[%s7 + $0xa0] sm:$0xff]
    %v1921 = vld [vmem:[%s7 + $0xa8] sm:$0xff]
    %v1922 = vld [vmem:[%s7 + $0xb0] sm:$0xff]
    %v1923 = vld [vmem:[%s7 + $0xb8] sm:$0xff]
    %s1924 = scalar_lea.vmem %s4, 2
    %v1925 = vld [vmem:[%s1924] sm:$0x3]
    %v1927 = vsel %vm1849, %v1925, 0
    %1929 = vmatpush.msra.mxu0 0.0
    %1930 = vmatpush.msra.mxu0 0.0
    %1931 = vmatpush.msra.mxu0 0.0
    %1932 = vmatpush.msra.mxu0 0.0
    %1933 = vmatpush.msra.mxu0 0.0
    %1934 = vmatpush.msra.mxu0 0.0
    %1935 = vmatpush.msra.mxu0 0.0
    %1936 = vmatpush.msra.mxu0 0.0
    %1937 = vmatpush.msra.mxu0 0.0
    %1938 = vmatpush.msra.mxu0 0.0
    %1939 = vmatpush.msra.mxu0 0.0
    %1940 = vmatpush.msra.mxu0 0.0
    %1941 = vmatpush.msra.mxu0 0.0
    %1942 = vmatpush.msra.mxu0 0.0
    %1943 = vmatpush.msra.mxu0 0.0
    %1944 = vmatpush.msra.mxu0 %v1855
    %1945 = vmatmul.f32.gmra.mxu0 %v1927
    %v1946 = vpop.f32.mrf.mxu0
    %v1947 = vadd.f32 0.0, %v1946
    %1948 = vdwg.mxu0
    %1949 = vmatpush.msra.mxu0 0.0
    %1950 = vmatpush.msra.mxu0 0.0
    %1951 = vmatpush.msra.mxu0 0.0
    %1952 = vmatpush.msra.mxu0 0.0
    %1953 = vmatpush.msra.mxu0 0.0
    %1954 = vmatpush.msra.mxu0 0.0
    %1955 = vmatpush.msra.mxu0 0.0
    %1956 = vmatpush.msra.mxu0 0.0
    %1957 = vmatpush.msra.mxu0 0.0
    %1958 = vmatpush.msra.mxu0 0.0
    %1959 = vmatpush.msra.mxu0 0.0
    %1960 = vmatpush.msra.mxu0 0.0
    %1961 = vmatpush.msra.mxu0 0.0
    %1962 = vmatpush.msra.mxu0 0.0
    %1963 = vmatpush.msra.mxu0 0.0
    %1964 = vmatpush.msra.mxu0 %v1858
    %1965 = vmatmul.f32.gmra.mxu0 %v1927
    %v1966 = vpop.f32.mrf.mxu0
    %v1967 = vadd.f32 0.0, %v1966
    %1968 = vdwg.mxu0
    %s1969 = scalar_lea.vmem %s7, 192
    %v1970 = vld [vmem:[%s1969] sm:$0xff]
    %v1971 = vld [vmem:[%s1969 + $0x8] sm:$0xff]
    %v1972 = vld [vmem:[%s1969 + $0x10] sm:$0xff]
    %v1973 = vld [vmem:[%s1969 + $0x18] sm:$0xff]
    %v1974 = vld [vmem:[%s1969 + $0x20] sm:$0xff]
    %v1975 = vld [vmem:[%s1969 + $0x28] sm:$0xff]
    %v1976 = vld [vmem:[%s1969 + $0x30] sm:$0xff]
    %v1977 = vld [vmem:[%s1969 + $0x38] sm:$0xff]
    %v1978 = vld [vmem:[%s1969 + $0x40] sm:$0xff]
    %v1979 = vld [vmem:[%s1969 + $0x48] sm:$0xff]
    %v1980 = vld [vmem:[%s1969 + $0x50] sm:$0xff]
    %v1981 = vld [vmem:[%s1969 + $0x58] sm:$0xff]
    %v1982 = vld [vmem:[%s1969 + $0x60] sm:$0xff]
    %v1983 = vld [vmem:[%s1969 + $0x68] sm:$0xff]
    %v1984 = vld [vmem:[%s1969 + $0x70] sm:$0xff]
    %v1985 = vld [vmem:[%s1969 + $0x78] sm:$0xff]
    %v1986 = vld [vmem:[%s1969 + $0x80] sm:$0xff]
    %v1987 = vld [vmem:[%s1969 + $0x88] sm:$0xff]
    %v1988 = vld [vmem:[%s1969 + $0x90] sm:$0xff]
    %v1989 = vld [vmem:[%s1969 + $0x98] sm:$0xff]
    %v1990 = vld [vmem:[%s1969 + $0xa0] sm:$0xff]
    %v1991 = vld [vmem:[%s1969 + $0xa8] sm:$0xff]
    %v1992 = vld [vmem:[%s1969 + $0xb0] sm:$0xff]
    %v1993 = vld [vmem:[%s1969 + $0xb8] sm:$0xff]
    %vm1994 = vcmask 523264
    %v1996 = vsel %vm1994, %v1967, 0
    %1998 = vmatpush.msra.mxu0 %v1985
    %1999 = vmatpush.msra.mxu0 %v1984
    %2000 = vmatpush.msra.mxu0 %v1983
    %2001 = vmatpush.msra.mxu0 %v1982
    %2002 = vmatpush.msra.mxu0 %v1981
    %2003 = vmatpush.msra.mxu0 %v1980
    %2004 = vmatpush.msra.mxu0 %v1979
    %2005 = vmatpush.msra.mxu0 %v1978
    %2006 = vmatpush.msra.mxu0 %v1977
    %2007 = vmatpush.msra.mxu0 %v1976
    %2008 = vmatpush.msra.mxu0 %v1975
    %2009 = vmatpush.msra.mxu0 %v1974
    %2010 = vmatpush.msra.mxu0 %v1973
    %2011 = vmatpush.msra.mxu0 %v1972
    %2012 = vmatpush.msra.mxu0 %v1971
    %2013 = vmatpush.msra.mxu0 %v1970
    %2014 = vmatmul.f32.gmra.mxu0 %v1947
    %v2015 = vpop.f32.mrf.mxu0
    %v2016 = vadd.f32 0.0, %v2015
    %2017 = vdwg.mxu0
    %2018 = vmatpush.msra.mxu0 0.0
    %2019 = vmatpush.msra.mxu0 0.0
    %2020 = vmatpush.msra.mxu0 0.0
    %2021 = vmatpush.msra.mxu0 0.0
    %2022 = vmatpush.msra.mxu0 0.0
    %2023 = vmatpush.msra.mxu0 0.0
    %2024 = vmatpush.msra.mxu0 0.0
    %2025 = vmatpush.msra.mxu0 0.0
    %2026 = vmatpush.msra.mxu0 %v1993
    %2027 = vmatpush.msra.mxu0 %v1992
    %2028 = vmatpush.msra.mxu0 %v1991
    %2029 = vmatpush.msra.mxu0 %v1990
    %2030 = vmatpush.msra.mxu0 %v1989
    %2031 = vmatpush.msra.mxu0 %v1988
    %2032 = vmatpush.msra.mxu0 %v1987
    %2033 = vmatpush.msra.mxu0 %v1986
    %2034 = vmatmul.f32.gmra.mxu0 %v1996
    %v2035 = vpop.f32.mrf.mxu0
    %v2036 = vadd.f32 %v2016, %v2035
    %2037 = vdwg.mxu0
    %v2039 = vsel %vm1994, %v1898, 0
    %2041 = vmatpush.msra.mxu0 %v1915
    %2042 = vmatpush.msra.mxu0 %v1914
    %2043 = vmatpush.msra.mxu0 %v1913
    %2044 = vmatpush.msra.mxu0 %v1912
    %2045 = vmatpush.msra.mxu0 %v1911
    %2046 = vmatpush.msra.mxu0 %v1910
    %2047 = vmatpush.msra.mxu0 %v1909
    %2048 = vmatpush.msra.mxu0 %v1908
    %2049 = vmatpush.msra.mxu0 %v1907
    %2050 = vmatpush.msra.mxu0 %v1906
    %2051 = vmatpush.msra.mxu0 %v1905
    %2052 = vmatpush.msra.mxu0 %v1904
    %2053 = vmatpush.msra.mxu0 %v1903
    %2054 = vmatpush.msra.mxu0 %v1902
    %2055 = vmatpush.msra.mxu0 %v1901
    %2056 = vmatpush.msra.mxu0 %v1900
    %2057 = vmatmul.f32.gmra.mxu0 %v1878
    %v2058 = vpop.f32.mrf.mxu0
    %v2059 = vadd.f32 %v2036, %v2058
    %2060 = vdwg.mxu0
    %2061 = vmatpush.msra.mxu0 0.0
    %2062 = vmatpush.msra.mxu0 0.0
    %2063 = vmatpush.msra.mxu0 0.0
    %2064 = vmatpush.msra.mxu0 0.0
    %2065 = vmatpush.msra.mxu0 0.0
    %2066 = vmatpush.msra.mxu0 0.0
    %2067 = vmatpush.msra.mxu0 0.0
    %2068 = vmatpush.msra.mxu0 0.0
    %2069 = vmatpush.msra.mxu0 %v1923
    %2070 = vmatpush.msra.mxu0 %v1922
    %2071 = vmatpush.msra.mxu0 %v1921
    %2072 = vmatpush.msra.mxu0 %v1920
    %2073 = vmatpush.msra.mxu0 %v1919
    %2074 = vmatpush.msra.mxu0 %v1918
    %2075 = vmatpush.msra.mxu0 %v1917
    %2076 = vmatpush.msra.mxu0 %v1916
    %2077 = vmatmul.f32.gmra.mxu0 %v2039
    %v2078 = vpop.f32.mrf.mxu0
    %v2079 = vadd.f32 %v2059, %v2078
    %2080 = vdwg.mxu0
    %s2081 = scalar_lea.vmem %s4, 4
    %v2082 = vld [vmem:[%s2081] sm:$0x3]
    %v2084 = vsel %vm1849, %v2082, 0
    %2086 = vmatpush.msra.mxu0 0.0
    %2087 = vmatpush.msra.mxu0 0.0
    %2088 = vmatpush.msra.mxu0 0.0
    %2089 = vmatpush.msra.mxu0 0.0
    %2090 = vmatpush.msra.mxu0 0.0
    %2091 = vmatpush.msra.mxu0 0.0
    %2092 = vmatpush.msra.mxu0 0.0
    %2093 = vmatpush.msra.mxu0 0.0
    %2094 = vmatpush.msra.mxu0 0.0
    %2095 = vmatpush.msra.mxu0 0.0
    %2096 = vmatpush.msra.mxu0 0.0
    %2097 = vmatpush.msra.mxu0 0.0
    %2098 = vmatpush.msra.mxu0 0.0
    %2099 = vmatpush.msra.mxu0 0.0
    %2100 = vmatpush.msra.mxu0 0.0
    %2101 = vmatpush.msra.mxu0 %v1855
    %2102 = vmatmul.f32.gmra.mxu0 %v2084
    %v2103 = vpop.f32.mrf.mxu0
    %v2104 = vadd.f32 0.0, %v2103
    %2105 = vdwg.mxu0
    %2106 = vmatpush.msra.mxu0 0.0
    %2107 = vmatpush.msra.mxu0 0.0
    %2108 = vmatpush.msra.mxu0 0.0
    %2109 = vmatpush.msra.mxu0 0.0
    %2110 = vmatpush.msra.mxu0 0.0
    %2111 = vmatpush.msra.mxu0 0.0
    %2112 = vmatpush.msra.mxu0 0.0
    %2113 = vmatpush.msra.mxu0 0.0
    %2114 = vmatpush.msra.mxu0 0.0
    %2115 = vmatpush.msra.mxu0 0.0
    %2116 = vmatpush.msra.mxu0 0.0
    %2117 = vmatpush.msra.mxu0 0.0
    %2118 = vmatpush.msra.mxu0 0.0
    %2119 = vmatpush.msra.mxu0 0.0
    %2120 = vmatpush.msra.mxu0 0.0
    %2121 = vmatpush.msra.mxu0 %v1858
    %2122 = vmatmul.f32.gmra.mxu0 %v2084
    %v2123 = vpop.f32.mrf.mxu0
    %v2124 = vadd.f32 0.0, %v2123
    %2125 = vdwg.mxu0
    %s2126 = scalar_lea.vmem %s7, 384
    %v2127 = vld [vmem:[%s2126] sm:$0xff]
    %v2128 = vld [vmem:[%s2126 + $0x8] sm:$0xff]
    %v2129 = vld [vmem:[%s2126 + $0x10] sm:$0xff]
    %v2130 = vld [vmem:[%s2126 + $0x18] sm:$0xff]
    %v2131 = vld [vmem:[%s2126 + $0x20] sm:$0xff]
    %v2132 = vld [vmem:[%s2126 + $0x28] sm:$0xff]
    %v2133 = vld [vmem:[%s2126 + $0x30] sm:$0xff]
    %v2134 = vld [vmem:[%s2126 + $0x38] sm:$0xff]
    %v2135 = vld [vmem:[%s2126 + $0x40] sm:$0xff]
    %v2136 = vld [vmem:[%s2126 + $0x48] sm:$0xff]
    %v2137 = vld [vmem:[%s2126 + $0x50] sm:$0xff]
    %v2138 = vld [vmem:[%s2126 + $0x58] sm:$0xff]
    %v2139 = vld [vmem:[%s2126 + $0x60] sm:$0xff]
    %v2140 = vld [vmem:[%s2126 + $0x68] sm:$0xff]
    %v2141 = vld [vmem:[%s2126 + $0x70] sm:$0xff]
    %v2142 = vld [vmem:[%s2126 + $0x78] sm:$0xff]
    %v2143 = vld [vmem:[%s2126 + $0x80] sm:$0xff]
    %v2144 = vld [vmem:[%s2126 + $0x88] sm:$0xff]
    %v2145 = vld [vmem:[%s2126 + $0x90] sm:$0xff]
    %v2146 = vld [vmem:[%s2126 + $0x98] sm:$0xff]
    %v2147 = vld [vmem:[%s2126 + $0xa0] sm:$0xff]
    %v2148 = vld [vmem:[%s2126 + $0xa8] sm:$0xff]
    %v2149 = vld [vmem:[%s2126 + $0xb0] sm:$0xff]
    %v2150 = vld [vmem:[%s2126 + $0xb8] sm:$0xff]
    %v2152 = vsel %vm1994, %v2124, 0
    %2154 = vmatpush.msra.mxu0 %v2142
    %2155 = vmatpush.msra.mxu0 %v2141
    %2156 = vmatpush.msra.mxu0 %v2140
    %2157 = vmatpush.msra.mxu0 %v2139
    %2158 = vmatpush.msra.mxu0 %v2138
    %2159 = vmatpush.msra.mxu0 %v2137
    %2160 = vmatpush.msra.mxu0 %v2136
    %2161 = vmatpush.msra.mxu0 %v2135
    %2162 = vmatpush.msra.mxu0 %v2134
    %2163 = vmatpush.msra.mxu0 %v2133
    %2164 = vmatpush.msra.mxu0 %v2132
    %2165 = vmatpush.msra.mxu0 %v2131
    %2166 = vmatpush.msra.mxu0 %v2130
    %2167 = vmatpush.msra.mxu0 %v2129
    %2168 = vmatpush.msra.mxu0 %v2128
    %2169 = vmatpush.msra.mxu0 %v2127
    %2170 = vmatmul.f32.gmra.mxu0 %v2104
    %v2171 = vpop.f32.mrf.mxu0
    %v2172 = vadd.f32 0.0, %v2171
    %2173 = vdwg.mxu0
    %2174 = vmatpush.msra.mxu0 0.0
    %2175 = vmatpush.msra.mxu0 0.0
    %2176 = vmatpush.msra.mxu0 0.0
    %2177 = vmatpush.msra.mxu0 0.0
    %2178 = vmatpush.msra.mxu0 0.0
    %2179 = vmatpush.msra.mxu0 0.0
    %2180 = vmatpush.msra.mxu0 0.0
    %2181 = vmatpush.msra.mxu0 0.0
    %2182 = vmatpush.msra.mxu0 %v2150
    %2183 = vmatpush.msra.mxu0 %v2149
    %2184 = vmatpush.msra.mxu0 %v2148
    %2185 = vmatpush.msra.mxu0 %v2147
    %2186 = vmatpush.msra.mxu0 %v2146
    %2187 = vmatpush.msra.mxu0 %v2145
    %2188 = vmatpush.msra.mxu0 %v2144
    %2189 = vmatpush.msra.mxu0 %v2143
    %2190 = vmatmul.f32.gmra.mxu0 %v2152
    %v2191 = vpop.f32.mrf.mxu0
    %v2192 = vadd.f32 %v2172, %v2191
    %2193 = vdwg.mxu0
    %v2194 = vadd.f32 %v2079, %v2192
    %v2195 = vld [vmem:[%s13] sm:$0x1]
    %v2197 = vperm.slane %v2195, 0
    %v2199 = vadd.f32 %v2194, %v2197
    %2200 = vmatpush.msra.mxu0 0.0
    %2201 = vmatpush.msra.mxu0 0.0
    %2202 = vmatpush.msra.mxu0 0.0
    %2203 = vmatpush.msra.mxu0 0.0
    %2204 = vmatpush.msra.mxu0 0.0
    %2205 = vmatpush.msra.mxu0 0.0
    %2206 = vmatpush.msra.mxu0 0.0
    %2207 = vmatpush.msra.mxu0 %v89
    %2208 = vmatpush.msra.mxu0 %v88
    %2209 = vmatpush.msra.mxu0 %v87
    %2210 = vmatpush.msra.mxu0 %v86
    %2211 = vmatpush.msra.mxu0 %v85
    %2212 = vmatpush.msra.mxu0 %v84
    %2213 = vmatpush.msra.mxu0 %v83
    %2214 = vmatpush.msra.mxu0 %v82
    %2215 = vmatpush.msra.mxu0 %v81
    %2216 = vmatmul.f32.gmra.mxu0 %v94
    %v2217 = vpop.f32.mrf.mxu0
    %v2218 = vadd.f32 0.0, %v2217
    %2219 = vmatmul.f32.gmra.mxu0 %v97
    %v2220 = vpop.f32.mrf.mxu0
    %v2221 = vadd.f32 0.0, %v2220
    %2222 = vdwg.mxu0
    %v2223 = vld [vmem:[%s8] sm:$0xff]
    %v2224 = vld [vmem:[%s8 + $0x8] sm:$0xff]
    %v2225 = vld [vmem:[%s8 + $0x10] sm:$0xff]
    %v2226 = vld [vmem:[%s8 + $0x18] sm:$0xff]
    %v2227 = vld [vmem:[%s8 + $0x20] sm:$0xff]
    %v2228 = vld [vmem:[%s8 + $0x28] sm:$0xff]
    %v2229 = vld [vmem:[%s8 + $0x30] sm:$0xff]
    %v2230 = vld [vmem:[%s8 + $0x38] sm:$0xff]
    %v2231 = vld [vmem:[%s8 + $0x40] sm:$0xff]
    %v2232 = vld [vmem:[%s8 + $0x48] sm:$0xff]
    %v2233 = vld [vmem:[%s8 + $0x50] sm:$0xff]
    %v2234 = vld [vmem:[%s8 + $0x58] sm:$0xff]
    %v2235 = vld [vmem:[%s8 + $0x60] sm:$0xff]
    %v2236 = vld [vmem:[%s8 + $0x68] sm:$0xff]
    %v2237 = vld [vmem:[%s8 + $0x70] sm:$0xff]
    %v2238 = vld [vmem:[%s8 + $0x78] sm:$0xff]
    %v2239 = vld [vmem:[%s8 + $0x80] sm:$0xff]
    %v2240 = vld [vmem:[%s8 + $0x88] sm:$0xff]
    %v2241 = vld [vmem:[%s8 + $0x90] sm:$0xff]
    %v2242 = vld [vmem:[%s8 + $0x98] sm:$0xff]
    %v2243 = vld [vmem:[%s8 + $0xa0] sm:$0xff]
    %v2244 = vld [vmem:[%s8 + $0xa8] sm:$0xff]
    %v2245 = vld [vmem:[%s8 + $0xb0] sm:$0xff]
    %v2246 = vld [vmem:[%s8 + $0xb8] sm:$0xff]
    %v2247 = vld [vmem:[%s8 + $0xc0] sm:$0xff]
    %v2248 = vld [vmem:[%s8 + $0xc8] sm:$0xff]
    %v2249 = vld [vmem:[%s8 + $0xd0] sm:$0xf]
    %v2250 = vld [vmem:[%s8 + $0xd8] sm:$0xf]
    %2251 = vmatpush.msra.mxu0 0.0
    %2252 = vmatpush.msra.mxu0 0.0
    %2253 = vmatpush.msra.mxu0 0.0
    %2254 = vmatpush.msra.mxu0 0.0
    %2255 = vmatpush.msra.mxu0 0.0
    %2256 = vmatpush.msra.mxu0 0.0
    %2257 = vmatpush.msra.mxu0 0.0
    %2258 = vmatpush.msra.mxu0 %v89
    %2259 = vmatpush.msra.mxu0 %v88
    %2260 = vmatpush.msra.mxu0 %v87
    %2261 = vmatpush.msra.mxu0 %v86
    %2262 = vmatpush.msra.mxu0 %v85
    %2263 = vmatpush.msra.mxu0 %v84
    %2264 = vmatpush.msra.mxu0 %v83
    %2265 = vmatpush.msra.mxu0 %v82
    %2266 = vmatpush.msra.mxu0 %v81
    %2267 = vmatmul.f32.gmra.mxu0 %v154
    %v2268 = vpop.f32.mrf.mxu0
    %v2269 = vadd.f32 0.0, %v2268
    %2270 = vmatmul.f32.gmra.mxu0 %v157
    %v2271 = vpop.f32.mrf.mxu0
    %v2272 = vadd.f32 0.0, %v2271
    %2273 = vdwg.mxu0
    %s2274 = scalar_lea.vmem %s8, 224
    %v2275 = vld [vmem:[%s2274] sm:$0xff]
    %v2276 = vld [vmem:[%s2274 + $0x8] sm:$0xff]
    %v2277 = vld [vmem:[%s2274 + $0x10] sm:$0xff]
    %v2278 = vld [vmem:[%s2274 + $0x18] sm:$0xff]
    %v2279 = vld [vmem:[%s2274 + $0x20] sm:$0xff]
    %v2280 = vld [vmem:[%s2274 + $0x28] sm:$0xff]
    %v2281 = vld [vmem:[%s2274 + $0x30] sm:$0xff]
    %v2282 = vld [vmem:[%s2274 + $0x38] sm:$0xff]
    %v2283 = vld [vmem:[%s2274 + $0x40] sm:$0xff]
    %v2284 = vld [vmem:[%s2274 + $0x48] sm:$0xff]
    %v2285 = vld [vmem:[%s2274 + $0x50] sm:$0xff]
    %v2286 = vld [vmem:[%s2274 + $0x58] sm:$0xff]
    %v2287 = vld [vmem:[%s2274 + $0x60] sm:$0xff]
    %v2288 = vld [vmem:[%s2274 + $0x68] sm:$0xff]
    %v2289 = vld [vmem:[%s2274 + $0x70] sm:$0xff]
    %v2290 = vld [vmem:[%s2274 + $0x78] sm:$0xff]
    %v2291 = vld [vmem:[%s2274 + $0x80] sm:$0xff]
    %v2292 = vld [vmem:[%s2274 + $0x88] sm:$0xff]
    %v2293 = vld [vmem:[%s2274 + $0x90] sm:$0xff]
    %v2294 = vld [vmem:[%s2274 + $0x98] sm:$0xff]
    %v2295 = vld [vmem:[%s2274 + $0xa0] sm:$0xff]
    %v2296 = vld [vmem:[%s2274 + $0xa8] sm:$0xff]
    %v2297 = vld [vmem:[%s2274 + $0xb0] sm:$0xff]
    %v2298 = vld [vmem:[%s2274 + $0xb8] sm:$0xff]
    %v2299 = vld [vmem:[%s2274 + $0xc0] sm:$0xff]
    %v2300 = vld [vmem:[%s2274 + $0xc8] sm:$0xff]
    %v2301 = vld [vmem:[%s2274 + $0xd0] sm:$0xf]
    %v2302 = vld [vmem:[%s2274 + $0xd8] sm:$0xf]
    %v2304 = vsel %vm211, %v2269, 0
    %v2307 = vsel %vm211, %v2272, 0
    %v2310 = vsel %vm218, %v2301, 0
    %v2313 = vsel %vm218, %v2302, 0
    %2315 = vmatpush.msra.mxu0 0.0
    %2316 = vmatpush.msra.mxu0 0.0
    %2317 = vmatpush.msra.mxu0 %v2310
    %2318 = vmatpush.msra.mxu0 %v2299
    %2319 = vmatpush.msra.mxu0 %v2297
    %2320 = vmatpush.msra.mxu0 %v2295
    %2321 = vmatpush.msra.mxu0 %v2293
    %2322 = vmatpush.msra.mxu0 %v2291
    %2323 = vmatpush.msra.mxu0 %v2289
    %2324 = vmatpush.msra.mxu0 %v2287
    %2325 = vmatpush.msra.mxu0 %v2285
    %2326 = vmatpush.msra.mxu0 %v2283
    %2327 = vmatpush.msra.mxu0 %v2281
    %2328 = vmatpush.msra.mxu0 %v2279
    %2329 = vmatpush.msra.mxu0 %v2277
    %2330 = vmatpush.msra.mxu0 %v2275
    %2331 = vmatmul.f32.gmra.mxu0 %v2304
    %v2332 = vpop.f32.mrf.mxu0
    %v2333 = vadd.f32 0.0, %v2332
    %2334 = vmatmul.f32.gmra.mxu0 %v2307
    %v2335 = vpop.f32.mrf.mxu0
    %v2336 = vadd.f32 0.0, %v2335
    %2337 = vdwg.mxu0
    %2338 = vmatpush.msra.mxu0 0.0
    %2339 = vmatpush.msra.mxu0 0.0
    %2340 = vmatpush.msra.mxu0 %v2313
    %2341 = vmatpush.msra.mxu0 %v2300
    %2342 = vmatpush.msra.mxu0 %v2298
    %2343 = vmatpush.msra.mxu0 %v2296
    %2344 = vmatpush.msra.mxu0 %v2294
    %2345 = vmatpush.msra.mxu0 %v2292
    %2346 = vmatpush.msra.mxu0 %v2290
    %2347 = vmatpush.msra.mxu0 %v2288
    %2348 = vmatpush.msra.mxu0 %v2286
    %2349 = vmatpush.msra.mxu0 %v2284
    %2350 = vmatpush.msra.mxu0 %v2282
    %2351 = vmatpush.msra.mxu0 %v2280
    %2352 = vmatpush.msra.mxu0 %v2278
    %2353 = vmatpush.msra.mxu0 %v2276
    %2354 = vmatmul.f32.gmra.mxu0 %v2304
    %v2355 = vpop.f32.mrf.mxu0
    %v2356 = vadd.f32 0.0, %v2355
    %2357 = vmatmul.f32.gmra.mxu0 %v2307
    %v2358 = vpop.f32.mrf.mxu0
    %v2359 = vadd.f32 0.0, %v2358
    %2360 = vdwg.mxu0
    %v2362 = vsel %vm211, %v2218, 0
    %v2365 = vsel %vm211, %v2221, 0
    %v2368 = vsel %vm218, %v2249, 0
    %v2371 = vsel %vm218, %v2250, 0
    %2373 = vmatpush.msra.mxu0 0.0
    %2374 = vmatpush.msra.mxu0 0.0
    %2375 = vmatpush.msra.mxu0 %v2368
    %2376 = vmatpush.msra.mxu0 %v2247
    %2377 = vmatpush.msra.mxu0 %v2245
    %2378 = vmatpush.msra.mxu0 %v2243
    %2379 = vmatpush.msra.mxu0 %v2241
    %2380 = vmatpush.msra.mxu0 %v2239
    %2381 = vmatpush.msra.mxu0 %v2237
    %2382 = vmatpush.msra.mxu0 %v2235
    %2383 = vmatpush.msra.mxu0 %v2233
    %2384 = vmatpush.msra.mxu0 %v2231
    %2385 = vmatpush.msra.mxu0 %v2229
    %2386 = vmatpush.msra.mxu0 %v2227
    %2387 = vmatpush.msra.mxu0 %v2225
    %2388 = vmatpush.msra.mxu0 %v2223
    %2389 = vmatmul.f32.gmra.mxu0 %v2362
    %v2390 = vpop.f32.mrf.mxu0
    %v2391 = vadd.f32 %v2333, %v2390
    %2392 = vmatmul.f32.gmra.mxu0 %v2365
    %v2393 = vpop.f32.mrf.mxu0
    %v2394 = vadd.f32 %v2336, %v2393
    %2395 = vdwg.mxu0
    %2396 = vmatpush.msra.mxu0 0.0
    %2397 = vmatpush.msra.mxu0 0.0
    %2398 = vmatpush.msra.mxu0 %v2371
    %2399 = vmatpush.msra.mxu0 %v2248
    %2400 = vmatpush.msra.mxu0 %v2246
    %2401 = vmatpush.msra.mxu0 %v2244
    %2402 = vmatpush.msra.mxu0 %v2242
    %2403 = vmatpush.msra.mxu0 %v2240
    %2404 = vmatpush.msra.mxu0 %v2238
    %2405 = vmatpush.msra.mxu0 %v2236
    %2406 = vmatpush.msra.mxu0 %v2234
    %2407 = vmatpush.msra.mxu0 %v2232
    %2408 = vmatpush.msra.mxu0 %v2230
    %2409 = vmatpush.msra.mxu0 %v2228
    %2410 = vmatpush.msra.mxu0 %v2226
    %2411 = vmatpush.msra.mxu0 %v2224
    %2412 = vmatmul.f32.gmra.mxu0 %v2362
    %v2413 = vpop.f32.mrf.mxu0
    %v2414 = vadd.f32 %v2356, %v2413
    %2415 = vmatmul.f32.gmra.mxu0 %v2365
    %v2416 = vpop.f32.mrf.mxu0
    %v2417 = vadd.f32 %v2359, %v2416
    %2418 = vdwg.mxu0
    %2419 = vmatpush.msra.mxu0 0.0
    %2420 = vmatpush.msra.mxu0 0.0
    %2421 = vmatpush.msra.mxu0 0.0
    %2422 = vmatpush.msra.mxu0 0.0
    %2423 = vmatpush.msra.mxu0 0.0
    %2424 = vmatpush.msra.mxu0 0.0
    %2425 = vmatpush.msra.mxu0 0.0
    %2426 = vmatpush.msra.mxu0 %v89
    %2427 = vmatpush.msra.mxu0 %v88
    %2428 = vmatpush.msra.mxu0 %v87
    %2429 = vmatpush.msra.mxu0 %v86
    %2430 = vmatpush.msra.mxu0 %v85
    %2431 = vmatpush.msra.mxu0 %v84
    %2432 = vmatpush.msra.mxu0 %v83
    %2433 = vmatpush.msra.mxu0 %v82
    %2434 = vmatpush.msra.mxu0 %v81
    %2435 = vmatmul.f32.gmra.mxu0 %v333
    %v2436 = vpop.f32.mrf.mxu0
    %v2437 = vadd.f32 0.0, %v2436
    %2438 = vmatmul.f32.gmra.mxu0 %v336
    %v2439 = vpop.f32.mrf.mxu0
    %v2440 = vadd.f32 0.0, %v2439
    %2441 = vdwg.mxu0
    %s2442 = scalar_lea.vmem %s8, 448
    %v2443 = vld [vmem:[%s2442] sm:$0xff]
    %v2444 = vld [vmem:[%s2442 + $0x8] sm:$0xff]
    %v2445 = vld [vmem:[%s2442 + $0x10] sm:$0xff]
    %v2446 = vld [vmem:[%s2442 + $0x18] sm:$0xff]
    %v2447 = vld [vmem:[%s2442 + $0x20] sm:$0xff]
    %v2448 = vld [vmem:[%s2442 + $0x28] sm:$0xff]
    %v2449 = vld [vmem:[%s2442 + $0x30] sm:$0xff]
    %v2450 = vld [vmem:[%s2442 + $0x38] sm:$0xff]
    %v2451 = vld [vmem:[%s2442 + $0x40] sm:$0xff]
    %v2452 = vld [vmem:[%s2442 + $0x48] sm:$0xff]
    %v2453 = vld [vmem:[%s2442 + $0x50] sm:$0xff]
    %v2454 = vld [vmem:[%s2442 + $0x58] sm:$0xff]
    %v2455 = vld [vmem:[%s2442 + $0x60] sm:$0xff]
    %v2456 = vld [vmem:[%s2442 + $0x68] sm:$0xff]
    %v2457 = vld [vmem:[%s2442 + $0x70] sm:$0xff]
    %v2458 = vld [vmem:[%s2442 + $0x78] sm:$0xff]
    %v2459 = vld [vmem:[%s2442 + $0x80] sm:$0xff]
    %v2460 = vld [vmem:[%s2442 + $0x88] sm:$0xff]
    %v2461 = vld [vmem:[%s2442 + $0x90] sm:$0xff]
    %v2462 = vld [vmem:[%s2442 + $0x98] sm:$0xff]
    %v2463 = vld [vmem:[%s2442 + $0xa0] sm:$0xff]
    %v2464 = vld [vmem:[%s2442 + $0xa8] sm:$0xff]
    %v2465 = vld [vmem:[%s2442 + $0xb0] sm:$0xff]
    %v2466 = vld [vmem:[%s2442 + $0xb8] sm:$0xff]
    %v2467 = vld [vmem:[%s2442 + $0xc0] sm:$0xff]
    %v2468 = vld [vmem:[%s2442 + $0xc8] sm:$0xff]
    %v2469 = vld [vmem:[%s2442 + $0xd0] sm:$0xf]
    %v2470 = vld [vmem:[%s2442 + $0xd8] sm:$0xf]
    %v2472 = vsel %vm211, %v2437, 0
    %v2475 = vsel %vm211, %v2440, 0
    %v2478 = vsel %vm218, %v2469, 0
    %v2481 = vsel %vm218, %v2470, 0
    %2483 = vmatpush.msra.mxu0 0.0
    %2484 = vmatpush.msra.mxu0 0.0
    %2485 = vmatpush.msra.mxu0 %v2478
    %2486 = vmatpush.msra.mxu0 %v2467
    %2487 = vmatpush.msra.mxu0 %v2465
    %2488 = vmatpush.msra.mxu0 %v2463
    %2489 = vmatpush.msra.mxu0 %v2461
    %2490 = vmatpush.msra.mxu0 %v2459
    %2491 = vmatpush.msra.mxu0 %v2457
    %2492 = vmatpush.msra.mxu0 %v2455
    %2493 = vmatpush.msra.mxu0 %v2453
    %2494 = vmatpush.msra.mxu0 %v2451
    %2495 = vmatpush.msra.mxu0 %v2449
    %2496 = vmatpush.msra.mxu0 %v2447
    %2497 = vmatpush.msra.mxu0 %v2445
    %2498 = vmatpush.msra.mxu0 %v2443
    %2499 = vmatmul.f32.gmra.mxu0 %v2472
    %v2500 = vpop.f32.mrf.mxu0
    %v2501 = vadd.f32 0.0, %v2500
    %2502 = vmatmul.f32.gmra.mxu0 %v2475
    %v2503 = vpop.f32.mrf.mxu0
    %v2504 = vadd.f32 0.0, %v2503
    %2505 = vdwg.mxu0
    %2506 = vmatpush.msra.mxu0 0.0
    %2507 = vmatpush.msra.mxu0 0.0
    %2508 = vmatpush.msra.mxu0 %v2481
    %2509 = vmatpush.msra.mxu0 %v2468
    %2510 = vmatpush.msra.mxu0 %v2466
    %2511 = vmatpush.msra.mxu0 %v2464
    %2512 = vmatpush.msra.mxu0 %v2462
    %2513 = vmatpush.msra.mxu0 %v2460
    %2514 = vmatpush.msra.mxu0 %v2458
    %2515 = vmatpush.msra.mxu0 %v2456
    %2516 = vmatpush.msra.mxu0 %v2454
    %2517 = vmatpush.msra.mxu0 %v2452
    %2518 = vmatpush.msra.mxu0 %v2450
    %2519 = vmatpush.msra.mxu0 %v2448
    %2520 = vmatpush.msra.mxu0 %v2446
    %2521 = vmatpush.msra.mxu0 %v2444
    %2522 = vmatmul.f32.gmra.mxu0 %v2472
    %v2523 = vpop.f32.mrf.mxu0
    %v2524 = vadd.f32 0.0, %v2523
    %2525 = vmatmul.f32.gmra.mxu0 %v2475
    %v2526 = vpop.f32.mrf.mxu0
    %v2527 = vadd.f32 0.0, %v2526
    %2528 = vdwg.mxu0
    %v2529 = vadd.f32 %v2391, %v2501
    %v2530 = vadd.f32 %v2414, %v2524
    %v2531 = vadd.f32 %v2394, %v2504
    %v2532 = vadd.f32 %v2417, %v2527
    %2533 = vmatpush.msra.mxu0 0.0
    %2534 = vmatpush.msra.mxu0 0.0
    %2535 = vmatpush.msra.mxu0 0.0
    %2536 = vmatpush.msra.mxu0 0.0
    %2537 = vmatpush.msra.mxu0 0.0
    %2538 = vmatpush.msra.mxu0 0.0
    %2539 = vmatpush.msra.mxu0 0.0
    %2540 = vmatpush.msra.mxu0 %v89
    %2541 = vmatpush.msra.mxu0 %v88
    %2542 = vmatpush.msra.mxu0 %v87
    %2543 = vmatpush.msra.mxu0 %v86
    %2544 = vmatpush.msra.mxu0 %v85
    %2545 = vmatpush.msra.mxu0 %v84
    %2546 = vmatpush.msra.mxu0 %v83
    %2547 = vmatpush.msra.mxu0 %v82
    %2548 = vmatpush.msra.mxu0 %v81
    %2549 = vmatmul.f32.gmra.mxu0 %v456
    %v2550 = vpop.f32.mrf.mxu0
    %v2551 = vadd.f32 0.0, %v2550
    %2552 = vmatmul.f32.gmra.mxu0 %v459
    %v2553 = vpop.f32.mrf.mxu0
    %v2554 = vadd.f32 0.0, %v2553
    %2555 = vdwg.mxu0
    %s2556 = scalar_lea.vmem %s8, 672
    %v2557 = vld [vmem:[%s2556] sm:$0xff]
    %v2558 = vld [vmem:[%s2556 + $0x8] sm:$0xff]
    %v2559 = vld [vmem:[%s2556 + $0x10] sm:$0xff]
    %v2560 = vld [vmem:[%s2556 + $0x18] sm:$0xff]
    %v2561 = vld [vmem:[%s2556 + $0x20] sm:$0xff]
    %v2562 = vld [vmem:[%s2556 + $0x28] sm:$0xff]
    %v2563 = vld [vmem:[%s2556 + $0x30] sm:$0xff]
    %v2564 = vld [vmem:[%s2556 + $0x38] sm:$0xff]
    %v2565 = vld [vmem:[%s2556 + $0x40] sm:$0xff]
    %v2566 = vld [vmem:[%s2556 + $0x48] sm:$0xff]
    %v2567 = vld [vmem:[%s2556 + $0x50] sm:$0xff]
    %v2568 = vld [vmem:[%s2556 + $0x58] sm:$0xff]
    %v2569 = vld [vmem:[%s2556 + $0x60] sm:$0xff]
    %v2570 = vld [vmem:[%s2556 + $0x68] sm:$0xff]
    %v2571 = vld [vmem:[%s2556 + $0x70] sm:$0xff]
    %v2572 = vld [vmem:[%s2556 + $0x78] sm:$0xff]
    %v2573 = vld [vmem:[%s2556 + $0x80] sm:$0xff]
    %v2574 = vld [vmem:[%s2556 + $0x88] sm:$0xff]
    %v2575 = vld [vmem:[%s2556 + $0x90] sm:$0xff]
    %v2576 = vld [vmem:[%s2556 + $0x98] sm:$0xff]
    %v2577 = vld [vmem:[%s2556 + $0xa0] sm:$0xff]
    %v2578 = vld [vmem:[%s2556 + $0xa8] sm:$0xff]
    %v2579 = vld [vmem:[%s2556 + $0xb0] sm:$0xff]
    %v2580 = vld [vmem:[%s2556 + $0xb8] sm:$0xff]
    %v2581 = vld [vmem:[%s2556 + $0xc0] sm:$0xff]
    %v2582 = vld [vmem:[%s2556 + $0xc8] sm:$0xff]
    %v2583 = vld [vmem:[%s2556 + $0xd0] sm:$0xf]
    %v2584 = vld [vmem:[%s2556 + $0xd8] sm:$0xf]
    %v2586 = vsel %vm211, %v2551, 0
    %v2589 = vsel %vm211, %v2554, 0
    %v2592 = vsel %vm218, %v2583, 0
    %v2595 = vsel %vm218, %v2584, 0
    %2597 = vmatpush.msra.mxu0 0.0
    %2598 = vmatpush.msra.mxu0 0.0
    %2599 = vmatpush.msra.mxu0 %v2592
    %2600 = vmatpush.msra.mxu0 %v2581
    %2601 = vmatpush.msra.mxu0 %v2579
    %2602 = vmatpush.msra.mxu0 %v2577
    %2603 = vmatpush.msra.mxu0 %v2575
    %2604 = vmatpush.msra.mxu0 %v2573
    %2605 = vmatpush.msra.mxu0 %v2571
    %2606 = vmatpush.msra.mxu0 %v2569
    %2607 = vmatpush.msra.mxu0 %v2567
    %2608 = vmatpush.msra.mxu0 %v2565
    %2609 = vmatpush.msra.mxu0 %v2563
    %2610 = vmatpush.msra.mxu0 %v2561
    %2611 = vmatpush.msra.mxu0 %v2559
    %2612 = vmatpush.msra.mxu0 %v2557
    %2613 = vmatmul.f32.gmra.mxu0 %v2586
    %v2614 = vpop.f32.mrf.mxu0
    %v2615 = vadd.f32 0.0, %v2614
    %2616 = vmatmul.f32.gmra.mxu0 %v2589
    %v2617 = vpop.f32.mrf.mxu0
    %v2618 = vadd.f32 0.0, %v2617
    %2619 = vdwg.mxu0
    %2620 = vmatpush.msra.mxu0 0.0
    %2621 = vmatpush.msra.mxu0 0.0
    %2622 = vmatpush.msra.mxu0 %v2595
    %2623 = vmatpush.msra.mxu0 %v2582
    %2624 = vmatpush.msra.mxu0 %v2580
    %2625 = vmatpush.msra.mxu0 %v2578
    %2626 = vmatpush.msra.mxu0 %v2576
    %2627 = vmatpush.msra.mxu0 %v2574
    %2628 = vmatpush.msra.mxu0 %v2572
    %2629 = vmatpush.msra.mxu0 %v2570
    %2630 = vmatpush.msra.mxu0 %v2568
    %2631 = vmatpush.msra.mxu0 %v2566
    %2632 = vmatpush.msra.mxu0 %v2564
    %2633 = vmatpush.msra.mxu0 %v2562
    %2634 = vmatpush.msra.mxu0 %v2560
    %2635 = vmatpush.msra.mxu0 %v2558
    %2636 = vmatmul.f32.gmra.mxu0 %v2586
    %v2637 = vpop.f32.mrf.mxu0
    %v2638 = vadd.f32 0.0, %v2637
    %2639 = vmatmul.f32.gmra.mxu0 %v2589
    %v2640 = vpop.f32.mrf.mxu0
    %v2641 = vadd.f32 0.0, %v2640
    %2642 = vdwg.mxu0
    %v2643 = vadd.f32 %v2529, %v2615
    %v2644 = vadd.f32 %v2530, %v2638
    %v2645 = vadd.f32 %v2531, %v2618
    %v2646 = vadd.f32 %v2532, %v2641
    %2647 = vmatpush.msra.mxu0 0.0
    %2648 = vmatpush.msra.mxu0 0.0
    %2649 = vmatpush.msra.mxu0 0.0
    %2650 = vmatpush.msra.mxu0 0.0
    %2651 = vmatpush.msra.mxu0 0.0
    %2652 = vmatpush.msra.mxu0 0.0
    %2653 = vmatpush.msra.mxu0 0.0
    %2654 = vmatpush.msra.mxu0 %v89
    %2655 = vmatpush.msra.mxu0 %v88
    %2656 = vmatpush.msra.mxu0 %v87
    %2657 = vmatpush.msra.mxu0 %v86
    %2658 = vmatpush.msra.mxu0 %v85
    %2659 = vmatpush.msra.mxu0 %v84
    %2660 = vmatpush.msra.mxu0 %v83
    %2661 = vmatpush.msra.mxu0 %v82
    %2662 = vmatpush.msra.mxu0 %v81
    %2663 = vmatmul.f32.gmra.mxu0 %v579
    %v2664 = vpop.f32.mrf.mxu0
    %v2665 = vadd.f32 0.0, %v2664
    %2666 = vmatmul.f32.gmra.mxu0 %v582
    %v2667 = vpop.f32.mrf.mxu0
    %v2668 = vadd.f32 0.0, %v2667
    %2669 = vdwg.mxu0
    %s2670 = scalar_lea.vmem %s8, 896
    %v2671 = vld [vmem:[%s2670] sm:$0xff]
    %v2672 = vld [vmem:[%s2670 + $0x8] sm:$0xff]
    %v2673 = vld [vmem:[%s2670 + $0x10] sm:$0xff]
    %v2674 = vld [vmem:[%s2670 + $0x18] sm:$0xff]
    %v2675 = vld [vmem:[%s2670 + $0x20] sm:$0xff]
    %v2676 = vld [vmem:[%s2670 + $0x28] sm:$0xff]
    %v2677 = vld [vmem:[%s2670 + $0x30] sm:$0xff]
    %v2678 = vld [vmem:[%s2670 + $0x38] sm:$0xff]
    %v2679 = vld [vmem:[%s2670 + $0x40] sm:$0xff]
    %v2680 = vld [vmem:[%s2670 + $0x48] sm:$0xff]
    %v2681 = vld [vmem:[%s2670 + $0x50] sm:$0xff]
    %v2682 = vld [vmem:[%s2670 + $0x58] sm:$0xff]
    %v2683 = vld [vmem:[%s2670 + $0x60] sm:$0xff]
    %v2684 = vld [vmem:[%s2670 + $0x68] sm:$0xff]
    %v2685 = vld [vmem:[%s2670 + $0x70] sm:$0xff]
    %v2686 = vld [vmem:[%s2670 + $0x78] sm:$0xff]
    %v2687 = vld [vmem:[%s2670 + $0x80] sm:$0xff]
    %v2688 = vld [vmem:[%s2670 + $0x88] sm:$0xff]
    %v2689 = vld [vmem:[%s2670 + $0x90] sm:$0xff]
    %v2690 = vld [vmem:[%s2670 + $0x98] sm:$0xff]
    %v2691 = vld [vmem:[%s2670 + $0xa0] sm:$0xff]
    %v2692 = vld [vmem:[%s2670 + $0xa8] sm:$0xff]
    %v2693 = vld [vmem:[%s2670 + $0xb0] sm:$0xff]
    %v2694 = vld [vmem:[%s2670 + $0xb8] sm:$0xff]
    %v2695 = vld [vmem:[%s2670 + $0xc0] sm:$0xff]
    %v2696 = vld [vmem:[%s2670 + $0xc8] sm:$0xff]
    %v2697 = vld [vmem:[%s2670 + $0xd0] sm:$0xf]
    %v2698 = vld [vmem:[%s2670 + $0xd8] sm:$0xf]
    %v2700 = vsel %vm211, %v2665, 0
    %v2703 = vsel %vm211, %v2668, 0
    %v2706 = vsel %vm218, %v2697, 0
    %v2709 = vsel %vm218, %v2698, 0
    %2711 = vmatpush.msra.mxu0 0.0
    %2712 = vmatpush.msra.mxu0 0.0
    %2713 = vmatpush.msra.mxu0 %v2706
    %2714 = vmatpush.msra.mxu0 %v2695
    %2715 = vmatpush.msra.mxu0 %v2693
    %2716 = vmatpush.msra.mxu0 %v2691
    %2717 = vmatpush.msra.mxu0 %v2689
    %2718 = vmatpush.msra.mxu0 %v2687
    %2719 = vmatpush.msra.mxu0 %v2685
    %2720 = vmatpush.msra.mxu0 %v2683
    %2721 = vmatpush.msra.mxu0 %v2681
    %2722 = vmatpush.msra.mxu0 %v2679
    %2723 = vmatpush.msra.mxu0 %v2677
    %2724 = vmatpush.msra.mxu0 %v2675
    %2725 = vmatpush.msra.mxu0 %v2673
    %2726 = vmatpush.msra.mxu0 %v2671
    %2727 = vmatmul.f32.gmra.mxu0 %v2700
    %v2728 = vpop.f32.mrf.mxu0
    %v2729 = vadd.f32 0.0, %v2728
    %2730 = vmatmul.f32.gmra.mxu0 %v2703
    %v2731 = vpop.f32.mrf.mxu0
    %v2732 = vadd.f32 0.0, %v2731
    %2733 = vdwg.mxu0
    %2734 = vmatpush.msra.mxu0 0.0
    %2735 = vmatpush.msra.mxu0 0.0
    %2736 = vmatpush.msra.mxu0 %v2709
    %2737 = vmatpush.msra.mxu0 %v2696
    %2738 = vmatpush.msra.mxu0 %v2694
    %2739 = vmatpush.msra.mxu0 %v2692
    %2740 = vmatpush.msra.mxu0 %v2690
    %2741 = vmatpush.msra.mxu0 %v2688
    %2742 = vmatpush.msra.mxu0 %v2686
    %2743 = vmatpush.msra.mxu0 %v2684
    %2744 = vmatpush.msra.mxu0 %v2682
    %2745 = vmatpush.msra.mxu0 %v2680
    %2746 = vmatpush.msra.mxu0 %v2678
    %2747 = vmatpush.msra.mxu0 %v2676
    %2748 = vmatpush.msra.mxu0 %v2674
    %2749 = vmatpush.msra.mxu0 %v2672
    %2750 = vmatmul.f32.gmra.mxu0 %v2700
    %v2751 = vpop.f32.mrf.mxu0
    %v2752 = vadd.f32 0.0, %v2751
    %2753 = vmatmul.f32.gmra.mxu0 %v2703
    %v2754 = vpop.f32.mrf.mxu0
    %v2755 = vadd.f32 0.0, %v2754
    %2756 = vdwg.mxu0
    %v2757 = vadd.f32 %v2643, %v2729
    %v2758 = vadd.f32 %v2644, %v2752
    %v2759 = vadd.f32 %v2645, %v2732
    %v2760 = vadd.f32 %v2646, %v2755
    %2761 = vmatpush.msra.mxu0 0.0
    %2762 = vmatpush.msra.mxu0 0.0
    %2763 = vmatpush.msra.mxu0 0.0
    %2764 = vmatpush.msra.mxu0 0.0
    %2765 = vmatpush.msra.mxu0 0.0
    %2766 = vmatpush.msra.mxu0 0.0
    %2767 = vmatpush.msra.mxu0 0.0
    %2768 = vmatpush.msra.mxu0 %v89
    %2769 = vmatpush.msra.mxu0 %v88
    %2770 = vmatpush.msra.mxu0 %v87
    %2771 = vmatpush.msra.mxu0 %v86
    %2772 = vmatpush.msra.mxu0 %v85
    %2773 = vmatpush.msra.mxu0 %v84
    %2774 = vmatpush.msra.mxu0 %v83
    %2775 = vmatpush.msra.mxu0 %v82
    %2776 = vmatpush.msra.mxu0 %v81
    %2777 = vmatmul.f32.gmra.mxu0 %v702
    %v2778 = vpop.f32.mrf.mxu0
    %v2779 = vadd.f32 0.0, %v2778
    %2780 = vmatmul.f32.gmra.mxu0 %v705
    %v2781 = vpop.f32.mrf.mxu0
    %v2782 = vadd.f32 0.0, %v2781
    %2783 = vdwg.mxu0
    %s2784 = scalar_lea.vmem %s8, 1120
    %v2785 = vld [vmem:[%s2784] sm:$0xff]
    %v2786 = vld [vmem:[%s2784 + $0x8] sm:$0xff]
    %v2787 = vld [vmem:[%s2784 + $0x10] sm:$0xff]
    %v2788 = vld [vmem:[%s2784 + $0x18] sm:$0xff]
    %v2789 = vld [vmem:[%s2784 + $0x20] sm:$0xff]
    %v2790 = vld [vmem:[%s2784 + $0x28] sm:$0xff]
    %v2791 = vld [vmem:[%s2784 + $0x30] sm:$0xff]
    %v2792 = vld [vmem:[%s2784 + $0x38] sm:$0xff]
    %v2793 = vld [vmem:[%s2784 + $0x40] sm:$0xff]
    %v2794 = vld [vmem:[%s2784 + $0x48] sm:$0xff]
    %v2795 = vld [vmem:[%s2784 + $0x50] sm:$0xff]
    %v2796 = vld [vmem:[%s2784 + $0x58] sm:$0xff]
    %v2797 = vld [vmem:[%s2784 + $0x60] sm:$0xff]
    %v2798 = vld [vmem:[%s2784 + $0x68] sm:$0xff]
    %v2799 = vld [vmem:[%s2784 + $0x70] sm:$0xff]
    %v2800 = vld [vmem:[%s2784 + $0x78] sm:$0xff]
    %v2801 = vld [vmem:[%s2784 + $0x80] sm:$0xff]
    %v2802 = vld [vmem:[%s2784 + $0x88] sm:$0xff]
    %v2803 = vld [vmem:[%s2784 + $0x90] sm:$0xff]
    %v2804 = vld [vmem:[%s2784 + $0x98] sm:$0xff]
    %v2805 = vld [vmem:[%s2784 + $0xa0] sm:$0xff]
    %v2806 = vld [vmem:[%s2784 + $0xa8] sm:$0xff]
    %v2807 = vld [vmem:[%s2784 + $0xb0] sm:$0xff]
    %v2808 = vld [vmem:[%s2784 + $0xb8] sm:$0xff]
    %v2809 = vld [vmem:[%s2784 + $0xc0] sm:$0xff]
    %v2810 = vld [vmem:[%s2784 + $0xc8] sm:$0xff]
    %v2811 = vld [vmem:[%s2784 + $0xd0] sm:$0xf]
    %v2812 = vld [vmem:[%s2784 + $0xd8] sm:$0xf]
    %v2814 = vsel %vm211, %v2779, 0
    %v2817 = vsel %vm211, %v2782, 0
    %v2820 = vsel %vm218, %v2811, 0
    %v2823 = vsel %vm218, %v2812, 0
    %2825 = vmatpush.msra.mxu0 0.0
    %2826 = vmatpush.msra.mxu0 0.0
    %2827 = vmatpush.msra.mxu0 %v2820
    %2828 = vmatpush.msra.mxu0 %v2809
    %2829 = vmatpush.msra.mxu0 %v2807
    %2830 = vmatpush.msra.mxu0 %v2805
    %2831 = vmatpush.msra.mxu0 %v2803
    %2832 = vmatpush.msra.mxu0 %v2801
    %2833 = vmatpush.msra.mxu0 %v2799
    %2834 = vmatpush.msra.mxu0 %v2797
    %2835 = vmatpush.msra.mxu0 %v2795
    %2836 = vmatpush.msra.mxu0 %v2793
    %2837 = vmatpush.msra.mxu0 %v2791
    %2838 = vmatpush.msra.mxu0 %v2789
    %2839 = vmatpush.msra.mxu0 %v2787
    %2840 = vmatpush.msra.mxu0 %v2785
    %2841 = vmatmul.f32.gmra.mxu0 %v2814
    %v2842 = vpop.f32.mrf.mxu0
    %v2843 = vadd.f32 0.0, %v2842
    %2844 = vmatmul.f32.gmra.mxu0 %v2817
    %v2845 = vpop.f32.mrf.mxu0
    %v2846 = vadd.f32 0.0, %v2845
    %2847 = vdwg.mxu0
    %2848 = vmatpush.msra.mxu0 0.0
    %2849 = vmatpush.msra.mxu0 0.0
    %2850 = vmatpush.msra.mxu0 %v2823
    %2851 = vmatpush.msra.mxu0 %v2810
    %2852 = vmatpush.msra.mxu0 %v2808
    %2853 = vmatpush.msra.mxu0 %v2806
    %2854 = vmatpush.msra.mxu0 %v2804
    %2855 = vmatpush.msra.mxu0 %v2802
    %2856 = vmatpush.msra.mxu0 %v2800
    %2857 = vmatpush.msra.mxu0 %v2798
    %2858 = vmatpush.msra.mxu0 %v2796
    %2859 = vmatpush.msra.mxu0 %v2794
    %2860 = vmatpush.msra.mxu0 %v2792
    %2861 = vmatpush.msra.mxu0 %v2790
    %2862 = vmatpush.msra.mxu0 %v2788
    %2863 = vmatpush.msra.mxu0 %v2786
    %2864 = vmatmul.f32.gmra.mxu0 %v2814
    %v2865 = vpop.f32.mrf.mxu0
    %v2866 = vadd.f32 0.0, %v2865
    %2867 = vmatmul.f32.gmra.mxu0 %v2817
    %v2868 = vpop.f32.mrf.mxu0
    %v2869 = vadd.f32 0.0, %v2868
    %2870 = vdwg.mxu0
    %v2871 = vadd.f32 %v2757, %v2843
    %v2872 = vadd.f32 %v2758, %v2866
    %v2873 = vadd.f32 %v2759, %v2846
    %v2874 = vadd.f32 %v2760, %v2869
    %2875 = vmatpush.msra.mxu0 0.0
    %2876 = vmatpush.msra.mxu0 0.0
    %2877 = vmatpush.msra.mxu0 0.0
    %2878 = vmatpush.msra.mxu0 0.0
    %2879 = vmatpush.msra.mxu0 0.0
    %2880 = vmatpush.msra.mxu0 0.0
    %2881 = vmatpush.msra.mxu0 0.0
    %2882 = vmatpush.msra.mxu0 %v89
    %2883 = vmatpush.msra.mxu0 %v88
    %2884 = vmatpush.msra.mxu0 %v87
    %2885 = vmatpush.msra.mxu0 %v86
    %2886 = vmatpush.msra.mxu0 %v85
    %2887 = vmatpush.msra.mxu0 %v84
    %2888 = vmatpush.msra.mxu0 %v83
    %2889 = vmatpush.msra.mxu0 %v82
    %2890 = vmatpush.msra.mxu0 %v81
    %2891 = vmatmul.f32.gmra.mxu0 %v825
    %v2892 = vpop.f32.mrf.mxu0
    %v2893 = vadd.f32 0.0, %v2892
    %2894 = vmatmul.f32.gmra.mxu0 %v828
    %v2895 = vpop.f32.mrf.mxu0
    %v2896 = vadd.f32 0.0, %v2895
    %2897 = vdwg.mxu0
    %s2898 = scalar_lea.vmem %s8, 1344
    %v2899 = vld [vmem:[%s2898] sm:$0xff]
    %v2900 = vld [vmem:[%s2898 + $0x8] sm:$0xff]
    %v2901 = vld [vmem:[%s2898 + $0x10] sm:$0xff]
    %v2902 = vld [vmem:[%s2898 + $0x18] sm:$0xff]
    %v2903 = vld [vmem:[%s2898 + $0x20] sm:$0xff]
    %v2904 = vld [vmem:[%s2898 + $0x28] sm:$0xff]
    %v2905 = vld [vmem:[%s2898 + $0x30] sm:$0xff]
    %v2906 = vld [vmem:[%s2898 + $0x38] sm:$0xff]
    %v2907 = vld [vmem:[%s2898 + $0x40] sm:$0xff]
    %v2908 = vld [vmem:[%s2898 + $0x48] sm:$0xff]
    %v2909 = vld [vmem:[%s2898 + $0x50] sm:$0xff]
    %v2910 = vld [vmem:[%s2898 + $0x58] sm:$0xff]
    %v2911 = vld [vmem:[%s2898 + $0x60] sm:$0xff]
    %v2912 = vld [vmem:[%s2898 + $0x68] sm:$0xff]
    %v2913 = vld [vmem:[%s2898 + $0x70] sm:$0xff]
    %v2914 = vld [vmem:[%s2898 + $0x78] sm:$0xff]
    %v2915 = vld [vmem:[%s2898 + $0x80] sm:$0xff]
    %v2916 = vld [vmem:[%s2898 + $0x88] sm:$0xff]
    %v2917 = vld [vmem:[%s2898 + $0x90] sm:$0xff]
    %v2918 = vld [vmem:[%s2898 + $0x98] sm:$0xff]
    %v2919 = vld [vmem:[%s2898 + $0xa0] sm:$0xff]
    %v2920 = vld [vmem:[%s2898 + $0xa8] sm:$0xff]
    %v2921 = vld [vmem:[%s2898 + $0xb0] sm:$0xff]
    %v2922 = vld [vmem:[%s2898 + $0xb8] sm:$0xff]
    %v2923 = vld [vmem:[%s2898 + $0xc0] sm:$0xff]
    %v2924 = vld [vmem:[%s2898 + $0xc8] sm:$0xff]
    %v2925 = vld [vmem:[%s2898 + $0xd0] sm:$0xf]
    %v2926 = vld [vmem:[%s2898 + $0xd8] sm:$0xf]
    %v2928 = vsel %vm211, %v2893, 0
    %v2931 = vsel %vm211, %v2896, 0
    %v2934 = vsel %vm218, %v2925, 0
    %v2937 = vsel %vm218, %v2926, 0
    %2939 = vmatpush.msra.mxu0 0.0
    %2940 = vmatpush.msra.mxu0 0.0
    %2941 = vmatpush.msra.mxu0 %v2934
    %2942 = vmatpush.msra.mxu0 %v2923
    %2943 = vmatpush.msra.mxu0 %v2921
    %2944 = vmatpush.msra.mxu0 %v2919
    %2945 = vmatpush.msra.mxu0 %v2917
    %2946 = vmatpush.msra.mxu0 %v2915
    %2947 = vmatpush.msra.mxu0 %v2913
    %2948 = vmatpush.msra.mxu0 %v2911
    %2949 = vmatpush.msra.mxu0 %v2909
    %2950 = vmatpush.msra.mxu0 %v2907
    %2951 = vmatpush.msra.mxu0 %v2905
    %2952 = vmatpush.msra.mxu0 %v2903
    %2953 = vmatpush.msra.mxu0 %v2901
    %2954 = vmatpush.msra.mxu0 %v2899
    %2955 = vmatmul.f32.gmra.mxu0 %v2928
    %v2956 = vpop.f32.mrf.mxu0
    %v2957 = vadd.f32 0.0, %v2956
    %2958 = vmatmul.f32.gmra.mxu0 %v2931
    %v2959 = vpop.f32.mrf.mxu0
    %v2960 = vadd.f32 0.0, %v2959
    %2961 = vdwg.mxu0
    %2962 = vmatpush.msra.mxu0 0.0
    %2963 = vmatpush.msra.mxu0 0.0
    %2964 = vmatpush.msra.mxu0 %v2937
    %2965 = vmatpush.msra.mxu0 %v2924
    %2966 = vmatpush.msra.mxu0 %v2922
    %2967 = vmatpush.msra.mxu0 %v2920
    %2968 = vmatpush.msra.mxu0 %v2918
    %2969 = vmatpush.msra.mxu0 %v2916
    %2970 = vmatpush.msra.mxu0 %v2914
    %2971 = vmatpush.msra.mxu0 %v2912
    %2972 = vmatpush.msra.mxu0 %v2910
    %2973 = vmatpush.msra.mxu0 %v2908
    %2974 = vmatpush.msra.mxu0 %v2906
    %2975 = vmatpush.msra.mxu0 %v2904
    %2976 = vmatpush.msra.mxu0 %v2902
    %2977 = vmatpush.msra.mxu0 %v2900
    %2978 = vmatmul.f32.gmra.mxu0 %v2928
    %v2979 = vpop.f32.mrf.mxu0
    %v2980 = vadd.f32 0.0, %v2979
    %2981 = vmatmul.f32.gmra.mxu0 %v2931
    %v2982 = vpop.f32.mrf.mxu0
    %v2983 = vadd.f32 0.0, %v2982
    %2984 = vdwg.mxu0
    %v2985 = vadd.f32 %v2871, %v2957
    %v2986 = vadd.f32 %v2872, %v2980
    %v2987 = vadd.f32 %v2873, %v2960
    %v2988 = vadd.f32 %v2874, %v2983
    %2989 = vmatpush.msra.mxu0 0.0
    %2990 = vmatpush.msra.mxu0 0.0
    %2991 = vmatpush.msra.mxu0 0.0
    %2992 = vmatpush.msra.mxu0 0.0
    %2993 = vmatpush.msra.mxu0 0.0
    %2994 = vmatpush.msra.mxu0 0.0
    %2995 = vmatpush.msra.mxu0 0.0
    %2996 = vmatpush.msra.mxu0 %v89
    %2997 = vmatpush.msra.mxu0 %v88
    %2998 = vmatpush.msra.mxu0 %v87
    %2999 = vmatpush.msra.mxu0 %v86
    %3000 = vmatpush.msra.mxu0 %v85
    %3001 = vmatpush.msra.mxu0 %v84
    %3002 = vmatpush.msra.mxu0 %v83
    %3003 = vmatpush.msra.mxu0 %v82
    %3004 = vmatpush.msra.mxu0 %v81
    %3005 = vmatmul.f32.gmra.mxu0 %v948
    %v3006 = vpop.f32.mrf.mxu0
    %v3007 = vadd.f32 0.0, %v3006
    %3008 = vmatmul.f32.gmra.mxu0 %v951
    %v3009 = vpop.f32.mrf.mxu0
    %v3010 = vadd.f32 0.0, %v3009
    %3011 = vdwg.mxu0
    %s3012 = scalar_lea.vmem %s8, 1568
    %v3013 = vld [vmem:[%s3012] sm:$0xff]
    %v3014 = vld [vmem:[%s3012 + $0x8] sm:$0xff]
    %v3015 = vld [vmem:[%s3012 + $0x10] sm:$0xff]
    %v3016 = vld [vmem:[%s3012 + $0x18] sm:$0xff]
    %v3017 = vld [vmem:[%s3012 + $0x20] sm:$0xff]
    %v3018 = vld [vmem:[%s3012 + $0x28] sm:$0xff]
    %v3019 = vld [vmem:[%s3012 + $0x30] sm:$0xff]
    %v3020 = vld [vmem:[%s3012 + $0x38] sm:$0xff]
    %v3021 = vld [vmem:[%s3012 + $0x40] sm:$0xff]
    %v3022 = vld [vmem:[%s3012 + $0x48] sm:$0xff]
    %v3023 = vld [vmem:[%s3012 + $0x50] sm:$0xff]
    %v3024 = vld [vmem:[%s3012 + $0x58] sm:$0xff]
    %v3025 = vld [vmem:[%s3012 + $0x60] sm:$0xff]
    %v3026 = vld [vmem:[%s3012 + $0x68] sm:$0xff]
    %v3027 = vld [vmem:[%s3012 + $0x70] sm:$0xff]
    %v3028 = vld [vmem:[%s3012 + $0x78] sm:$0xff]
    %v3029 = vld [vmem:[%s3012 + $0x80] sm:$0xff]
    %v3030 = vld [vmem:[%s3012 + $0x88] sm:$0xff]
    %v3031 = vld [vmem:[%s3012 + $0x90] sm:$0xff]
    %v3032 = vld [vmem:[%s3012 + $0x98] sm:$0xff]
    %v3033 = vld [vmem:[%s3012 + $0xa0] sm:$0xff]
    %v3034 = vld [vmem:[%s3012 + $0xa8] sm:$0xff]
    %v3035 = vld [vmem:[%s3012 + $0xb0] sm:$0xff]
    %v3036 = vld [vmem:[%s3012 + $0xb8] sm:$0xff]
    %v3037 = vld [vmem:[%s3012 + $0xc0] sm:$0xff]
    %v3038 = vld [vmem:[%s3012 + $0xc8] sm:$0xff]
    %v3039 = vld [vmem:[%s3012 + $0xd0] sm:$0xf]
    %v3040 = vld [vmem:[%s3012 + $0xd8] sm:$0xf]
    %v3042 = vsel %vm211, %v3007, 0
    %v3045 = vsel %vm211, %v3010, 0
    %v3048 = vsel %vm218, %v3039, 0
    %v3051 = vsel %vm218, %v3040, 0
    %3053 = vmatpush.msra.mxu0 0.0
    %3054 = vmatpush.msra.mxu0 0.0
    %3055 = vmatpush.msra.mxu0 %v3048
    %3056 = vmatpush.msra.mxu0 %v3037
    %3057 = vmatpush.msra.mxu0 %v3035
    %3058 = vmatpush.msra.mxu0 %v3033
    %3059 = vmatpush.msra.mxu0 %v3031
    %3060 = vmatpush.msra.mxu0 %v3029
    %3061 = vmatpush.msra.mxu0 %v3027
    %3062 = vmatpush.msra.mxu0 %v3025
    %3063 = vmatpush.msra.mxu0 %v3023
    %3064 = vmatpush.msra.mxu0 %v3021
    %3065 = vmatpush.msra.mxu0 %v3019
    %3066 = vmatpush.msra.mxu0 %v3017
    %3067 = vmatpush.msra.mxu0 %v3015
    %3068 = vmatpush.msra.mxu0 %v3013
    %3069 = vmatmul.f32.gmra.mxu0 %v3042
    %v3070 = vpop.f32.mrf.mxu0
    %v3071 = vadd.f32 0.0, %v3070
    %3072 = vmatmul.f32.gmra.mxu0 %v3045
    %v3073 = vpop.f32.mrf.mxu0
    %v3074 = vadd.f32 0.0, %v3073
    %3075 = vdwg.mxu0
    %3076 = vmatpush.msra.mxu0 0.0
    %3077 = vmatpush.msra.mxu0 0.0
    %3078 = vmatpush.msra.mxu0 %v3051
    %3079 = vmatpush.msra.mxu0 %v3038
    %3080 = vmatpush.msra.mxu0 %v3036
    %3081 = vmatpush.msra.mxu0 %v3034
    %3082 = vmatpush.msra.mxu0 %v3032
    %3083 = vmatpush.msra.mxu0 %v3030
    %3084 = vmatpush.msra.mxu0 %v3028
    %3085 = vmatpush.msra.mxu0 %v3026
    %3086 = vmatpush.msra.mxu0 %v3024
    %3087 = vmatpush.msra.mxu0 %v3022
    %3088 = vmatpush.msra.mxu0 %v3020
    %3089 = vmatpush.msra.mxu0 %v3018
    %3090 = vmatpush.msra.mxu0 %v3016
    %3091 = vmatpush.msra.mxu0 %v3014
    %3092 = vmatmul.f32.gmra.mxu0 %v3042
    %v3093 = vpop.f32.mrf.mxu0
    %v3094 = vadd.f32 0.0, %v3093
    %3095 = vmatmul.f32.gmra.mxu0 %v3045
    %v3096 = vpop.f32.mrf.mxu0
    %v3097 = vadd.f32 0.0, %v3096
    %3098 = vdwg.mxu0
    %v3099 = vadd.f32 %v2985, %v3071
    %v3100 = vadd.f32 %v2986, %v3094
    %v3101 = vadd.f32 %v2987, %v3074
    %v3102 = vadd.f32 %v2988, %v3097
    %v3103 = vld [vmem:[%s14] sm:$0x3]
    %v3105 = vperm.slane %v3103, 0
    %v3106 = vperm.slane %v3103, 1
    %v3109 = vadd.f32 %v3099, %v3105
    %v3110 = vadd.f32 %v3100, %v3106
    %v3111 = vadd.f32 %v3101, %v3105
    %v3112 = vadd.f32 %v3102, %v3106
    %3113 = vmatpush.msra.mxu0 0.0
    %3114 = vmatpush.msra.mxu0 0.0
    %3115 = vmatpush.msra.mxu0 0.0
    %3116 = vmatpush.msra.mxu0 0.0
    %3117 = vmatpush.msra.mxu0 0.0
    %3118 = vmatpush.msra.mxu0 0.0
    %3119 = vmatpush.msra.mxu0 0.0
    %3120 = vmatpush.msra.mxu0 0.0
    %3121 = vmatpush.msra.mxu0 0.0
    %3122 = vmatpush.msra.mxu0 0.0
    %3123 = vmatpush.msra.mxu0 0.0
    %3124 = vmatpush.msra.mxu0 0.0
    %3125 = vmatpush.msra.mxu0 0.0
    %3126 = vmatpush.msra.mxu0 0.0
    %3127 = vmatpush.msra.mxu0 %v3111
    %3128 = vmatpush.msra.mxu0 %v3109
    %3129 = vmatmul.f32.gmra.mxu0 %v1080
    %v3130 = vpop.f32.mrf.mxu0
    %v3131 = vadd.f32 0.0, %v3130
    %3132 = vdwg.mxu0
    %3133 = vmatpush.msra.mxu0 0.0
    %3134 = vmatpush.msra.mxu0 0.0
    %3135 = vmatpush.msra.mxu0 0.0
    %3136 = vmatpush.msra.mxu0 0.0
    %3137 = vmatpush.msra.mxu0 0.0
    %3138 = vmatpush.msra.mxu0 0.0
    %3139 = vmatpush.msra.mxu0 0.0
    %3140 = vmatpush.msra.mxu0 0.0
    %3141 = vmatpush.msra.mxu0 0.0
    %3142 = vmatpush.msra.mxu0 0.0
    %3143 = vmatpush.msra.mxu0 0.0
    %3144 = vmatpush.msra.mxu0 0.0
    %3145 = vmatpush.msra.mxu0 0.0
    %3146 = vmatpush.msra.mxu0 0.0
    %3147 = vmatpush.msra.mxu0 %v3112
    %3148 = vmatpush.msra.mxu0 %v3110
    %3149 = vmatmul.f32.gmra.mxu0 %v1080
    %v3150 = vpop.f32.mrf.mxu0
    %v3151 = vadd.f32 0.0, %v3150
    %3152 = vdwg.mxu0
    %v3153 = vld [vmem:[%s9] sm:$0xff]
    %v3154 = vld [vmem:[%s9 + $0x8] sm:$0xff]
    %v3155 = vld [vmem:[%s9 + $0x10] sm:$0xff]
    %v3156 = vld [vmem:[%s9 + $0x18] sm:$0xff]
    %v3157 = vld [vmem:[%s9 + $0x20] sm:$0xff]
    %v3158 = vld [vmem:[%s9 + $0x28] sm:$0xff]
    %v3159 = vld [vmem:[%s9 + $0x30] sm:$0xff]
    %v3160 = vld [vmem:[%s9 + $0x38] sm:$0xff]
    %v3161 = vld [vmem:[%s9 + $0x40] sm:$0xff]
    %v3162 = vld [vmem:[%s9 + $0x48] sm:$0xff]
    %v3163 = vld [vmem:[%s9 + $0x50] sm:$0xff]
    %v3164 = vld [vmem:[%s9 + $0x58] sm:$0xff]
    %v3165 = vld [vmem:[%s9 + $0x60] sm:$0xff]
    %v3166 = vld [vmem:[%s9 + $0x68] sm:$0xff]
    %v3167 = vld [vmem:[%s9 + $0x70] sm:$0xff]
    %v3168 = vld [vmem:[%s9 + $0x78] sm:$0xff]
    %v3169 = vld [vmem:[%s9 + $0x80] sm:$0xff]
    %v3170 = vld [vmem:[%s9 + $0x88] sm:$0xff]
    %v3171 = vld [vmem:[%s9 + $0x90] sm:$0xff]
    %v3172 = vld [vmem:[%s9 + $0x98] sm:$0xff]
    %v3173 = vld [vmem:[%s9 + $0xa0] sm:$0xff]
    %v3174 = vld [vmem:[%s9 + $0xa8] sm:$0xff]
    %v3175 = vld [vmem:[%s9 + $0xb0] sm:$0xff]
    %v3176 = vld [vmem:[%s9 + $0xb8] sm:$0xff]
    %v3177 = vld [vmem:[%s9 + $0xc0] sm:$0xff]
    %v3178 = vld [vmem:[%s9 + $0xc8] sm:$0xff]
    %v3179 = vld [vmem:[%s9 + $0xd0] sm:$0xff]
    %v3180 = vld [vmem:[%s9 + $0xd8] sm:$0xff]
    %v3181 = vld [vmem:[%s9 + $0xe0] sm:$0xff]
    %v3182 = vld [vmem:[%s9 + $0xe8] sm:$0xff]
    %v3183 = vld [vmem:[%s9 + $0xf0] sm:$0xff]
    %v3184 = vld [vmem:[%s9 + $0xf8] sm:$0xff]
    %v3185 = vld [vmem:[%s9 + $0x100] sm:$0xff]
    %v3186 = vld [vmem:[%s9 + $0x108] sm:$0xff]
    %v3187 = vld [vmem:[%s9 + $0x110] sm:$0xff]
    %v3188 = vld [vmem:[%s9 + $0x118] sm:$0xff]
    %v3189 = vld [vmem:[%s9 + $0x120] sm:$0xff]
    %v3190 = vld [vmem:[%s9 + $0x128] sm:$0xff]
    %v3191 = vld [vmem:[%s9 + $0x130] sm:$0xff]
    %v3192 = vld [vmem:[%s9 + $0x138] sm:$0xff]
    %v3193 = vld [vmem:[%s9 + $0x140] sm:$0xff]
    %v3194 = vld [vmem:[%s9 + $0x148] sm:$0xff]
    %v3195 = vld [vmem:[%s9 + $0x150] sm:$0xff]
    %v3196 = vld [vmem:[%s9 + $0x158] sm:$0xff]
    %v3197 = vld [vmem:[%s9 + $0x160] sm:$0xff]
    %v3198 = vld [vmem:[%s9 + $0x168] sm:$0xff]
    %v3199 = vld [vmem:[%s9 + $0x170] sm:$0xff]
    %v3200 = vld [vmem:[%s9 + $0x178] sm:$0xff]
    %v3201 = vld [vmem:[%s9 + $0x180] sm:$0xff]
    %v3202 = vld [vmem:[%s9 + $0x188] sm:$0xff]
    %v3203 = vld [vmem:[%s9 + $0x190] sm:$0xff]
    %v3204 = vld [vmem:[%s9 + $0x198] sm:$0xff]
    %v3205 = vld [vmem:[%s9 + $0x1a0] sm:$0xff]
    %v3206 = vld [vmem:[%s9 + $0x1a8] sm:$0xff]
    %v3207 = vld [vmem:[%s9 + $0x1b0] sm:$0xff]
    %v3208 = vld [vmem:[%s9 + $0x1b8] sm:$0xff]
    %v3209 = vld [vmem:[%s9 + $0x1c0] sm:$0xff]
    %v3210 = vld [vmem:[%s9 + $0x1c8] sm:$0xff]
    %v3211 = vld [vmem:[%s9 + $0x1d0] sm:$0xff]
    %v3212 = vld [vmem:[%s9 + $0x1d8] sm:$0xff]
    %v3213 = vld [vmem:[%s9 + $0x1e0] sm:$0xff]
    %v3214 = vld [vmem:[%s9 + $0x1e8] sm:$0xff]
    %v3215 = vld [vmem:[%s9 + $0x1f0] sm:$0xff]
    %v3216 = vld [vmem:[%s9 + $0x1f8] sm:$0xff]
    %3217 = vmatpush.msra.mxu0 0.0
    %3218 = vmatpush.msra.mxu0 0.0
    %3219 = vmatpush.msra.mxu0 0.0
    %3220 = vmatpush.msra.mxu0 0.0
    %3221 = vmatpush.msra.mxu0 0.0
    %3222 = vmatpush.msra.mxu0 0.0
    %3223 = vmatpush.msra.mxu0 0.0
    %3224 = vmatpush.msra.mxu0 0.0
    %3225 = vmatpush.msra.mxu0 0.0
    %3226 = vmatpush.msra.mxu0 0.0
    %3227 = vmatpush.msra.mxu0 0.0
    %3228 = vmatpush.msra.mxu0 0.0
    %3229 = vmatpush.msra.mxu0 0.0
    %3230 = vmatpush.msra.mxu0 0.0
    %3231 = vmatpush.msra.mxu0 %v3111
    %3232 = vmatpush.msra.mxu0 %v3109
    %3233 = vmatmul.f32.gmra.mxu0 %v1189
    %v3234 = vpop.f32.mrf.mxu0
    %v3235 = vadd.f32 0.0, %v3234
    %3236 = vdwg.mxu0
    %3237 = vmatpush.msra.mxu0 0.0
    %3238 = vmatpush.msra.mxu0 0.0
    %3239 = vmatpush.msra.mxu0 0.0
    %3240 = vmatpush.msra.mxu0 0.0
    %3241 = vmatpush.msra.mxu0 0.0
    %3242 = vmatpush.msra.mxu0 0.0
    %3243 = vmatpush.msra.mxu0 0.0
    %3244 = vmatpush.msra.mxu0 0.0
    %3245 = vmatpush.msra.mxu0 0.0
    %3246 = vmatpush.msra.mxu0 0.0
    %3247 = vmatpush.msra.mxu0 0.0
    %3248 = vmatpush.msra.mxu0 0.0
    %3249 = vmatpush.msra.mxu0 0.0
    %3250 = vmatpush.msra.mxu0 0.0
    %3251 = vmatpush.msra.mxu0 %v3112
    %3252 = vmatpush.msra.mxu0 %v3110
    %3253 = vmatmul.f32.gmra.mxu0 %v1189
    %v3254 = vpop.f32.mrf.mxu0
    %v3255 = vadd.f32 0.0, %v3254
    %3256 = vdwg.mxu0
    %s3257 = scalar_lea.vmem %s9, 512
    %v3258 = vld [vmem:[%s3257] sm:$0xff]
    %v3259 = vld [vmem:[%s3257 + $0x8] sm:$0xff]
    %v3260 = vld [vmem:[%s3257 + $0x10] sm:$0xff]
    %v3261 = vld [vmem:[%s3257 + $0x18] sm:$0xff]
    %v3262 = vld [vmem:[%s3257 + $0x20] sm:$0xff]
    %v3263 = vld [vmem:[%s3257 + $0x28] sm:$0xff]
    %v3264 = vld [vmem:[%s3257 + $0x30] sm:$0xff]
    %v3265 = vld [vmem:[%s3257 + $0x38] sm:$0xff]
    %v3266 = vld [vmem:[%s3257 + $0x40] sm:$0xff]
    %v3267 = vld [vmem:[%s3257 + $0x48] sm:$0xff]
    %v3268 = vld [vmem:[%s3257 + $0x50] sm:$0xff]
    %v3269 = vld [vmem:[%s3257 + $0x58] sm:$0xff]
    %v3270 = vld [vmem:[%s3257 + $0x60] sm:$0xff]
    %v3271 = vld [vmem:[%s3257 + $0x68] sm:$0xff]
    %v3272 = vld [vmem:[%s3257 + $0x70] sm:$0xff]
    %v3273 = vld [vmem:[%s3257 + $0x78] sm:$0xff]
    %v3274 = vld [vmem:[%s3257 + $0x80] sm:$0xff]
    %v3275 = vld [vmem:[%s3257 + $0x88] sm:$0xff]
    %v3276 = vld [vmem:[%s3257 + $0x90] sm:$0xff]
    %v3277 = vld [vmem:[%s3257 + $0x98] sm:$0xff]
    %v3278 = vld [vmem:[%s3257 + $0xa0] sm:$0xff]
    %v3279 = vld [vmem:[%s3257 + $0xa8] sm:$0xff]
    %v3280 = vld [vmem:[%s3257 + $0xb0] sm:$0xff]
    %v3281 = vld [vmem:[%s3257 + $0xb8] sm:$0xff]
    %v3282 = vld [vmem:[%s3257 + $0xc0] sm:$0xff]
    %v3283 = vld [vmem:[%s3257 + $0xc8] sm:$0xff]
    %v3284 = vld [vmem:[%s3257 + $0xd0] sm:$0xff]
    %v3285 = vld [vmem:[%s3257 + $0xd8] sm:$0xff]
    %v3286 = vld [vmem:[%s3257 + $0xe0] sm:$0xff]
    %v3287 = vld [vmem:[%s3257 + $0xe8] sm:$0xff]
    %v3288 = vld [vmem:[%s3257 + $0xf0] sm:$0xff]
    %v3289 = vld [vmem:[%s3257 + $0xf8] sm:$0xff]
    %v3290 = vld [vmem:[%s3257 + $0x100] sm:$0xff]
    %v3291 = vld [vmem:[%s3257 + $0x108] sm:$0xff]
    %v3292 = vld [vmem:[%s3257 + $0x110] sm:$0xff]
    %v3293 = vld [vmem:[%s3257 + $0x118] sm:$0xff]
    %v3294 = vld [vmem:[%s3257 + $0x120] sm:$0xff]
    %v3295 = vld [vmem:[%s3257 + $0x128] sm:$0xff]
    %v3296 = vld [vmem:[%s3257 + $0x130] sm:$0xff]
    %v3297 = vld [vmem:[%s3257 + $0x138] sm:$0xff]
    %v3298 = vld [vmem:[%s3257 + $0x140] sm:$0xff]
    %v3299 = vld [vmem:[%s3257 + $0x148] sm:$0xff]
    %v3300 = vld [vmem:[%s3257 + $0x150] sm:$0xff]
    %v3301 = vld [vmem:[%s3257 + $0x158] sm:$0xff]
    %v3302 = vld [vmem:[%s3257 + $0x160] sm:$0xff]
    %v3303 = vld [vmem:[%s3257 + $0x168] sm:$0xff]
    %v3304 = vld [vmem:[%s3257 + $0x170] sm:$0xff]
    %v3305 = vld [vmem:[%s3257 + $0x178] sm:$0xff]
    %v3306 = vld [vmem:[%s3257 + $0x180] sm:$0xff]
    %v3307 = vld [vmem:[%s3257 + $0x188] sm:$0xff]
    %v3308 = vld [vmem:[%s3257 + $0x190] sm:$0xff]
    %v3309 = vld [vmem:[%s3257 + $0x198] sm:$0xff]
    %v3310 = vld [vmem:[%s3257 + $0x1a0] sm:$0xff]
    %v3311 = vld [vmem:[%s3257 + $0x1a8] sm:$0xff]
    %v3312 = vld [vmem:[%s3257 + $0x1b0] sm:$0xff]
    %v3313 = vld [vmem:[%s3257 + $0x1b8] sm:$0xff]
    %v3314 = vld [vmem:[%s3257 + $0x1c0] sm:$0xff]
    %v3315 = vld [vmem:[%s3257 + $0x1c8] sm:$0xff]
    %v3316 = vld [vmem:[%s3257 + $0x1d0] sm:$0xff]
    %v3317 = vld [vmem:[%s3257 + $0x1d8] sm:$0xff]
    %v3318 = vld [vmem:[%s3257 + $0x1e0] sm:$0xff]
    %v3319 = vld [vmem:[%s3257 + $0x1e8] sm:$0xff]
    %v3320 = vld [vmem:[%s3257 + $0x1f0] sm:$0xff]
    %v3321 = vld [vmem:[%s3257 + $0x1f8] sm:$0xff]
    %3322 = vmatpush.msra.mxu0 %v3288
    %3323 = vmatpush.msra.mxu0 %v3286
    %3324 = vmatpush.msra.mxu0 %v3284
    %3325 = vmatpush.msra.mxu0 %v3282
    %3326 = vmatpush.msra.mxu0 %v3280
    %3327 = vmatpush.msra.mxu0 %v3278
    %3328 = vmatpush.msra.mxu0 %v3276
    %3329 = vmatpush.msra.mxu0 %v3274
    %3330 = vmatpush.msra.mxu0 %v3272
    %3331 = vmatpush.msra.mxu0 %v3270
    %3332 = vmatpush.msra.mxu0 %v3268
    %3333 = vmatpush.msra.mxu0 %v3266
    %3334 = vmatpush.msra.mxu0 %v3264
    %3335 = vmatpush.msra.mxu0 %v3262
    %3336 = vmatpush.msra.mxu0 %v3260
    %3337 = vmatpush.msra.mxu0 %v3258
    %3338 = vmatmul.f32.gmra.mxu0 %v3235
    %v3339 = vpop.f32.mrf.mxu0
    %v3340 = vadd.f32 0.0, %v3339
    %3341 = vdwg.mxu0
    %3342 = vmatpush.msra.mxu0 %v3320
    %3343 = vmatpush.msra.mxu0 %v3318
    %3344 = vmatpush.msra.mxu0 %v3316
    %3345 = vmatpush.msra.mxu0 %v3314
    %3346 = vmatpush.msra.mxu0 %v3312
    %3347 = vmatpush.msra.mxu0 %v3310
    %3348 = vmatpush.msra.mxu0 %v3308
    %3349 = vmatpush.msra.mxu0 %v3306
    %3350 = vmatpush.msra.mxu0 %v3304
    %3351 = vmatpush.msra.mxu0 %v3302
    %3352 = vmatpush.msra.mxu0 %v3300
    %3353 = vmatpush.msra.mxu0 %v3298
    %3354 = vmatpush.msra.mxu0 %v3296
    %3355 = vmatpush.msra.mxu0 %v3294
    %3356 = vmatpush.msra.mxu0 %v3292
    %3357 = vmatpush.msra.mxu0 %v3290
    %3358 = vmatmul.f32.gmra.mxu0 %v3255
    %v3359 = vpop.f32.mrf.mxu0
    %v3360 = vadd.f32 %v3340, %v3359
    %3361 = vdwg.mxu0
    %3362 = vmatpush.msra.mxu0 %v3289
    %3363 = vmatpush.msra.mxu0 %v3287
    %3364 = vmatpush.msra.mxu0 %v3285
    %3365 = vmatpush.msra.mxu0 %v3283
    %3366 = vmatpush.msra.mxu0 %v3281
    %3367 = vmatpush.msra.mxu0 %v3279
    %3368 = vmatpush.msra.mxu0 %v3277
    %3369 = vmatpush.msra.mxu0 %v3275
    %3370 = vmatpush.msra.mxu0 %v3273
    %3371 = vmatpush.msra.mxu0 %v3271
    %3372 = vmatpush.msra.mxu0 %v3269
    %3373 = vmatpush.msra.mxu0 %v3267
    %3374 = vmatpush.msra.mxu0 %v3265
    %3375 = vmatpush.msra.mxu0 %v3263
    %3376 = vmatpush.msra.mxu0 %v3261
    %3377 = vmatpush.msra.mxu0 %v3259
    %3378 = vmatmul.f32.gmra.mxu0 %v3235
    %v3379 = vpop.f32.mrf.mxu0
    %v3380 = vadd.f32 0.0, %v3379
    %3381 = vdwg.mxu0
    %3382 = vmatpush.msra.mxu0 %v3321
    %3383 = vmatpush.msra.mxu0 %v3319
    %3384 = vmatpush.msra.mxu0 %v3317
    %3385 = vmatpush.msra.mxu0 %v3315
    %3386 = vmatpush.msra.mxu0 %v3313
    %3387 = vmatpush.msra.mxu0 %v3311
    %3388 = vmatpush.msra.mxu0 %v3309
    %3389 = vmatpush.msra.mxu0 %v3307
    %3390 = vmatpush.msra.mxu0 %v3305
    %3391 = vmatpush.msra.mxu0 %v3303
    %3392 = vmatpush.msra.mxu0 %v3301
    %3393 = vmatpush.msra.mxu0 %v3299
    %3394 = vmatpush.msra.mxu0 %v3297
    %3395 = vmatpush.msra.mxu0 %v3295
    %3396 = vmatpush.msra.mxu0 %v3293
    %3397 = vmatpush.msra.mxu0 %v3291
    %3398 = vmatmul.f32.gmra.mxu0 %v3255
    %v3399 = vpop.f32.mrf.mxu0
    %v3400 = vadd.f32 %v3380, %v3399
    %3401 = vdwg.mxu0
    %3402 = vmatpush.msra.mxu0 %v3183
    %3403 = vmatpush.msra.mxu0 %v3181
    %3404 = vmatpush.msra.mxu0 %v3179
    %3405 = vmatpush.msra.mxu0 %v3177
    %3406 = vmatpush.msra.mxu0 %v3175
    %3407 = vmatpush.msra.mxu0 %v3173
    %3408 = vmatpush.msra.mxu0 %v3171
    %3409 = vmatpush.msra.mxu0 %v3169
    %3410 = vmatpush.msra.mxu0 %v3167
    %3411 = vmatpush.msra.mxu0 %v3165
    %3412 = vmatpush.msra.mxu0 %v3163
    %3413 = vmatpush.msra.mxu0 %v3161
    %3414 = vmatpush.msra.mxu0 %v3159
    %3415 = vmatpush.msra.mxu0 %v3157
    %3416 = vmatpush.msra.mxu0 %v3155
    %3417 = vmatpush.msra.mxu0 %v3153
    %3418 = vmatmul.f32.gmra.mxu0 %v3131
    %v3419 = vpop.f32.mrf.mxu0
    %v3420 = vadd.f32 %v3360, %v3419
    %3421 = vdwg.mxu0
    %3422 = vmatpush.msra.mxu0 %v3215
    %3423 = vmatpush.msra.mxu0 %v3213
    %3424 = vmatpush.msra.mxu0 %v3211
    %3425 = vmatpush.msra.mxu0 %v3209
    %3426 = vmatpush.msra.mxu0 %v3207
    %3427 = vmatpush.msra.mxu0 %v3205
    %3428 = vmatpush.msra.mxu0 %v3203
    %3429 = vmatpush.msra.mxu0 %v3201
    %3430 = vmatpush.msra.mxu0 %v3199
    %3431 = vmatpush.msra.mxu0 %v3197
    %3432 = vmatpush.msra.mxu0 %v3195
    %3433 = vmatpush.msra.mxu0 %v3193
    %3434 = vmatpush.msra.mxu0 %v3191
    %3435 = vmatpush.msra.mxu0 %v3189
    %3436 = vmatpush.msra.mxu0 %v3187
    %3437 = vmatpush.msra.mxu0 %v3185
    %3438 = vmatmul.f32.gmra.mxu0 %v3151
    %v3439 = vpop.f32.mrf.mxu0
    %v3440 = vadd.f32 %v3420, %v3439
    %3441 = vdwg.mxu0
    %3442 = vmatpush.msra.mxu0 %v3184
    %3443 = vmatpush.msra.mxu0 %v3182
    %3444 = vmatpush.msra.mxu0 %v3180
    %3445 = vmatpush.msra.mxu0 %v3178
    %3446 = vmatpush.msra.mxu0 %v3176
    %3447 = vmatpush.msra.mxu0 %v3174
    %3448 = vmatpush.msra.mxu0 %v3172
    %3449 = vmatpush.msra.mxu0 %v3170
    %3450 = vmatpush.msra.mxu0 %v3168
    %3451 = vmatpush.msra.mxu0 %v3166
    %3452 = vmatpush.msra.mxu0 %v3164
    %3453 = vmatpush.msra.mxu0 %v3162
    %3454 = vmatpush.msra.mxu0 %v3160
    %3455 = vmatpush.msra.mxu0 %v3158
    %3456 = vmatpush.msra.mxu0 %v3156
    %3457 = vmatpush.msra.mxu0 %v3154
    %3458 = vmatmul.f32.gmra.mxu0 %v3131
    %v3459 = vpop.f32.mrf.mxu0
    %v3460 = vadd.f32 %v3400, %v3459
    %3461 = vdwg.mxu0
    %3462 = vmatpush.msra.mxu0 %v3216
    %3463 = vmatpush.msra.mxu0 %v3214
    %3464 = vmatpush.msra.mxu0 %v3212
    %3465 = vmatpush.msra.mxu0 %v3210
    %3466 = vmatpush.msra.mxu0 %v3208
    %3467 = vmatpush.msra.mxu0 %v3206
    %3468 = vmatpush.msra.mxu0 %v3204
    %3469 = vmatpush.msra.mxu0 %v3202
    %3470 = vmatpush.msra.mxu0 %v3200
    %3471 = vmatpush.msra.mxu0 %v3198
    %3472 = vmatpush.msra.mxu0 %v3196
    %3473 = vmatpush.msra.mxu0 %v3194
    %3474 = vmatpush.msra.mxu0 %v3192
    %3475 = vmatpush.msra.mxu0 %v3190
    %3476 = vmatpush.msra.mxu0 %v3188
    %3477 = vmatpush.msra.mxu0 %v3186
    %3478 = vmatmul.f32.gmra.mxu0 %v3151
    %v3479 = vpop.f32.mrf.mxu0
    %v3480 = vadd.f32 %v3460, %v3479
    %3481 = vdwg.mxu0
    %3482 = vmatpush.msra.mxu0 0.0
    %3483 = vmatpush.msra.mxu0 0.0
    %3484 = vmatpush.msra.mxu0 0.0
    %3485 = vmatpush.msra.mxu0 0.0
    %3486 = vmatpush.msra.mxu0 0.0
    %3487 = vmatpush.msra.mxu0 0.0
    %3488 = vmatpush.msra.mxu0 0.0
    %3489 = vmatpush.msra.mxu0 0.0
    %3490 = vmatpush.msra.mxu0 0.0
    %3491 = vmatpush.msra.mxu0 0.0
    %3492 = vmatpush.msra.mxu0 0.0
    %3493 = vmatpush.msra.mxu0 0.0
    %3494 = vmatpush.msra.mxu0 0.0
    %3495 = vmatpush.msra.mxu0 0.0
    %3496 = vmatpush.msra.mxu0 %v3111
    %3497 = vmatpush.msra.mxu0 %v3109
    %3498 = vmatmul.f32.gmra.mxu0 %v1459
    %v3499 = vpop.f32.mrf.mxu0
    %v3500 = vadd.f32 0.0, %v3499
    %3501 = vdwg.mxu0
    %3502 = vmatpush.msra.mxu0 0.0
    %3503 = vmatpush.msra.mxu0 0.0
    %3504 = vmatpush.msra.mxu0 0.0
    %3505 = vmatpush.msra.mxu0 0.0
    %3506 = vmatpush.msra.mxu0 0.0
    %3507 = vmatpush.msra.mxu0 0.0
    %3508 = vmatpush.msra.mxu0 0.0
    %3509 = vmatpush.msra.mxu0 0.0
    %3510 = vmatpush.msra.mxu0 0.0
    %3511 = vmatpush.msra.mxu0 0.0
    %3512 = vmatpush.msra.mxu0 0.0
    %3513 = vmatpush.msra.mxu0 0.0
    %3514 = vmatpush.msra.mxu0 0.0
    %3515 = vmatpush.msra.mxu0 0.0
    %3516 = vmatpush.msra.mxu0 %v3112
    %3517 = vmatpush.msra.mxu0 %v3110
    %3518 = vmatmul.f32.gmra.mxu0 %v1459
    %v3519 = vpop.f32.mrf.mxu0
    %v3520 = vadd.f32 0.0, %v3519
    %3521 = vdwg.mxu0
    %s3522 = scalar_lea.vmem %s9, 1024
    %v3523 = vld [vmem:[%s3522] sm:$0xff]
    %v3524 = vld [vmem:[%s3522 + $0x8] sm:$0xff]
    %v3525 = vld [vmem:[%s3522 + $0x10] sm:$0xff]
    %v3526 = vld [vmem:[%s3522 + $0x18] sm:$0xff]
    %v3527 = vld [vmem:[%s3522 + $0x20] sm:$0xff]
    %v3528 = vld [vmem:[%s3522 + $0x28] sm:$0xff]
    %v3529 = vld [vmem:[%s3522 + $0x30] sm:$0xff]
    %v3530 = vld [vmem:[%s3522 + $0x38] sm:$0xff]
    %v3531 = vld [vmem:[%s3522 + $0x40] sm:$0xff]
    %v3532 = vld [vmem:[%s3522 + $0x48] sm:$0xff]
    %v3533 = vld [vmem:[%s3522 + $0x50] sm:$0xff]
    %v3534 = vld [vmem:[%s3522 + $0x58] sm:$0xff]
    %v3535 = vld [vmem:[%s3522 + $0x60] sm:$0xff]
    %v3536 = vld [vmem:[%s3522 + $0x68] sm:$0xff]
    %v3537 = vld [vmem:[%s3522 + $0x70] sm:$0xff]
    %v3538 = vld [vmem:[%s3522 + $0x78] sm:$0xff]
    %v3539 = vld [vmem:[%s3522 + $0x80] sm:$0xff]
    %v3540 = vld [vmem:[%s3522 + $0x88] sm:$0xff]
    %v3541 = vld [vmem:[%s3522 + $0x90] sm:$0xff]
    %v3542 = vld [vmem:[%s3522 + $0x98] sm:$0xff]
    %v3543 = vld [vmem:[%s3522 + $0xa0] sm:$0xff]
    %v3544 = vld [vmem:[%s3522 + $0xa8] sm:$0xff]
    %v3545 = vld [vmem:[%s3522 + $0xb0] sm:$0xff]
    %v3546 = vld [vmem:[%s3522 + $0xb8] sm:$0xff]
    %v3547 = vld [vmem:[%s3522 + $0xc0] sm:$0xff]
    %v3548 = vld [vmem:[%s3522 + $0xc8] sm:$0xff]
    %v3549 = vld [vmem:[%s3522 + $0xd0] sm:$0xff]
    %v3550 = vld [vmem:[%s3522 + $0xd8] sm:$0xff]
    %v3551 = vld [vmem:[%s3522 + $0xe0] sm:$0xff]
    %v3552 = vld [vmem:[%s3522 + $0xe8] sm:$0xff]
    %v3553 = vld [vmem:[%s3522 + $0xf0] sm:$0xff]
    %v3554 = vld [vmem:[%s3522 + $0xf8] sm:$0xff]
    %v3555 = vld [vmem:[%s3522 + $0x100] sm:$0xff]
    %v3556 = vld [vmem:[%s3522 + $0x108] sm:$0xff]
    %v3557 = vld [vmem:[%s3522 + $0x110] sm:$0xff]
    %v3558 = vld [vmem:[%s3522 + $0x118] sm:$0xff]
    %v3559 = vld [vmem:[%s3522 + $0x120] sm:$0xff]
    %v3560 = vld [vmem:[%s3522 + $0x128] sm:$0xff]
    %v3561 = vld [vmem:[%s3522 + $0x130] sm:$0xff]
    %v3562 = vld [vmem:[%s3522 + $0x138] sm:$0xff]
    %v3563 = vld [vmem:[%s3522 + $0x140] sm:$0xff]
    %v3564 = vld [vmem:[%s3522 + $0x148] sm:$0xff]
    %v3565 = vld [vmem:[%s3522 + $0x150] sm:$0xff]
    %v3566 = vld [vmem:[%s3522 + $0x158] sm:$0xff]
    %v3567 = vld [vmem:[%s3522 + $0x160] sm:$0xff]
    %v3568 = vld [vmem:[%s3522 + $0x168] sm:$0xff]
    %v3569 = vld [vmem:[%s3522 + $0x170] sm:$0xff]
    %v3570 = vld [vmem:[%s3522 + $0x178] sm:$0xff]
    %v3571 = vld [vmem:[%s3522 + $0x180] sm:$0xff]
    %v3572 = vld [vmem:[%s3522 + $0x188] sm:$0xff]
    %v3573 = vld [vmem:[%s3522 + $0x190] sm:$0xff]
    %v3574 = vld [vmem:[%s3522 + $0x198] sm:$0xff]
    %v3575 = vld [vmem:[%s3522 + $0x1a0] sm:$0xff]
    %v3576 = vld [vmem:[%s3522 + $0x1a8] sm:$0xff]
    %v3577 = vld [vmem:[%s3522 + $0x1b0] sm:$0xff]
    %v3578 = vld [vmem:[%s3522 + $0x1b8] sm:$0xff]
    %v3579 = vld [vmem:[%s3522 + $0x1c0] sm:$0xff]
    %v3580 = vld [vmem:[%s3522 + $0x1c8] sm:$0xff]
    %v3581 = vld [vmem:[%s3522 + $0x1d0] sm:$0xff]
    %v3582 = vld [vmem:[%s3522 + $0x1d8] sm:$0xff]
    %v3583 = vld [vmem:[%s3522 + $0x1e0] sm:$0xff]
    %v3584 = vld [vmem:[%s3522 + $0x1e8] sm:$0xff]
    %v3585 = vld [vmem:[%s3522 + $0x1f0] sm:$0xff]
    %v3586 = vld [vmem:[%s3522 + $0x1f8] sm:$0xff]
    %3587 = vmatpush.msra.mxu0 %v3553
    %3588 = vmatpush.msra.mxu0 %v3551
    %3589 = vmatpush.msra.mxu0 %v3549
    %3590 = vmatpush.msra.mxu0 %v3547
    %3591 = vmatpush.msra.mxu0 %v3545
    %3592 = vmatpush.msra.mxu0 %v3543
    %3593 = vmatpush.msra.mxu0 %v3541
    %3594 = vmatpush.msra.mxu0 %v3539
    %3595 = vmatpush.msra.mxu0 %v3537
    %3596 = vmatpush.msra.mxu0 %v3535
    %3597 = vmatpush.msra.mxu0 %v3533
    %3598 = vmatpush.msra.mxu0 %v3531
    %3599 = vmatpush.msra.mxu0 %v3529
    %3600 = vmatpush.msra.mxu0 %v3527
    %3601 = vmatpush.msra.mxu0 %v3525
    %3602 = vmatpush.msra.mxu0 %v3523
    %3603 = vmatmul.f32.gmra.mxu0 %v3500
    %v3604 = vpop.f32.mrf.mxu0
    %v3605 = vadd.f32 0.0, %v3604
    %3606 = vdwg.mxu0
    %3607 = vmatpush.msra.mxu0 %v3585
    %3608 = vmatpush.msra.mxu0 %v3583
    %3609 = vmatpush.msra.mxu0 %v3581
    %3610 = vmatpush.msra.mxu0 %v3579
    %3611 = vmatpush.msra.mxu0 %v3577
    %3612 = vmatpush.msra.mxu0 %v3575
    %3613 = vmatpush.msra.mxu0 %v3573
    %3614 = vmatpush.msra.mxu0 %v3571
    %3615 = vmatpush.msra.mxu0 %v3569
    %3616 = vmatpush.msra.mxu0 %v3567
    %3617 = vmatpush.msra.mxu0 %v3565
    %3618 = vmatpush.msra.mxu0 %v3563
    %3619 = vmatpush.msra.mxu0 %v3561
    %3620 = vmatpush.msra.mxu0 %v3559
    %3621 = vmatpush.msra.mxu0 %v3557
    %3622 = vmatpush.msra.mxu0 %v3555
    %3623 = vmatmul.f32.gmra.mxu0 %v3520
    %v3624 = vpop.f32.mrf.mxu0
    %v3625 = vadd.f32 %v3605, %v3624
    %3626 = vdwg.mxu0
    %3627 = vmatpush.msra.mxu0 %v3554
    %3628 = vmatpush.msra.mxu0 %v3552
    %3629 = vmatpush.msra.mxu0 %v3550
    %3630 = vmatpush.msra.mxu0 %v3548
    %3631 = vmatpush.msra.mxu0 %v3546
    %3632 = vmatpush.msra.mxu0 %v3544
    %3633 = vmatpush.msra.mxu0 %v3542
    %3634 = vmatpush.msra.mxu0 %v3540
    %3635 = vmatpush.msra.mxu0 %v3538
    %3636 = vmatpush.msra.mxu0 %v3536
    %3637 = vmatpush.msra.mxu0 %v3534
    %3638 = vmatpush.msra.mxu0 %v3532
    %3639 = vmatpush.msra.mxu0 %v3530
    %3640 = vmatpush.msra.mxu0 %v3528
    %3641 = vmatpush.msra.mxu0 %v3526
    %3642 = vmatpush.msra.mxu0 %v3524
    %3643 = vmatmul.f32.gmra.mxu0 %v3500
    %v3644 = vpop.f32.mrf.mxu0
    %v3645 = vadd.f32 0.0, %v3644
    %3646 = vdwg.mxu0
    %3647 = vmatpush.msra.mxu0 %v3586
    %3648 = vmatpush.msra.mxu0 %v3584
    %3649 = vmatpush.msra.mxu0 %v3582
    %3650 = vmatpush.msra.mxu0 %v3580
    %3651 = vmatpush.msra.mxu0 %v3578
    %3652 = vmatpush.msra.mxu0 %v3576
    %3653 = vmatpush.msra.mxu0 %v3574
    %3654 = vmatpush.msra.mxu0 %v3572
    %3655 = vmatpush.msra.mxu0 %v3570
    %3656 = vmatpush.msra.mxu0 %v3568
    %3657 = vmatpush.msra.mxu0 %v3566
    %3658 = vmatpush.msra.mxu0 %v3564
    %3659 = vmatpush.msra.mxu0 %v3562
    %3660 = vmatpush.msra.mxu0 %v3560
    %3661 = vmatpush.msra.mxu0 %v3558
    %3662 = vmatpush.msra.mxu0 %v3556
    %3663 = vmatmul.f32.gmra.mxu0 %v3520
    %v3664 = vpop.f32.mrf.mxu0
    %v3665 = vadd.f32 %v3645, %v3664
    %3666 = vdwg.mxu0
    %v3667 = vadd.f32 %v3440, %v3625
    %v3668 = vadd.f32 %v3480, %v3665
    %3669 = vmatpush.msra.mxu0 0.0
    %3670 = vmatpush.msra.mxu0 0.0
    %3671 = vmatpush.msra.mxu0 0.0
    %3672 = vmatpush.msra.mxu0 0.0
    %3673 = vmatpush.msra.mxu0 0.0
    %3674 = vmatpush.msra.mxu0 0.0
    %3675 = vmatpush.msra.mxu0 0.0
    %3676 = vmatpush.msra.mxu0 0.0
    %3677 = vmatpush.msra.mxu0 0.0
    %3678 = vmatpush.msra.mxu0 0.0
    %3679 = vmatpush.msra.mxu0 0.0
    %3680 = vmatpush.msra.mxu0 0.0
    %3681 = vmatpush.msra.mxu0 0.0
    %3682 = vmatpush.msra.mxu0 0.0
    %3683 = vmatpush.msra.mxu0 %v3111
    %3684 = vmatpush.msra.mxu0 %v3109
    %3685 = vmatmul.f32.gmra.mxu0 %v1651
    %v3686 = vpop.f32.mrf.mxu0
    %v3687 = vadd.f32 0.0, %v3686
    %3688 = vdwg.mxu0
    %3689 = vmatpush.msra.mxu0 0.0
    %3690 = vmatpush.msra.mxu0 0.0
    %3691 = vmatpush.msra.mxu0 0.0
    %3692 = vmatpush.msra.mxu0 0.0
    %3693 = vmatpush.msra.mxu0 0.0
    %3694 = vmatpush.msra.mxu0 0.0
    %3695 = vmatpush.msra.mxu0 0.0
    %3696 = vmatpush.msra.mxu0 0.0
    %3697 = vmatpush.msra.mxu0 0.0
    %3698 = vmatpush.msra.mxu0 0.0
    %3699 = vmatpush.msra.mxu0 0.0
    %3700 = vmatpush.msra.mxu0 0.0
    %3701 = vmatpush.msra.mxu0 0.0
    %3702 = vmatpush.msra.mxu0 0.0
    %3703 = vmatpush.msra.mxu0 %v3112
    %3704 = vmatpush.msra.mxu0 %v3110
    %3705 = vmatmul.f32.gmra.mxu0 %v1651
    %v3706 = vpop.f32.mrf.mxu0
    %v3707 = vadd.f32 0.0, %v3706
    %3708 = vdwg.mxu0
    %s3709 = scalar_lea.vmem %s9, 1536
    %v3710 = vld [vmem:[%s3709] sm:$0xff]
    %v3711 = vld [vmem:[%s3709 + $0x8] sm:$0xff]
    %v3712 = vld [vmem:[%s3709 + $0x10] sm:$0xff]
    %v3713 = vld [vmem:[%s3709 + $0x18] sm:$0xff]
    %v3714 = vld [vmem:[%s3709 + $0x20] sm:$0xff]
    %v3715 = vld [vmem:[%s3709 + $0x28] sm:$0xff]
    %v3716 = vld [vmem:[%s3709 + $0x30] sm:$0xff]
    %v3717 = vld [vmem:[%s3709 + $0x38] sm:$0xff]
    %v3718 = vld [vmem:[%s3709 + $0x40] sm:$0xff]
    %v3719 = vld [vmem:[%s3709 + $0x48] sm:$0xff]
    %v3720 = vld [vmem:[%s3709 + $0x50] sm:$0xff]
    %v3721 = vld [vmem:[%s3709 + $0x58] sm:$0xff]
    %v3722 = vld [vmem:[%s3709 + $0x60] sm:$0xff]
    %v3723 = vld [vmem:[%s3709 + $0x68] sm:$0xff]
    %v3724 = vld [vmem:[%s3709 + $0x70] sm:$0xff]
    %v3725 = vld [vmem:[%s3709 + $0x78] sm:$0xff]
    %v3726 = vld [vmem:[%s3709 + $0x80] sm:$0xff]
    %v3727 = vld [vmem:[%s3709 + $0x88] sm:$0xff]
    %v3728 = vld [vmem:[%s3709 + $0x90] sm:$0xff]
    %v3729 = vld [vmem:[%s3709 + $0x98] sm:$0xff]
    %v3730 = vld [vmem:[%s3709 + $0xa0] sm:$0xff]
    %v3731 = vld [vmem:[%s3709 + $0xa8] sm:$0xff]
    %v3732 = vld [vmem:[%s3709 + $0xb0] sm:$0xff]
    %v3733 = vld [vmem:[%s3709 + $0xb8] sm:$0xff]
    %v3734 = vld [vmem:[%s3709 + $0xc0] sm:$0xff]
    %v3735 = vld [vmem:[%s3709 + $0xc8] sm:$0xff]
    %v3736 = vld [vmem:[%s3709 + $0xd0] sm:$0xff]
    %v3737 = vld [vmem:[%s3709 + $0xd8] sm:$0xff]
    %v3738 = vld [vmem:[%s3709 + $0xe0] sm:$0xff]
    %v3739 = vld [vmem:[%s3709 + $0xe8] sm:$0xff]
    %v3740 = vld [vmem:[%s3709 + $0xf0] sm:$0xff]
    %v3741 = vld [vmem:[%s3709 + $0xf8] sm:$0xff]
    %v3742 = vld [vmem:[%s3709 + $0x100] sm:$0xff]
    %v3743 = vld [vmem:[%s3709 + $0x108] sm:$0xff]
    %v3744 = vld [vmem:[%s3709 + $0x110] sm:$0xff]
    %v3745 = vld [vmem:[%s3709 + $0x118] sm:$0xff]
    %v3746 = vld [vmem:[%s3709 + $0x120] sm:$0xff]
    %v3747 = vld [vmem:[%s3709 + $0x128] sm:$0xff]
    %v3748 = vld [vmem:[%s3709 + $0x130] sm:$0xff]
    %v3749 = vld [vmem:[%s3709 + $0x138] sm:$0xff]
    %v3750 = vld [vmem:[%s3709 + $0x140] sm:$0xff]
    %v3751 = vld [vmem:[%s3709 + $0x148] sm:$0xff]
    %v3752 = vld [vmem:[%s3709 + $0x150] sm:$0xff]
    %v3753 = vld [vmem:[%s3709 + $0x158] sm:$0xff]
    %v3754 = vld [vmem:[%s3709 + $0x160] sm:$0xff]
    %v3755 = vld [vmem:[%s3709 + $0x168] sm:$0xff]
    %v3756 = vld [vmem:[%s3709 + $0x170] sm:$0xff]
    %v3757 = vld [vmem:[%s3709 + $0x178] sm:$0xff]
    %v3758 = vld [vmem:[%s3709 + $0x180] sm:$0xff]
    %v3759 = vld [vmem:[%s3709 + $0x188] sm:$0xff]
    %v3760 = vld [vmem:[%s3709 + $0x190] sm:$0xff]
    %v3761 = vld [vmem:[%s3709 + $0x198] sm:$0xff]
    %v3762 = vld [vmem:[%s3709 + $0x1a0] sm:$0xff]
    %v3763 = vld [vmem:[%s3709 + $0x1a8] sm:$0xff]
    %v3764 = vld [vmem:[%s3709 + $0x1b0] sm:$0xff]
    %v3765 = vld [vmem:[%s3709 + $0x1b8] sm:$0xff]
    %v3766 = vld [vmem:[%s3709 + $0x1c0] sm:$0xff]
    %v3767 = vld [vmem:[%s3709 + $0x1c8] sm:$0xff]
    %v3768 = vld [vmem:[%s3709 + $0x1d0] sm:$0xff]
    %v3769 = vld [vmem:[%s3709 + $0x1d8] sm:$0xff]
    %v3770 = vld [vmem:[%s3709 + $0x1e0] sm:$0xff]
    %v3771 = vld [vmem:[%s3709 + $0x1e8] sm:$0xff]
    %v3772 = vld [vmem:[%s3709 + $0x1f0] sm:$0xff]
    %v3773 = vld [vmem:[%s3709 + $0x1f8] sm:$0xff]
    %3774 = vmatpush.msra.mxu0 %v3740
    %3775 = vmatpush.msra.mxu0 %v3738
    %3776 = vmatpush.msra.mxu0 %v3736
    %3777 = vmatpush.msra.mxu0 %v3734
    %3778 = vmatpush.msra.mxu0 %v3732
    %3779 = vmatpush.msra.mxu0 %v3730
    %3780 = vmatpush.msra.mxu0 %v3728
    %3781 = vmatpush.msra.mxu0 %v3726
    %3782 = vmatpush.msra.mxu0 %v3724
    %3783 = vmatpush.msra.mxu0 %v3722
    %3784 = vmatpush.msra.mxu0 %v3720
    %3785 = vmatpush.msra.mxu0 %v3718
    %3786 = vmatpush.msra.mxu0 %v3716
    %3787 = vmatpush.msra.mxu0 %v3714
    %3788 = vmatpush.msra.mxu0 %v3712
    %3789 = vmatpush.msra.mxu0 %v3710
    %3790 = vmatmul.f32.gmra.mxu0 %v3687
    %v3791 = vpop.f32.mrf.mxu0
    %v3792 = vadd.f32 0.0, %v3791
    %3793 = vdwg.mxu0
    %3794 = vmatpush.msra.mxu0 %v3772
    %3795 = vmatpush.msra.mxu0 %v3770
    %3796 = vmatpush.msra.mxu0 %v3768
    %3797 = vmatpush.msra.mxu0 %v3766
    %3798 = vmatpush.msra.mxu0 %v3764
    %3799 = vmatpush.msra.mxu0 %v3762
    %3800 = vmatpush.msra.mxu0 %v3760
    %3801 = vmatpush.msra.mxu0 %v3758
    %3802 = vmatpush.msra.mxu0 %v3756
    %3803 = vmatpush.msra.mxu0 %v3754
    %3804 = vmatpush.msra.mxu0 %v3752
    %3805 = vmatpush.msra.mxu0 %v3750
    %3806 = vmatpush.msra.mxu0 %v3748
    %3807 = vmatpush.msra.mxu0 %v3746
    %3808 = vmatpush.msra.mxu0 %v3744
    %3809 = vmatpush.msra.mxu0 %v3742
    %3810 = vmatmul.f32.gmra.mxu0 %v3707
    %v3811 = vpop.f32.mrf.mxu0
    %v3812 = vadd.f32 %v3792, %v3811
    %3813 = vdwg.mxu0
    %3814 = vmatpush.msra.mxu0 %v3741
    %3815 = vmatpush.msra.mxu0 %v3739
    %3816 = vmatpush.msra.mxu0 %v3737
    %3817 = vmatpush.msra.mxu0 %v3735
    %3818 = vmatpush.msra.mxu0 %v3733
    %3819 = vmatpush.msra.mxu0 %v3731
    %3820 = vmatpush.msra.mxu0 %v3729
    %3821 = vmatpush.msra.mxu0 %v3727
    %3822 = vmatpush.msra.mxu0 %v3725
    %3823 = vmatpush.msra.mxu0 %v3723
    %3824 = vmatpush.msra.mxu0 %v3721
    %3825 = vmatpush.msra.mxu0 %v3719
    %3826 = vmatpush.msra.mxu0 %v3717
    %3827 = vmatpush.msra.mxu0 %v3715
    %3828 = vmatpush.msra.mxu0 %v3713
    %3829 = vmatpush.msra.mxu0 %v3711
    %3830 = vmatmul.f32.gmra.mxu0 %v3687
    %v3831 = vpop.f32.mrf.mxu0
    %v3832 = vadd.f32 0.0, %v3831
    %3833 = vdwg.mxu0
    %3834 = vmatpush.msra.mxu0 %v3773
    %3835 = vmatpush.msra.mxu0 %v3771
    %3836 = vmatpush.msra.mxu0 %v3769
    %3837 = vmatpush.msra.mxu0 %v3767
    %3838 = vmatpush.msra.mxu0 %v3765
    %3839 = vmatpush.msra.mxu0 %v3763
    %3840 = vmatpush.msra.mxu0 %v3761
    %3841 = vmatpush.msra.mxu0 %v3759
    %3842 = vmatpush.msra.mxu0 %v3757
    %3843 = vmatpush.msra.mxu0 %v3755
    %3844 = vmatpush.msra.mxu0 %v3753
    %3845 = vmatpush.msra.mxu0 %v3751
    %3846 = vmatpush.msra.mxu0 %v3749
    %3847 = vmatpush.msra.mxu0 %v3747
    %3848 = vmatpush.msra.mxu0 %v3745
    %3849 = vmatpush.msra.mxu0 %v3743
    %3850 = vmatmul.f32.gmra.mxu0 %v3707
    %v3851 = vpop.f32.mrf.mxu0
    %v3852 = vadd.f32 %v3832, %v3851
    %3853 = vdwg.mxu0
    %v3854 = vadd.f32 %v3667, %v3812
    %v3855 = vadd.f32 %v3668, %v3852
    %v3856 = vld [vmem:[%s15] sm:$0x3]
    %v3858 = vperm.slane %v3856, 0
    %v3859 = vperm.slane %v3856, 1
    %v3862 = vadd.f32 %v3854, %v3858
    %v3863 = vadd.f32 %v3855, %v3859
    %v3865 = vsel %vm1853, %v3862, 0
    %v3868 = vsel %vm1853, %v3863, 0
    %3870 = vmatpush.msra.mxu0 0.0
    %3871 = vmatpush.msra.mxu0 0.0
    %3872 = vmatpush.msra.mxu0 0.0
    %3873 = vmatpush.msra.mxu0 0.0
    %3874 = vmatpush.msra.mxu0 0.0
    %3875 = vmatpush.msra.mxu0 0.0
    %3876 = vmatpush.msra.mxu0 0.0
    %3877 = vmatpush.msra.mxu0 0.0
    %3878 = vmatpush.msra.mxu0 0.0
    %3879 = vmatpush.msra.mxu0 0.0
    %3880 = vmatpush.msra.mxu0 0.0
    %3881 = vmatpush.msra.mxu0 0.0
    %3882 = vmatpush.msra.mxu0 0.0
    %3883 = vmatpush.msra.mxu0 0.0
    %3884 = vmatpush.msra.mxu0 0.0
    %3885 = vmatpush.msra.mxu0 %v3865
    %3886 = vmatmul.f32.gmra.mxu0 %v1851
    %v3887 = vpop.f32.mrf.mxu0
    %v3888 = vadd.f32 0.0, %v3887
    %3889 = vdwg.mxu0
    %3890 = vmatpush.msra.mxu0 0.0
    %3891 = vmatpush.msra.mxu0 0.0
    %3892 = vmatpush.msra.mxu0 0.0
    %3893 = vmatpush.msra.mxu0 0.0
    %3894 = vmatpush.msra.mxu0 0.0
    %3895 = vmatpush.msra.mxu0 0.0
    %3896 = vmatpush.msra.mxu0 0.0
    %3897 = vmatpush.msra.mxu0 0.0
    %3898 = vmatpush.msra.mxu0 0.0
    %3899 = vmatpush.msra.mxu0 0.0
    %3900 = vmatpush.msra.mxu0 0.0
    %3901 = vmatpush.msra.mxu0 0.0
    %3902 = vmatpush.msra.mxu0 0.0
    %3903 = vmatpush.msra.mxu0 0.0
    %3904 = vmatpush.msra.mxu0 0.0
    %3905 = vmatpush.msra.mxu0 %v3868
    %3906 = vmatmul.f32.gmra.mxu0 %v1851
    %v3907 = vpop.f32.mrf.mxu0
    %v3908 = vadd.f32 0.0, %v3907
    %3909 = vdwg.mxu0
    %v3910 = vld [vmem:[%s10] sm:$0xff]
    %v3911 = vld [vmem:[%s10 + $0x8] sm:$0xff]
    %v3912 = vld [vmem:[%s10 + $0x10] sm:$0xff]
    %v3913 = vld [vmem:[%s10 + $0x18] sm:$0xff]
    %v3914 = vld [vmem:[%s10 + $0x20] sm:$0xff]
    %v3915 = vld [vmem:[%s10 + $0x28] sm:$0xff]
    %v3916 = vld [vmem:[%s10 + $0x30] sm:$0xff]
    %v3917 = vld [vmem:[%s10 + $0x38] sm:$0xff]
    %v3918 = vld [vmem:[%s10 + $0x40] sm:$0xff]
    %v3919 = vld [vmem:[%s10 + $0x48] sm:$0xff]
    %v3920 = vld [vmem:[%s10 + $0x50] sm:$0xff]
    %v3921 = vld [vmem:[%s10 + $0x58] sm:$0xff]
    %v3922 = vld [vmem:[%s10 + $0x60] sm:$0xff]
    %v3923 = vld [vmem:[%s10 + $0x68] sm:$0xff]
    %v3924 = vld [vmem:[%s10 + $0x70] sm:$0xff]
    %v3925 = vld [vmem:[%s10 + $0x78] sm:$0xff]
    %v3926 = vld [vmem:[%s10 + $0x80] sm:$0xff]
    %v3927 = vld [vmem:[%s10 + $0x88] sm:$0xff]
    %v3928 = vld [vmem:[%s10 + $0x90] sm:$0xff]
    %v3929 = vld [vmem:[%s10 + $0x98] sm:$0xff]
    %v3930 = vld [vmem:[%s10 + $0xa0] sm:$0xff]
    %v3931 = vld [vmem:[%s10 + $0xa8] sm:$0xff]
    %v3932 = vld [vmem:[%s10 + $0xb0] sm:$0xff]
    %v3933 = vld [vmem:[%s10 + $0xb8] sm:$0xff]
    %3934 = vmatpush.msra.mxu0 0.0
    %3935 = vmatpush.msra.mxu0 0.0
    %3936 = vmatpush.msra.mxu0 0.0
    %3937 = vmatpush.msra.mxu0 0.0
    %3938 = vmatpush.msra.mxu0 0.0
    %3939 = vmatpush.msra.mxu0 0.0
    %3940 = vmatpush.msra.mxu0 0.0
    %3941 = vmatpush.msra.mxu0 0.0
    %3942 = vmatpush.msra.mxu0 0.0
    %3943 = vmatpush.msra.mxu0 0.0
    %3944 = vmatpush.msra.mxu0 0.0
    %3945 = vmatpush.msra.mxu0 0.0
    %3946 = vmatpush.msra.mxu0 0.0
    %3947 = vmatpush.msra.mxu0 0.0
    %3948 = vmatpush.msra.mxu0 0.0
    %3949 = vmatpush.msra.mxu0 %v3865
    %3950 = vmatmul.f32.gmra.mxu0 %v1927
    %v3951 = vpop.f32.mrf.mxu0
    %v3952 = vadd.f32 0.0, %v3951
    %3953 = vdwg.mxu0
    %3954 = vmatpush.msra.mxu0 0.0
    %3955 = vmatpush.msra.mxu0 0.0
    %3956 = vmatpush.msra.mxu0 0.0
    %3957 = vmatpush.msra.mxu0 0.0
    %3958 = vmatpush.msra.mxu0 0.0
    %3959 = vmatpush.msra.mxu0 0.0
    %3960 = vmatpush.msra.mxu0 0.0
    %3961 = vmatpush.msra.mxu0 0.0
    %3962 = vmatpush.msra.mxu0 0.0
    %3963 = vmatpush.msra.mxu0 0.0
    %3964 = vmatpush.msra.mxu0 0.0
    %3965 = vmatpush.msra.mxu0 0.0
    %3966 = vmatpush.msra.mxu0 0.0
    %3967 = vmatpush.msra.mxu0 0.0
    %3968 = vmatpush.msra.mxu0 0.0
    %3969 = vmatpush.msra.mxu0 %v3868
    %3970 = vmatmul.f32.gmra.mxu0 %v1927
    %v3971 = vpop.f32.mrf.mxu0
    %v3972 = vadd.f32 0.0, %v3971
    %3973 = vdwg.mxu0
    %s3974 = scalar_lea.vmem %s10, 192
    %v3975 = vld [vmem:[%s3974] sm:$0xff]
    %v3976 = vld [vmem:[%s3974 + $0x8] sm:$0xff]
    %v3977 = vld [vmem:[%s3974 + $0x10] sm:$0xff]
    %v3978 = vld [vmem:[%s3974 + $0x18] sm:$0xff]
    %v3979 = vld [vmem:[%s3974 + $0x20] sm:$0xff]
    %v3980 = vld [vmem:[%s3974 + $0x28] sm:$0xff]
    %v3981 = vld [vmem:[%s3974 + $0x30] sm:$0xff]
    %v3982 = vld [vmem:[%s3974 + $0x38] sm:$0xff]
    %v3983 = vld [vmem:[%s3974 + $0x40] sm:$0xff]
    %v3984 = vld [vmem:[%s3974 + $0x48] sm:$0xff]
    %v3985 = vld [vmem:[%s3974 + $0x50] sm:$0xff]
    %v3986 = vld [vmem:[%s3974 + $0x58] sm:$0xff]
    %v3987 = vld [vmem:[%s3974 + $0x60] sm:$0xff]
    %v3988 = vld [vmem:[%s3974 + $0x68] sm:$0xff]
    %v3989 = vld [vmem:[%s3974 + $0x70] sm:$0xff]
    %v3990 = vld [vmem:[%s3974 + $0x78] sm:$0xff]
    %v3991 = vld [vmem:[%s3974 + $0x80] sm:$0xff]
    %v3992 = vld [vmem:[%s3974 + $0x88] sm:$0xff]
    %v3993 = vld [vmem:[%s3974 + $0x90] sm:$0xff]
    %v3994 = vld [vmem:[%s3974 + $0x98] sm:$0xff]
    %v3995 = vld [vmem:[%s3974 + $0xa0] sm:$0xff]
    %v3996 = vld [vmem:[%s3974 + $0xa8] sm:$0xff]
    %v3997 = vld [vmem:[%s3974 + $0xb0] sm:$0xff]
    %v3998 = vld [vmem:[%s3974 + $0xb8] sm:$0xff]
    %v4000 = vsel %vm1994, %v3972, 0
    %4002 = vmatpush.msra.mxu0 %v3990
    %4003 = vmatpush.msra.mxu0 %v3989
    %4004 = vmatpush.msra.mxu0 %v3988
    %4005 = vmatpush.msra.mxu0 %v3987
    %4006 = vmatpush.msra.mxu0 %v3986
    %4007 = vmatpush.msra.mxu0 %v3985
    %4008 = vmatpush.msra.mxu0 %v3984
    %4009 = vmatpush.msra.mxu0 %v3983
    %4010 = vmatpush.msra.mxu0 %v3982
    %4011 = vmatpush.msra.mxu0 %v3981
    %4012 = vmatpush.msra.mxu0 %v3980
    %4013 = vmatpush.msra.mxu0 %v3979
    %4014 = vmatpush.msra.mxu0 %v3978
    %4015 = vmatpush.msra.mxu0 %v3977
    %4016 = vmatpush.msra.mxu0 %v3976
    %4017 = vmatpush.msra.mxu0 %v3975
    %4018 = vmatmul.f32.gmra.mxu0 %v3952
    %v4019 = vpop.f32.mrf.mxu0
    %v4020 = vadd.f32 0.0, %v4019
    %4021 = vdwg.mxu0
    %4022 = vmatpush.msra.mxu0 0.0
    %4023 = vmatpush.msra.mxu0 0.0
    %4024 = vmatpush.msra.mxu0 0.0
    %4025 = vmatpush.msra.mxu0 0.0
    %4026 = vmatpush.msra.mxu0 0.0
    %4027 = vmatpush.msra.mxu0 0.0
    %4028 = vmatpush.msra.mxu0 0.0
    %4029 = vmatpush.msra.mxu0 0.0
    %4030 = vmatpush.msra.mxu0 %v3998
    %4031 = vmatpush.msra.mxu0 %v3997
    %4032 = vmatpush.msra.mxu0 %v3996
    %4033 = vmatpush.msra.mxu0 %v3995
    %4034 = vmatpush.msra.mxu0 %v3994
    %4035 = vmatpush.msra.mxu0 %v3993
    %4036 = vmatpush.msra.mxu0 %v3992
    %4037 = vmatpush.msra.mxu0 %v3991
    %4038 = vmatmul.f32.gmra.mxu0 %v4000
    %v4039 = vpop.f32.mrf.mxu0
    %v4040 = vadd.f32 %v4020, %v4039
    %4041 = vdwg.mxu0
    %v4043 = vsel %vm1994, %v3908, 0
    %4045 = vmatpush.msra.mxu0 %v3925
    %4046 = vmatpush.msra.mxu0 %v3924
    %4047 = vmatpush.msra.mxu0 %v3923
    %4048 = vmatpush.msra.mxu0 %v3922
    %4049 = vmatpush.msra.mxu0 %v3921
    %4050 = vmatpush.msra.mxu0 %v3920
    %4051 = vmatpush.msra.mxu0 %v3919
    %4052 = vmatpush.msra.mxu0 %v3918
    %4053 = vmatpush.msra.mxu0 %v3917
    %4054 = vmatpush.msra.mxu0 %v3916
    %4055 = vmatpush.msra.mxu0 %v3915
    %4056 = vmatpush.msra.mxu0 %v3914
    %4057 = vmatpush.msra.mxu0 %v3913
    %4058 = vmatpush.msra.mxu0 %v3912
    %4059 = vmatpush.msra.mxu0 %v3911
    %4060 = vmatpush.msra.mxu0 %v3910
    %4061 = vmatmul.f32.gmra.mxu0 %v3888
    %v4062 = vpop.f32.mrf.mxu0
    %v4063 = vadd.f32 %v4040, %v4062
    %4064 = vdwg.mxu0
    %4065 = vmatpush.msra.mxu0 0.0
    %4066 = vmatpush.msra.mxu0 0.0
    %4067 = vmatpush.msra.mxu0 0.0
    %4068 = vmatpush.msra.mxu0 0.0
    %4069 = vmatpush.msra.mxu0 0.0
    %4070 = vmatpush.msra.mxu0 0.0
    %4071 = vmatpush.msra.mxu0 0.0
    %4072 = vmatpush.msra.mxu0 0.0
    %4073 = vmatpush.msra.mxu0 %v3933
    %4074 = vmatpush.msra.mxu0 %v3932
    %4075 = vmatpush.msra.mxu0 %v3931
    %4076 = vmatpush.msra.mxu0 %v3930
    %4077 = vmatpush.msra.mxu0 %v3929
    %4078 = vmatpush.msra.mxu0 %v3928
    %4079 = vmatpush.msra.mxu0 %v3927
    %4080 = vmatpush.msra.mxu0 %v3926
    %4081 = vmatmul.f32.gmra.mxu0 %v4043
    %v4082 = vpop.f32.mrf.mxu0
    %v4083 = vadd.f32 %v4063, %v4082
    %4084 = vdwg.mxu0
    %4085 = vmatpush.msra.mxu0 0.0
    %4086 = vmatpush.msra.mxu0 0.0
    %4087 = vmatpush.msra.mxu0 0.0
    %4088 = vmatpush.msra.mxu0 0.0
    %4089 = vmatpush.msra.mxu0 0.0
    %4090 = vmatpush.msra.mxu0 0.0
    %4091 = vmatpush.msra.mxu0 0.0
    %4092 = vmatpush.msra.mxu0 0.0
    %4093 = vmatpush.msra.mxu0 0.0
    %4094 = vmatpush.msra.mxu0 0.0
    %4095 = vmatpush.msra.mxu0 0.0
    %4096 = vmatpush.msra.mxu0 0.0
    %4097 = vmatpush.msra.mxu0 0.0
    %4098 = vmatpush.msra.mxu0 0.0
    %4099 = vmatpush.msra.mxu0 0.0
    %4100 = vmatpush.msra.mxu0 %v3865
    %4101 = vmatmul.f32.gmra.mxu0 %v2084
    %v4102 = vpop.f32.mrf.mxu0
    %v4103 = vadd.f32 0.0, %v4102
    %4104 = vdwg.mxu0
    %4105 = vmatpush.msra.mxu0 0.0
    %4106 = vmatpush.msra.mxu0 0.0
    %4107 = vmatpush.msra.mxu0 0.0
    %4108 = vmatpush.msra.mxu0 0.0
    %4109 = vmatpush.msra.mxu0 0.0
    %4110 = vmatpush.msra.mxu0 0.0
    %4111 = vmatpush.msra.mxu0 0.0
    %4112 = vmatpush.msra.mxu0 0.0
    %4113 = vmatpush.msra.mxu0 0.0
    %4114 = vmatpush.msra.mxu0 0.0
    %4115 = vmatpush.msra.mxu0 0.0
    %4116 = vmatpush.msra.mxu0 0.0
    %4117 = vmatpush.msra.mxu0 0.0
    %4118 = vmatpush.msra.mxu0 0.0
    %4119 = vmatpush.msra.mxu0 0.0
    %4120 = vmatpush.msra.mxu0 %v3868
    %4121 = vmatmul.f32.gmra.mxu0 %v2084
    %v4122 = vpop.f32.mrf.mxu0
    %v4123 = vadd.f32 0.0, %v4122
    %4124 = vdwg.mxu0
    %s4125 = scalar_lea.vmem %s10, 384
    %v4126 = vld [vmem:[%s4125] sm:$0xff]
    %v4127 = vld [vmem:[%s4125 + $0x8] sm:$0xff]
    %v4128 = vld [vmem:[%s4125 + $0x10] sm:$0xff]
    %v4129 = vld [vmem:[%s4125 + $0x18] sm:$0xff]
    %v4130 = vld [vmem:[%s4125 + $0x20] sm:$0xff]
    %v4131 = vld [vmem:[%s4125 + $0x28] sm:$0xff]
    %v4132 = vld [vmem:[%s4125 + $0x30] sm:$0xff]
    %v4133 = vld [vmem:[%s4125 + $0x38] sm:$0xff]
    %v4134 = vld [vmem:[%s4125 + $0x40] sm:$0xff]
    %v4135 = vld [vmem:[%s4125 + $0x48] sm:$0xff]
    %v4136 = vld [vmem:[%s4125 + $0x50] sm:$0xff]
    %v4137 = vld [vmem:[%s4125 + $0x58] sm:$0xff]
    %v4138 = vld [vmem:[%s4125 + $0x60] sm:$0xff]
    %v4139 = vld [vmem:[%s4125 + $0x68] sm:$0xff]
    %v4140 = vld [vmem:[%s4125 + $0x70] sm:$0xff]
    %v4141 = vld [vmem:[%s4125 + $0x78] sm:$0xff]
    %v4142 = vld [vmem:[%s4125 + $0x80] sm:$0xff]
    %v4143 = vld [vmem:[%s4125 + $0x88] sm:$0xff]
    %v4144 = vld [vmem:[%s4125 + $0x90] sm:$0xff]
    %v4145 = vld [vmem:[%s4125 + $0x98] sm:$0xff]
    %v4146 = vld [vmem:[%s4125 + $0xa0] sm:$0xff]
    %v4147 = vld [vmem:[%s4125 + $0xa8] sm:$0xff]
    %v4148 = vld [vmem:[%s4125 + $0xb0] sm:$0xff]
    %v4149 = vld [vmem:[%s4125 + $0xb8] sm:$0xff]
    %v4151 = vsel %vm1994, %v4123, 0
    %4153 = vmatpush.msra.mxu0 %v4141
    %4154 = vmatpush.msra.mxu0 %v4140
    %4155 = vmatpush.msra.mxu0 %v4139
    %4156 = vmatpush.msra.mxu0 %v4138
    %4157 = vmatpush.msra.mxu0 %v4137
    %4158 = vmatpush.msra.mxu0 %v4136
    %4159 = vmatpush.msra.mxu0 %v4135
    %4160 = vmatpush.msra.mxu0 %v4134
    %4161 = vmatpush.msra.mxu0 %v4133
    %4162 = vmatpush.msra.mxu0 %v4132
    %4163 = vmatpush.msra.mxu0 %v4131
    %4164 = vmatpush.msra.mxu0 %v4130
    %4165 = vmatpush.msra.mxu0 %v4129
    %4166 = vmatpush.msra.mxu0 %v4128
    %4167 = vmatpush.msra.mxu0 %v4127
    %4168 = vmatpush.msra.mxu0 %v4126
    %4169 = vmatmul.f32.gmra.mxu0 %v4103
    %v4170 = vpop.f32.mrf.mxu0
    %v4171 = vadd.f32 0.0, %v4170
    %4172 = vdwg.mxu0
    %4173 = vmatpush.msra.mxu0 0.0
    %4174 = vmatpush.msra.mxu0 0.0
    %4175 = vmatpush.msra.mxu0 0.0
    %4176 = vmatpush.msra.mxu0 0.0
    %4177 = vmatpush.msra.mxu0 0.0
    %4178 = vmatpush.msra.mxu0 0.0
    %4179 = vmatpush.msra.mxu0 0.0
    %4180 = vmatpush.msra.mxu0 0.0
    %4181 = vmatpush.msra.mxu0 %v4149
    %4182 = vmatpush.msra.mxu0 %v4148
    %4183 = vmatpush.msra.mxu0 %v4147
    %4184 = vmatpush.msra.mxu0 %v4146
    %4185 = vmatpush.msra.mxu0 %v4145
    %4186 = vmatpush.msra.mxu0 %v4144
    %4187 = vmatpush.msra.mxu0 %v4143
    %4188 = vmatpush.msra.mxu0 %v4142
    %4189 = vmatmul.f32.gmra.mxu0 %v4151
    %v4190 = vpop.f32.mrf.mxu0
    %v4191 = vadd.f32 %v4171, %v4190
    %4192 = vdwg.mxu0
    %v4193 = vadd.f32 %v4083, %v4191
    %v4194 = vld [vmem:[%s16] sm:$0x1]
    %v4196 = vperm.slane %v4194, 0
    %v4198 = vadd.f32 %v4193, %v4196
    %v4199 = vld [vmem:[%s17] sm:$0xff]
    %v4200 = vld [vmem:[%s17 + $0x8] sm:$0xff]
    %v4201 = vld [vmem:[%s17 + $0x10] sm:$0xff]
    %v4202 = vld [vmem:[%s17 + $0x18] sm:$0xff]
    %v4203 = vld [vmem:[%s17 + $0x20] sm:$0xff]
    %v4204 = vld [vmem:[%s17 + $0x28] sm:$0xff]
    %v4205 = vld [vmem:[%s17 + $0x30] sm:$0xff]
    %v4206 = vld [vmem:[%s17 + $0x38] sm:$0xff]
    %v4208 = vsel %vm1994, %v4198, 0
    %4210 = vmatpush.msra.mxu0 0.0
    %4211 = vmatpush.msra.mxu0 0.0
    %4212 = vmatpush.msra.mxu0 0.0
    %4213 = vmatpush.msra.mxu0 0.0
    %4214 = vmatpush.msra.mxu0 0.0
    %4215 = vmatpush.msra.mxu0 0.0
    %4216 = vmatpush.msra.mxu0 0.0
    %4217 = vmatpush.msra.mxu0 0.0
    %4218 = vmatpush.msra.mxu0 %v4206
    %4219 = vmatpush.msra.mxu0 %v4205
    %4220 = vmatpush.msra.mxu0 %v4204
    %4221 = vmatpush.msra.mxu0 %v4203
    %4222 = vmatpush.msra.mxu0 %v4202
    %4223 = vmatpush.msra.mxu0 %v4201
    %4224 = vmatpush.msra.mxu0 %v4200
    %4225 = vmatpush.msra.mxu0 %v4199
    %4226 = vmatmul.f32.gmra.mxu0 %v4208
    %v4227 = vpop.f32.mrf.mxu0
    %v4228 = vadd.f32 0.0, %v4227
    %4229 = vdwg.mxu0
    %v4231 = vsel %vm1994, %v2199, 0
    %4233 = vmatpush.msra.mxu0 0.0
    %4234 = vmatpush.msra.mxu0 0.0
    %4235 = vmatpush.msra.mxu0 0.0
    %4236 = vmatpush.msra.mxu0 0.0
    %4237 = vmatpush.msra.mxu0 0.0
    %4238 = vmatpush.msra.mxu0 0.0
    %4239 = vmatpush.msra.mxu0 0.0
    %4240 = vmatpush.msra.mxu0 0.0
    %4241 = vmatpush.msra.mxu0 %v4206
    %4242 = vmatpush.msra.mxu0 %v4205
    %4243 = vmatpush.msra.mxu0 %v4204
    %4244 = vmatpush.msra.mxu0 %v4203
    %4245 = vmatpush.msra.mxu0 %v4202
    %4246 = vmatpush.msra.mxu0 %v4201
    %4247 = vmatpush.msra.mxu0 %v4200
    %4248 = vmatpush.msra.mxu0 %v4199
    %4249 = vmatmul.f32.gmra.mxu0 %v4231
    %v4250 = vpop.f32.mrf.mxu0
    %v4251 = vadd.f32 %v4228, %v4250
    %4252 = vdwg.mxu0
    %v4253 = vld [vmem:[%s18] sm:$0x1]
    %v4255 = vperm.slane %v4253, 0
    %v4257 = vadd.f32 %v4251, %v4255
    %vm4258 = vcmask 140288
    %4259 = vst.msk [vmem:[#allocation2] sm:$0x3] %vm4258, %v4257
    // Predicated region
    $region78: #{atari_policy_forward.1} parent=1 // pred_check
      _
    $region79: #{atari_policy_forward.1} parent=1 // pred_check_branch
      %4261 = sbr.rel (0) target = $region81
    $region80: #{atari_policy_forward.1} parent=1 // pred_region
      %4263 = vsyncadd [#allocation3], 0
      %s4265 = sshll.u32 [#allocation2], 4
      %s4266 = int_to_ptr.vmem [resolvable:$true] %s4265
      %s4267 = sshll.u32 %s19, 4
      %s4268 = int_to_ptr.hbm [resolvable:$true] %s4267
      %4270 = dma.vmem_to_hbm [thread:$0]  %s4266, 32, %s4268, [#allocation3]
    $region81: #{atari_policy_forward.1} parent=1 // pred_fallthru
      _
    // Predicated region
    $region82: #{atari_policy_forward.1} parent=1 // pred_check
      _
    $region83: #{atari_policy_forward.1} parent=1 // pred_check_branch
      %4272 = sbr.rel (0) target = $region85
    $region84: #{atari_policy_forward.1} parent=1 // pred_region
      %4274 = dma.done [#allocation3], 32
    $region85: #{atari_policy_forward.1} parent=1 // pred_fallthru
      _
    %4275 = vsyncpa [#allocation3], 1

</llo_original>
